<compile_context>
chip_gen: v5e
topology: v5e:2x2
jax: 0.10.0
libtpu: 0.0.40
codegen_flags: <defaults>
</compile_context>

<pallas_src>
import functools
import numpy as np
import jax
import jax.numpy as jnp
from jax import lax
from jax.experimental import pallas as pl
from jax.experimental.pallas import tpu as pltpu


NEG_INF = -1e30
_INV_SQRT2 = 0.7071067811865476


# ------------------------------------------------------------------ utilities
def get_positional_embeddings(sequence_length, d):
    result = np.ones((sequence_length, d), dtype=np.float32)
    for i in range(sequence_length):
        for j in range(d):
            if j % 2 == 0:
                result[i, j] = np.sin(i / 10000 ** (j / d))
            else:
                result[i, j] = np.cos(i / 10000 ** ((j - 1) / d))
    return result


def patchify(images, n_patches):
    # images: (N, C, H, W) -> (N, n_patches**2, C*ps*ps), flatten order (C, ph, pw)
    n, c, h, w = images.shape
    ps = h // n_patches
    x = images.reshape(n, c, n_patches, ps, n_patches, ps)
    x = x.transpose(0, 2, 4, 1, 3, 5)
    return x.reshape(n, n_patches * n_patches, c * ps * ps)


def _gelu_exact(x):
    # nn.GELU() default (erf-based, exact)
    return 0.5 * x * (1.0 + lax.erf(x * _INV_SQRT2))


def _block_diag(mats):
    n = sum(m.shape[0] for m in mats)
    out = jnp.zeros((n, n), mats[0].dtype)
    off = 0
    for m in mats:
        d = m.shape[0]
        out = out.at[off:off + d, off:off + d].set(m)
        off += d
    return out


# --------------------------------------------------------------------- kernel
def _vit_kernel(n_blocks, n_heads, d_head, b_block, s_pad, seq_len, eps, cdt,
                patches_ref, embed_ref, wm_ref,
                ln1g_ref, ln1b_ref,
                wqkv_ref, bqkv_ref,
                ln2g_ref, ln2b_ref,
                w1_ref, b1_ref, w2_ref, b2_ref,
                wc_ref, bc_ref,
                out_ref):
    hidden_d = n_heads * d_head
    bs = b_block * s_pad
    input_d = patches_ref.shape[-1]
    scale = 1.0 / float(d_head) ** 0.5

    def layernorm(z, g, b):
        mu = jnp.mean(z, axis=-1, keepdims=True)
        var = jnp.mean((z - mu) ** 2, axis=-1, keepdims=True)
        return (z - mu) / jnp.sqrt(var + eps) * g + b

    # Patch -> token projection; class token / positional embedding / mapper
    # bias are folded into the precomputed additive table embed_ref.
    x = patches_ref[...].reshape(bs, input_d)
    out = jnp.dot(x.astype(cdt), wm_ref[...],
                  preferred_element_type=jnp.float32) + embed_ref[...]

    # -inf mask on padded key columns (keys >= seq_len are padding rows).
    key_ids = lax.broadcasted_iota(jnp.int32, (1, 1, s_pad), 2)
    key_mask = jnp.where(key_ids < seq_len, 0.0, NEG_INF).astype(jnp.float32)

    for blk in range(n_blocks):
        # ---- multi-head self-attention branch (single fused QKV matmul)
        xn = layernorm(out, ln1g_ref[blk], ln1b_ref[blk]).astype(cdt)
        qkv = jnp.dot(xn, wqkv_ref[blk],
                      preferred_element_type=jnp.float32) + bqkv_ref[blk]

        head_outs = []
        for h in range(n_heads):
            q_sl = slice(h * d_head, (h + 1) * d_head)
            k_sl = slice(hidden_d + h * d_head, hidden_d + (h + 1) * d_head)
            v_sl = slice(2 * hidden_d + h * d_head,
                         2 * hidden_d + (h + 1) * d_head)
            qh = qkv[:, q_sl].reshape(b_block, s_pad, d_head).astype(cdt)
            kh = qkv[:, k_sl].reshape(b_block, s_pad, d_head).astype(cdt)
            vh = qkv[:, v_sl].reshape(b_block, s_pad, d_head).astype(cdt)
            s = jnp.einsum('bqd,bkd->bqk', qh, kh,
                           preferred_element_type=jnp.float32) * scale + key_mask
            s = s - jnp.max(s, axis=-1, keepdims=True)
            e = jnp.exp(s)
            attn = e * pl.reciprocal(jnp.sum(e, axis=-1, keepdims=True),
                                     approx=True)
            ho = jnp.einsum('bqk,bkd->bqd', attn.astype(cdt), vh,
                            preferred_element_type=jnp.float32)
            head_outs.append(ho.reshape(bs, d_head))
        out = out + jnp.concatenate(head_outs, axis=1)

        # ---- MLP branch
        xn2 = layernorm(out, ln2g_ref[blk], ln2b_ref[blk]).astype(cdt)
        hmid = _gelu_exact(jnp.dot(xn2, w1_ref[blk],
                                   preferred_element_type=jnp.float32) + b1_ref[blk])
        out = out + jnp.dot(hmid.astype(cdt), w2_ref[blk],
                            preferred_element_type=jnp.float32) + b2_ref[blk]

    # ---- classification head on the class token + softmax.
    # Output is lane-dense (padded to 128); padded logits carry a -1e30 bias so
    # their probability is exactly 0. Exact divide keeps row sums == 1.
    cls_tok = out.reshape(b_block, s_pad, hidden_d)[:, 0, :]
    logits = jnp.dot(cls_tok.astype(cdt), wc_ref[...],
                     preferred_element_type=jnp.float32) + bc_ref[...]
    logits = logits - jnp.max(logits, axis=-1, keepdims=True)
    el = jnp.exp(logits)
    out_ref[...] = el / jnp.sum(el, axis=-1, keepdims=True)


# ----------------------------------------------------------------- parameters
def init_params(key, cfg):
    """PyTorch-module-equivalent parameters (same shapes / init distributions)."""
    C, H, W = cfg["chw"]
    n_patches = cfg["n_patches"]
    n_blocks = cfg["n_blocks"]
    n_heads = cfg["n_heads"]
    hidden_d = cfg["hidden_d"]
    out_d = cfg["out_d"]
    mlp_ratio = 4
    ps = H // n_patches
    input_d = C * ps * ps
    d_head = hidden_d // n_heads
    seq_len = n_patches ** 2 + 1

    keys = iter(jax.random.split(key, 256))

    def lin(in_d, od):
        # PyTorch nn.Linear default init: U(-1/sqrt(fan_in), 1/sqrt(fan_in))
        bound = 1.0 / float(np.sqrt(in_d))
        w = jax.random.uniform(next(keys), (od, in_d), jnp.float32, -bound, bound)
        b = jax.random.uniform(next(keys), (od,), jnp.float32, -bound, bound)
        return w, b

    wm, bm = lin(input_d, hidden_d)
    cls = jax.random.uniform(next(keys), (1, hidden_d), jnp.float32, 0.0, 1.0)
    pos = jnp.asarray(get_positional_embeddings(seq_len, hidden_d))

    def stack_heads():
        ws, bs = [], []
        for _ in range(n_blocks):
            wrow, brow = [], []
            for _ in range(n_heads):
                w, b = lin(d_head, d_head)
                wrow.append(w)
                brow.append(b)
            ws.append(jnp.stack(wrow))
            bs.append(jnp.stack(brow))
        return jnp.stack(ws), jnp.stack(bs)

    wq, bq = stack_heads()
    wk, bk = stack_heads()
    wv, bv = stack_heads()

    ln1_g = jnp.ones((n_blocks, hidden_d), jnp.float32)
    ln1_b = jnp.zeros((n_blocks, hidden_d), jnp.float32)
    ln2_g = jnp.ones((n_blocks, hidden_d), jnp.float32)
    ln2_b = jnp.zeros((n_blocks, hidden_d), jnp.float32)

    w1s, b1s, w2s, b2s = [], [], [], []
    for _ in range(n_blocks):
        w1, b1 = lin(hidden_d, mlp_ratio * hidden_d)
        w2, b2 = lin(mlp_ratio * hidden_d, hidden_d)
        w1s.append(w1); b1s.append(b1); w2s.append(w2); b2s.append(b2)

    wc, bc = lin(hidden_d, out_d)

    return dict(wm=wm, bm=bm, cls=cls, pos=pos,
                wq=wq, wk=wk, wv=wv, bq=bq, bk=bk, bv=bv,
                ln1_g=ln1_g, ln1_b=ln1_b, ln2_g=ln2_g, ln2_b=ln2_b,
                w1=jnp.stack(w1s), b1=jnp.stack(b1s),
                w2=jnp.stack(w2s), b2=jnp.stack(b2s),
                wc=wc, bc=bc)


# -------------------------------------------------------------------- wrapper
def make_vit_forward(cfg, params, matmul_dtype=jnp.float32):
    C, H, W = cfg["chw"]
    n_patches = cfg["n_patches"]
    n_blocks = cfg["n_blocks"]
    n_heads = cfg["n_heads"]
    hidden_d = cfg["hidden_d"]
    out_d = cfg["out_d"]
    ps = H // n_patches
    input_d = C * ps * ps
    n_tokens = n_patches ** 2
    seq_len = n_tokens + 1
    d_head = hidden_d // n_heads
    s_pad = ((seq_len + 7) // 8) * 8           # sequence padded to 8-sublane tile
    out_pad = ((out_d + 127) // 128) * 128     # lane-dense classifier output
    cdt = matmul_dtype

    # ---- kernel-layout parameter plumbing (pure transposes / padding) --------
    # Block-diagonal fused per-head weights: (xn @ W_bd)[:, h*dh:(h+1)*dh]
    # == xn_h @ W_h.T ; then Q/K/V are concatenated into one (H, 3H) matrix.
    def fuse_bd(w):  # (n_blocks, n_heads, dh, dh), PyTorch (out, in) layout
        return jnp.stack([_block_diag([w[b, h].T for h in range(n_heads)])
                          for b in range(n_blocks)])

    wqkv = jnp.concatenate(
        [fuse_bd(params["wq"]), fuse_bd(params["wk"]), fuse_bd(params["wv"])],
        axis=-1).astype(cdt)                                 # (n_blocks, H, 3H)
    bqkv = jnp.concatenate(
        [params["bq"].reshape(n_blocks, 1, hidden_d),
         params["bk"].reshape(n_blocks, 1, hidden_d),
         params["bv"].reshape(n_blocks, 1, hidden_d)], axis=-1)  # (n_blocks,1,3H)

    wm_t = params["wm"].T.astype(cdt)                      # (input_d, H)
    w1_t = jnp.swapaxes(params["w1"], -1, -2).astype(cdt)  # (n_blocks, H, 4H)
    w2_t = jnp.swapaxes(params["w2"], -1, -2).astype(cdt)  # (n_blocks, 4H, H)
    b1 = params["b1"].reshape(n_blocks, 1, -1)
    b2 = params["b2"].reshape(n_blocks, 1, -1)
    ln1_g = params["ln1_g"].reshape(n_blocks, 1, hidden_d)
    ln1_b = params["ln1_b"].reshape(n_blocks, 1, hidden_d)
    ln2_g = params["ln2_g"].reshape(n_blocks, 1, hidden_d)
    ln2_b = params["ln2_b"].reshape(n_blocks, 1, hidden_d)

    wc_pad = jnp.zeros((hidden_d, out_pad), jnp.float32)
    wc_pad = wc_pad.at[:, :out_d].set(params["wc"].T).astype(cdt)
    bc_pad = jnp.full((1, out_pad), NEG_INF, jnp.float32)
    bc_pad = bc_pad.at[0, :out_d].set(params["bc"])

    # Additive table folding class token + positional embedding + mapper bias:
    #   row 0           = cls + pos[0]
    #   rows 1..n_tok   = bm  + pos[i]
    #   padded rows     = 0
    embed_seq = jnp.concatenate([
        params["cls"] + params["pos"][0:1],
        params["bm"][None, :] + params["pos"][1:],
        jnp.zeros((s_pad - seq_len, hidden_d), jnp.float32)], axis=0)

    @jax.jit
    def forward(images):
        n = images.shape[0]
        b_block = min(8, n)                       # images per grid step
        n_pad = ((n + b_block - 1) // b_block) * b_block
        grid = (n_pad // b_block,)

        patches = patchify(images.astype(jnp.float32), n_patches)
        # Zero row 0 of every sequence (class-token slot), zero-pad seq & batch.
        patches_pad = jnp.pad(
            patches, ((0, n_pad - n), (1, s_pad - 1 - n_tokens), (0, 0)))

        embed_add = jnp.tile(embed_seq, (b_block, 1))   # (b_block*s_pad, H)

        kernel = functools.partial(
            _vit_kernel, n_blocks, n_heads, d_head, b_block, s_pad, seq_len,
            1e-5, cdt)

        weight_args = (embed_add, wm_t,
                       ln1_g, ln1_b, wqkv, bqkv,
                       ln2_g, ln2_b, w1_t, b1, w2_t, b2, wc_pad, bc_pad)

        def full_spec(arr):
            nd = arr.ndim
            return pl.BlockSpec(arr.shape, lambda i, _nd=nd: (0,) * _nd)

        out = pl.pallas_call(
            kernel,
            out_shape=jax.ShapeDtypeStruct((n_pad, out_pad), jnp.float32),
            grid=grid,
            in_specs=[pl.BlockSpec((b_block, s_pad, input_d),
                                   lambda i: (i, 0, 0))]
                     + [full_spec(a) for a in weight_args],
            out_specs=pl.BlockSpec((b_block, out_pad), lambda i: (i, 0)),
            compiler_params=pltpu.CompilerParams(
                dimension_semantics=("parallel",)),
        )(patches_pad, *weight_args)
        return out[:n, :out_d]

    return forward


# ----------------------------------------------------------------------- main
if __name__ == "__main__":
    cfg = dict(chw=(4, 16, 16), n_patches=4, n_blocks=2,
               hidden_d=32, n_heads=2, out_d=10)

    key = jax.random.PRNGKey(0)
    k_img, k_par = jax.random.split(key)
    params = init_params(k_par, cfg)
    images = jax.random.normal(k_img, (2,) + cfg["chw"], jnp.float32)

    # matmul_dtype=jnp.bfloat16 enables the v6e/v7x MXU fast path; default f32
    # preserves reference numerics.
    fwd = make_vit_forward(cfg, params, matmul_dtype=jnp.float32)
    probs = jax.block_until_ready(fwd(images))

    assert probs.shape == (2, cfg["out_d"]), probs.shape
    row_sums = np.asarray(jnp.sum(probs, axis=-1))
    assert np.allclose(row_sums, 1.0, atol=1e-5), row_sums
    assert np.all(np.isfinite(np.asarray(probs)))
    print("KERNEL_OK")
</pallas_src>

<mosaic_0001>
module attributes {stable_mosaic.version = 11 : i64} {
  func.func @_vit_kernel(%arg0: i32, %arg1: memref<2x24x64xf32, #tpu.memory_space<vmem>>, %arg2: memref<48x32xf32, #tpu.memory_space<vmem>>, %arg3: memref<64x32xf32, #tpu.memory_space<vmem>>, %arg4: memref<2x1x32xf32, #tpu.memory_space<vmem>>, %arg5: memref<2x1x32xf32, #tpu.memory_space<vmem>>, %arg6: memref<2x32x96xf32, #tpu.memory_space<vmem>>, %arg7: memref<2x1x96xf32, #tpu.memory_space<vmem>>, %arg8: memref<2x1x32xf32, #tpu.memory_space<vmem>>, %arg9: memref<2x1x32xf32, #tpu.memory_space<vmem>>, %arg10: memref<2x32x128xf32, #tpu.memory_space<vmem>>, %arg11: memref<2x1x128xf32, #tpu.memory_space<vmem>>, %arg12: memref<2x128x32xf32, #tpu.memory_space<vmem>>, %arg13: memref<2x1x32xf32, #tpu.memory_space<vmem>>, %arg14: memref<32x128xf32, #tpu.memory_space<vmem>>, %arg15: memref<1x128xf32, #tpu.memory_space<vmem>>, %arg16: memref<2x128xf32, #tpu.memory_space<vmem>>) attributes {dimension_semantics = [#tpu.dimension_semantics<parallel>], iteration_bounds = array<i64: 1>, scalar_prefetch = 0 : i64, scratch_operands = 0 : i64, tpu.core_type = #tpu.core_type<tc>, window_params = [{transform_indices = @transform_0, window_bounds = array<i64: 2, 24, 64>}, {pipeline_mode = #tpu.pipeline_mode<synchronous>, transform_indices = @transform_1, window_bounds = array<i64: 48, 32>}, {pipeline_mode = #tpu.pipeline_mode<synchronous>, transform_indices = @transform_2, window_bounds = array<i64: 64, 32>}, {pipeline_mode = #tpu.pipeline_mode<synchronous>, transform_indices = @transform_3, window_bounds = array<i64: 2, 1, 32>}, {pipeline_mode = #tpu.pipeline_mode<synchronous>, transform_indices = @transform_4, window_bounds = array<i64: 2, 1, 32>}, {pipeline_mode = #tpu.pipeline_mode<synchronous>, transform_indices = @transform_5, window_bounds = array<i64: 2, 32, 96>}, {pipeline_mode = #tpu.pipeline_mode<synchronous>, transform_indices = @transform_6, window_bounds = array<i64: 2, 1, 96>}, {pipeline_mode = #tpu.pipeline_mode<synchronous>, transform_indices = @transform_7, window_bounds = array<i64: 2, 1, 32>}, {pipeline_mode = #tpu.pipeline_mode<synchronous>, transform_indices = @transform_8, window_bounds = array<i64: 2, 1, 32>}, {pipeline_mode = #tpu.pipeline_mode<synchronous>, transform_indices = @transform_9, window_bounds = array<i64: 2, 32, 128>}, {pipeline_mode = #tpu.pipeline_mode<synchronous>, transform_indices = @transform_10, window_bounds = array<i64: 2, 1, 128>}, {pipeline_mode = #tpu.pipeline_mode<synchronous>, transform_indices = @transform_11, window_bounds = array<i64: 2, 128, 32>}, {pipeline_mode = #tpu.pipeline_mode<synchronous>, transform_indices = @transform_12, window_bounds = array<i64: 2, 1, 32>}, {pipeline_mode = #tpu.pipeline_mode<synchronous>, transform_indices = @transform_13, window_bounds = array<i64: 32, 128>}, {pipeline_mode = #tpu.pipeline_mode<synchronous>, transform_indices = @transform_14, window_bounds = array<i64: 1, 128>}, {transform_indices = @transform_15, window_bounds = array<i64: 2, 128>}]} {
    %c0 = arith.constant 0 : index
    %c0_0 = arith.constant 0 : index
    %c0_1 = arith.constant 0 : index
    %0 = vector.load %arg1[%c0, %c0_0, %c0_1] : memref<2x24x64xf32, #tpu.memory_space<vmem>>, vector<2x24x64xf32>
    %1 = vector.shape_cast %0 : vector<2x24x64xf32> to vector<48x64xf32>
    %c0_2 = arith.constant 0 : index
    %c0_3 = arith.constant 0 : index
    %2 = vector.load %arg3[%c0_2, %c0_3] : memref<64x32xf32, #tpu.memory_space<vmem>>, vector<64x32xf32>
    %cst = arith.constant dense<0.000000e+00> : vector<48x32xf32>
    %3 = tpu.matmul %1, %2, %cst {dimension_numbers = #tpu.dot_dimension_numbers<[1], [0], [0], [1], [0, 0, 1, 1], [], []>} : vector<48x64xf32>, vector<64x32xf32>, vector<48x32xf32> -> vector<48x32xf32>
    %c0_4 = arith.constant 0 : index
    %c0_5 = arith.constant 0 : index
    %4 = vector.load %arg2[%c0_4, %c0_5] : memref<48x32xf32, #tpu.memory_space<vmem>>, vector<48x32xf32>
    %5 = arith.addf %3, %4 : vector<48x32xf32>
    %6 = tpu.iota {dimensions = array<i32: 2>} : vector<1x1x24xi32>
    %c17_i32 = arith.constant 17 : i32
    %7 = vector.broadcast %c17_i32 : i32 to vector<1x1x24xi32>
    %8 = arith.cmpi slt, %6, %7 : vector<1x1x24xi32>
    %cst_6 = arith.constant 0.000000e+00 : f32
    %cst_7 = arith.constant -1.000000e+30 : f32
    %9 = vector.broadcast %cst_6 : f32 to vector<1x1x24xf32>
    %10 = vector.broadcast %cst_7 : f32 to vector<1x1x24xf32>
    %11 = arith.select %8, %9, %10 : vector<1x1x24xi1>, vector<1x1x24xf32>
    %c0_8 = arith.constant 0 : index
    %c0_9 = arith.constant 0 : index
    %c0_10 = arith.constant 0 : index
    %12 = vector.load %arg4[%c0_8, %c0_9, %c0_10] : memref<2x1x32xf32, #tpu.memory_space<vmem>>, vector<1x1x32xf32>
    %13 = vector.shape_cast %12 : vector<1x1x32xf32> to vector<1x32xf32>
    %c0_11 = arith.constant 0 : index
    %c0_12 = arith.constant 0 : index
    %c0_13 = arith.constant 0 : index
    %14 = vector.load %arg5[%c0_11, %c0_12, %c0_13] : memref<2x1x32xf32, #tpu.memory_space<vmem>>, vector<1x1x32xf32>
    %15 = vector.shape_cast %14 : vector<1x1x32xf32> to vector<1x32xf32>
    %cst_14 = arith.constant dense<0.000000e+00> : vector<48xf32>
    %16 = vector.multi_reduction <add>, %5, %cst_14 [1] : vector<48x32xf32> to vector<48xf32>
    %17 = vector.shape_cast %16 : vector<48xf32> to vector<48x1xf32>
    %cst_15 = arith.constant 3.200000e+01 : f32
    %18 = vector.broadcast %cst_15 : f32 to vector<48x1xf32>
    %19 = arith.divf %17, %18 : vector<48x1xf32>
    %20 = vector.broadcast %19 : vector<48x1xf32> to vector<48x32xf32>
    %21 = arith.subf %5, %20 : vector<48x32xf32>
    %22 = arith.mulf %21, %21 : vector<48x32xf32>
    %cst_16 = arith.constant dense<0.000000e+00> : vector<48xf32>
    %23 = vector.multi_reduction <add>, %22, %cst_16 [1] : vector<48x32xf32> to vector<48xf32>
    %24 = vector.shape_cast %23 : vector<48xf32> to vector<48x1xf32>
    %cst_17 = arith.constant 3.200000e+01 : f32
    %25 = vector.broadcast %cst_17 : f32 to vector<48x1xf32>
    %26 = arith.divf %24, %25 : vector<48x1xf32>
    %27 = vector.broadcast %19 : vector<48x1xf32> to vector<48x32xf32>
    %28 = arith.subf %5, %27 : vector<48x32xf32>
    %cst_18 = arith.constant 9.99999974E-6 : f32
    %29 = vector.broadcast %cst_18 : f32 to vector<48x1xf32>
    %30 = arith.addf %26, %29 : vector<48x1xf32>
    %31 = math.sqrt %30 : vector<48x1xf32>
    %32 = vector.broadcast %31 : vector<48x1xf32> to vector<48x32xf32>
    %33 = arith.divf %28, %32 : vector<48x32xf32>
    %34 = vector.broadcast %13 : vector<1x32xf32> to vector<48x32xf32>
    %35 = arith.mulf %33, %34 : vector<48x32xf32>
    %36 = vector.broadcast %15 : vector<1x32xf32> to vector<48x32xf32>
    %37 = arith.addf %35, %36 : vector<48x32xf32>
    %c0_19 = arith.constant 0 : index
    %c0_20 = arith.constant 0 : index
    %c0_21 = arith.constant 0 : index
    %38 = vector.load %arg6[%c0_19, %c0_20, %c0_21] : memref<2x32x96xf32, #tpu.memory_space<vmem>>, vector<1x32x96xf32>
    %39 = vector.shape_cast %38 : vector<1x32x96xf32> to vector<32x96xf32>
    %cst_22 = arith.constant dense<0.000000e+00> : vector<48x96xf32>
    %40 = tpu.matmul %37, %39, %cst_22 {dimension_numbers = #tpu.dot_dimension_numbers<[1], [0], [0], [1], [0, 0, 1, 1], [], []>} : vector<48x32xf32>, vector<32x96xf32>, vector<48x96xf32> -> vector<48x96xf32>
    %c0_23 = arith.constant 0 : index
    %c0_24 = arith.constant 0 : index
    %c0_25 = arith.constant 0 : index
    %41 = vector.load %arg7[%c0_23, %c0_24, %c0_25] : memref<2x1x96xf32, #tpu.memory_space<vmem>>, vector<1x1x96xf32>
    %42 = vector.shape_cast %41 : vector<1x1x96xf32> to vector<1x96xf32>
    %43 = vector.broadcast %42 : vector<1x96xf32> to vector<48x96xf32>
    %44 = arith.addf %40, %43 : vector<48x96xf32>
    %45 = vector.extract_strided_slice %44 {offsets = [0, 0], sizes = [48, 16], strides = [1, 1]} : vector<48x96xf32> to vector<48x16xf32>
    %46 = vector.shape_cast %45 : vector<48x16xf32> to vector<2x24x16xf32>
    %47 = vector.extract_strided_slice %44 {offsets = [0, 32], sizes = [48, 16], strides = [1, 1]} : vector<48x96xf32> to vector<48x16xf32>
    %48 = vector.shape_cast %47 : vector<48x16xf32> to vector<2x24x16xf32>
    %49 = vector.extract_strided_slice %44 {offsets = [0, 64], sizes = [48, 16], strides = [1, 1]} : vector<48x96xf32> to vector<48x16xf32>
    %50 = vector.shape_cast %49 : vector<48x16xf32> to vector<2x24x16xf32>
    "tpu.trace_start"() <{level = 10 : i32, message = "bqd,bkd->bqk"}> : () -> ()
    %cst_26 = arith.constant dense<0.000000e+00> : vector<2x24x24xf32>
    %51 = tpu.matmul %46, %48, %cst_26 {dimension_numbers = #tpu.dot_dimension_numbers<[2], [2], [1], [1], [0, 0, 0, 1, 1, 1], [0], [0]>} : vector<2x24x16xf32>, vector<2x24x16xf32>, vector<2x24x24xf32> -> vector<2x24x24xf32>
    "tpu.trace_stop"() : () -> ()
    %cst_27 = arith.constant 2.500000e-01 : f32
    %52 = vector.broadcast %cst_27 : f32 to vector<2x24x24xf32>
    %53 = arith.mulf %51, %52 : vector<2x24x24xf32>
    %54 = vector.broadcast %11 : vector<1x1x24xf32> to vector<2x24x24xf32>
    %55 = arith.addf %53, %54 : vector<2x24x24xf32>
    %cst_28 = arith.constant dense<0xFF800000> : vector<2x24xf32>
    %56 = vector.multi_reduction <maximumf>, %55, %cst_28 [2] : vector<2x24x24xf32> to vector<2x24xf32>
    %57 = vector.shape_cast %56 : vector<2x24xf32> to vector<2x24x1xf32>
    %58 = vector.broadcast %57 : vector<2x24x1xf32> to vector<2x24x24xf32>
    %59 = arith.subf %55, %58 : vector<2x24x24xf32>
    %60 = math.exp %59 : vector<2x24x24xf32>
    %cst_29 = arith.constant dense<0.000000e+00> : vector<2x24xf32>
    %61 = vector.multi_reduction <add>, %60, %cst_29 [2] : vector<2x24x24xf32> to vector<2x24xf32>
    %62 = vector.shape_cast %61 : vector<2x24xf32> to vector<2x24x1xf32>
    %63 = tpu.reciprocal %62 {approx = true} : vector<2x24x1xf32> -> vector<2x24x1xf32>
    %64 = vector.broadcast %63 : vector<2x24x1xf32> to vector<2x24x24xf32>
    %65 = arith.mulf %60, %64 : vector<2x24x24xf32>
    "tpu.trace_start"() <{level = 10 : i32, message = "bqk,bkd->bqd"}> : () -> ()
    %cst_30 = arith.constant dense<0.000000e+00> : vector<2x24x16xf32>
    %66 = tpu.matmul %65, %50, %cst_30 {dimension_numbers = #tpu.dot_dimension_numbers<[2], [1], [1], [2], [0, 0, 0, 1, 1, 2], [0], [0]>} : vector<2x24x24xf32>, vector<2x24x16xf32>, vector<2x24x16xf32> -> vector<2x24x16xf32>
    "tpu.trace_stop"() : () -> ()
    %67 = vector.shape_cast %66 : vector<2x24x16xf32> to vector<48x16xf32>
    %68 = vector.extract_strided_slice %44 {offsets = [0, 16], sizes = [48, 16], strides = [1, 1]} : vector<48x96xf32> to vector<48x16xf32>
    %69 = vector.shape_cast %68 : vector<48x16xf32> to vector<2x24x16xf32>
    %70 = vector.extract_strided_slice %44 {offsets = [0, 48], sizes = [48, 16], strides = [1, 1]} : vector<48x96xf32> to vector<48x16xf32>
    %71 = vector.shape_cast %70 : vector<48x16xf32> to vector<2x24x16xf32>
    %72 = vector.extract_strided_slice %44 {offsets = [0, 80], sizes = [48, 16], strides = [1, 1]} : vector<48x96xf32> to vector<48x16xf32>
    %73 = vector.shape_cast %72 : vector<48x16xf32> to vector<2x24x16xf32>
    "tpu.trace_start"() <{level = 10 : i32, message = "bqd,bkd->bqk"}> : () -> ()
    %cst_31 = arith.constant dense<0.000000e+00> : vector<2x24x24xf32>
    %74 = tpu.matmul %69, %71, %cst_31 {dimension_numbers = #tpu.dot_dimension_numbers<[2], [2], [1], [1], [0, 0, 0, 1, 1, 1], [0], [0]>} : vector<2x24x16xf32>, vector<2x24x16xf32>, vector<2x24x24xf32> -> vector<2x24x24xf32>
    "tpu.trace_stop"() : () -> ()
    %cst_32 = arith.constant 2.500000e-01 : f32
    %75 = vector.broadcast %cst_32 : f32 to vector<2x24x24xf32>
    %76 = arith.mulf %74, %75 : vector<2x24x24xf32>
    %77 = vector.broadcast %11 : vector<1x1x24xf32> to vector<2x24x24xf32>
    %78 = arith.addf %76, %77 : vector<2x24x24xf32>
    %cst_33 = arith.constant dense<0xFF800000> : vector<2x24xf32>
    %79 = vector.multi_reduction <maximumf>, %78, %cst_33 [2] : vector<2x24x24xf32> to vector<2x24xf32>
    %80 = vector.shape_cast %79 : vector<2x24xf32> to vector<2x24x1xf32>
    %81 = vector.broadcast %80 : vector<2x24x1xf32> to vector<2x24x24xf32>
    %82 = arith.subf %78, %81 : vector<2x24x24xf32>
    %83 = math.exp %82 : vector<2x24x24xf32>
    %cst_34 = arith.constant dense<0.000000e+00> : vector<2x24xf32>
    %84 = vector.multi_reduction <add>, %83, %cst_34 [2] : vector<2x24x24xf32> to vector<2x24xf32>
    %85 = vector.shape_cast %84 : vector<2x24xf32> to vector<2x24x1xf32>
    %86 = tpu.reciprocal %85 {approx = true} : vector<2x24x1xf32> -> vector<2x24x1xf32>
    %87 = vector.broadcast %86 : vector<2x24x1xf32> to vector<2x24x24xf32>
    %88 = arith.mulf %83, %87 : vector<2x24x24xf32>
    "tpu.trace_start"() <{level = 10 : i32, message = "bqk,bkd->bqd"}> : () -> ()
    %cst_35 = arith.constant dense<0.000000e+00> : vector<2x24x16xf32>
    %89 = tpu.matmul %88, %73, %cst_35 {dimension_numbers = #tpu.dot_dimension_numbers<[2], [1], [1], [2], [0, 0, 0, 1, 1, 2], [0], [0]>} : vector<2x24x24xf32>, vector<2x24x16xf32>, vector<2x24x16xf32> -> vector<2x24x16xf32>
    "tpu.trace_stop"() : () -> ()
    %90 = vector.shape_cast %89 : vector<2x24x16xf32> to vector<48x16xf32>
    %91 = tpu.concatenate %67, %90 in 1 : vector<48x16xf32>, vector<48x16xf32> -> vector<48x32xf32>
    %92 = arith.addf %5, %91 : vector<48x32xf32>
    %c0_36 = arith.constant 0 : index
    %c0_37 = arith.constant 0 : index
    %c0_38 = arith.constant 0 : index
    %93 = vector.load %arg8[%c0_36, %c0_37, %c0_38] : memref<2x1x32xf32, #tpu.memory_space<vmem>>, vector<1x1x32xf32>
    %94 = vector.shape_cast %93 : vector<1x1x32xf32> to vector<1x32xf32>
    %c0_39 = arith.constant 0 : index
    %c0_40 = arith.constant 0 : index
    %c0_41 = arith.constant 0 : index
    %95 = vector.load %arg9[%c0_39, %c0_40, %c0_41] : memref<2x1x32xf32, #tpu.memory_space<vmem>>, vector<1x1x32xf32>
    %96 = vector.shape_cast %95 : vector<1x1x32xf32> to vector<1x32xf32>
    %cst_42 = arith.constant dense<0.000000e+00> : vector<48xf32>
    %97 = vector.multi_reduction <add>, %92, %cst_42 [1] : vector<48x32xf32> to vector<48xf32>
    %98 = vector.shape_cast %97 : vector<48xf32> to vector<48x1xf32>
    %cst_43 = arith.constant 3.200000e+01 : f32
    %99 = vector.broadcast %cst_43 : f32 to vector<48x1xf32>
    %100 = arith.divf %98, %99 : vector<48x1xf32>
    %101 = vector.broadcast %100 : vector<48x1xf32> to vector<48x32xf32>
    %102 = arith.subf %92, %101 : vector<48x32xf32>
    %103 = arith.mulf %102, %102 : vector<48x32xf32>
    %cst_44 = arith.constant dense<0.000000e+00> : vector<48xf32>
    %104 = vector.multi_reduction <add>, %103, %cst_44 [1] : vector<48x32xf32> to vector<48xf32>
    %105 = vector.shape_cast %104 : vector<48xf32> to vector<48x1xf32>
    %cst_45 = arith.constant 3.200000e+01 : f32
    %106 = vector.broadcast %cst_45 : f32 to vector<48x1xf32>
    %107 = arith.divf %105, %106 : vector<48x1xf32>
    %108 = vector.broadcast %100 : vector<48x1xf32> to vector<48x32xf32>
    %109 = arith.subf %92, %108 : vector<48x32xf32>
    %cst_46 = arith.constant 9.99999974E-6 : f32
    %110 = vector.broadcast %cst_46 : f32 to vector<48x1xf32>
    %111 = arith.addf %107, %110 : vector<48x1xf32>
    %112 = math.sqrt %111 : vector<48x1xf32>
    %113 = vector.broadcast %112 : vector<48x1xf32> to vector<48x32xf32>
    %114 = arith.divf %109, %113 : vector<48x32xf32>
    %115 = vector.broadcast %94 : vector<1x32xf32> to vector<48x32xf32>
    %116 = arith.mulf %114, %115 : vector<48x32xf32>
    %117 = vector.broadcast %96 : vector<1x32xf32> to vector<48x32xf32>
    %118 = arith.addf %116, %117 : vector<48x32xf32>
    %c0_47 = arith.constant 0 : index
    %c0_48 = arith.constant 0 : index
    %c0_49 = arith.constant 0 : index
    %119 = vector.load %arg10[%c0_47, %c0_48, %c0_49] : memref<2x32x128xf32, #tpu.memory_space<vmem>>, vector<1x32x128xf32>
    %120 = vector.shape_cast %119 : vector<1x32x128xf32> to vector<32x128xf32>
    %cst_50 = arith.constant dense<0.000000e+00> : vector<48x128xf32>
    %121 = tpu.matmul %118, %120, %cst_50 {dimension_numbers = #tpu.dot_dimension_numbers<[1], [0], [0], [1], [0, 0, 1, 1], [], []>} : vector<48x32xf32>, vector<32x128xf32>, vector<48x128xf32> -> vector<48x128xf32>
    %c0_51 = arith.constant 0 : index
    %c0_52 = arith.constant 0 : index
    %c0_53 = arith.constant 0 : index
    %122 = vector.load %arg11[%c0_51, %c0_52, %c0_53] : memref<2x1x128xf32, #tpu.memory_space<vmem>>, vector<1x1x128xf32>
    %123 = vector.shape_cast %122 : vector<1x1x128xf32> to vector<1x128xf32>
    %124 = vector.broadcast %123 : vector<1x128xf32> to vector<48x128xf32>
    %125 = arith.addf %121, %124 : vector<48x128xf32>
    %cst_54 = arith.constant 5.000000e-01 : f32
    %126 = vector.broadcast %cst_54 : f32 to vector<48x128xf32>
    %127 = arith.mulf %126, %125 : vector<48x128xf32>
    %cst_55 = arith.constant 0.707106769 : f32
    %128 = vector.broadcast %cst_55 : f32 to vector<48x128xf32>
    %129 = arith.mulf %125, %128 : vector<48x128xf32>
    %130 = math.erf %129 : vector<48x128xf32>
    %cst_56 = arith.constant 1.000000e+00 : f32
    %131 = vector.broadcast %cst_56 : f32 to vector<48x128xf32>
    %132 = arith.addf %131, %130 : vector<48x128xf32>
    %133 = arith.mulf %127, %132 : vector<48x128xf32>
    %c0_57 = arith.constant 0 : index
    %c0_58 = arith.constant 0 : index
    %c0_59 = arith.constant 0 : index
    %134 = vector.load %arg12[%c0_57, %c0_58, %c0_59] : memref<2x128x32xf32, #tpu.memory_space<vmem>>, vector<1x128x32xf32>
    %135 = vector.shape_cast %134 : vector<1x128x32xf32> to vector<128x32xf32>
    %cst_60 = arith.constant dense<0.000000e+00> : vector<48x32xf32>
    %136 = tpu.matmul %133, %135, %cst_60 {dimension_numbers = #tpu.dot_dimension_numbers<[1], [0], [0], [1], [0, 0, 1, 1], [], []>} : vector<48x128xf32>, vector<128x32xf32>, vector<48x32xf32> -> vector<48x32xf32>
    %137 = arith.addf %92, %136 : vector<48x32xf32>
    %c0_61 = arith.constant 0 : index
    %c0_62 = arith.constant 0 : index
    %c0_63 = arith.constant 0 : index
    %138 = vector.load %arg13[%c0_61, %c0_62, %c0_63] : memref<2x1x32xf32, #tpu.memory_space<vmem>>, vector<1x1x32xf32>
    %139 = vector.shape_cast %138 : vector<1x1x32xf32> to vector<1x32xf32>
    %140 = vector.broadcast %139 : vector<1x32xf32> to vector<48x32xf32>
    %141 = arith.addf %137, %140 : vector<48x32xf32>
    %c1 = arith.constant 1 : index
    %c0_64 = arith.constant 0 : index
    %c0_65 = arith.constant 0 : index
    %142 = vector.load %arg4[%c1, %c0_64, %c0_65] : memref<2x1x32xf32, #tpu.memory_space<vmem>>, vector<1x1x32xf32>
    %143 = vector.shape_cast %142 : vector<1x1x32xf32> to vector<1x32xf32>
    %c1_66 = arith.constant 1 : index
    %c0_67 = arith.constant 0 : index
    %c0_68 = arith.constant 0 : index
    %144 = vector.load %arg5[%c1_66, %c0_67, %c0_68] : memref<2x1x32xf32, #tpu.memory_space<vmem>>, vector<1x1x32xf32>
    %145 = vector.shape_cast %144 : vector<1x1x32xf32> to vector<1x32xf32>
    %cst_69 = arith.constant dense<0.000000e+00> : vector<48xf32>
    %146 = vector.multi_reduction <add>, %141, %cst_69 [1] : vector<48x32xf32> to vector<48xf32>
    %147 = vector.shape_cast %146 : vector<48xf32> to vector<48x1xf32>
    %cst_70 = arith.constant 3.200000e+01 : f32
    %148 = vector.broadcast %cst_70 : f32 to vector<48x1xf32>
    %149 = arith.divf %147, %148 : vector<48x1xf32>
    %150 = vector.broadcast %149 : vector<48x1xf32> to vector<48x32xf32>
    %151 = arith.subf %141, %150 : vector<48x32xf32>
    %152 = arith.mulf %151, %151 : vector<48x32xf32>
    %cst_71 = arith.constant dense<0.000000e+00> : vector<48xf32>
    %153 = vector.multi_reduction <add>, %152, %cst_71 [1] : vector<48x32xf32> to vector<48xf32>
    %154 = vector.shape_cast %153 : vector<48xf32> to vector<48x1xf32>
    %cst_72 = arith.constant 3.200000e+01 : f32
    %155 = vector.broadcast %cst_72 : f32 to vector<48x1xf32>
    %156 = arith.divf %154, %155 : vector<48x1xf32>
    %157 = vector.broadcast %149 : vector<48x1xf32> to vector<48x32xf32>
    %158 = arith.subf %141, %157 : vector<48x32xf32>
    %cst_73 = arith.constant 9.99999974E-6 : f32
    %159 = vector.broadcast %cst_73 : f32 to vector<48x1xf32>
    %160 = arith.addf %156, %159 : vector<48x1xf32>
    %161 = math.sqrt %160 : vector<48x1xf32>
    %162 = vector.broadcast %161 : vector<48x1xf32> to vector<48x32xf32>
    %163 = arith.divf %158, %162 : vector<48x32xf32>
    %164 = vector.broadcast %143 : vector<1x32xf32> to vector<48x32xf32>
    %165 = arith.mulf %163, %164 : vector<48x32xf32>
    %166 = vector.broadcast %145 : vector<1x32xf32> to vector<48x32xf32>
    %167 = arith.addf %165, %166 : vector<48x32xf32>
    %c1_74 = arith.constant 1 : index
    %c0_75 = arith.constant 0 : index
    %c0_76 = arith.constant 0 : index
    %168 = vector.load %arg6[%c1_74, %c0_75, %c0_76] : memref<2x32x96xf32, #tpu.memory_space<vmem>>, vector<1x32x96xf32>
    %169 = vector.shape_cast %168 : vector<1x32x96xf32> to vector<32x96xf32>
    %cst_77 = arith.constant dense<0.000000e+00> : vector<48x96xf32>
    %170 = tpu.matmul %167, %169, %cst_77 {dimension_numbers = #tpu.dot_dimension_numbers<[1], [0], [0], [1], [0, 0, 1, 1], [], []>} : vector<48x32xf32>, vector<32x96xf32>, vector<48x96xf32> -> vector<48x96xf32>
    %c1_78 = arith.constant 1 : index
    %c0_79 = arith.constant 0 : index
    %c0_80 = arith.constant 0 : index
    %171 = vector.load %arg7[%c1_78, %c0_79, %c0_80] : memref<2x1x96xf32, #tpu.memory_space<vmem>>, vector<1x1x96xf32>
    %172 = vector.shape_cast %171 : vector<1x1x96xf32> to vector<1x96xf32>
    %173 = vector.broadcast %172 : vector<1x96xf32> to vector<48x96xf32>
    %174 = arith.addf %170, %173 : vector<48x96xf32>
    %175 = vector.extract_strided_slice %174 {offsets = [0, 0], sizes = [48, 16], strides = [1, 1]} : vector<48x96xf32> to vector<48x16xf32>
    %176 = vector.shape_cast %175 : vector<48x16xf32> to vector<2x24x16xf32>
    %177 = vector.extract_strided_slice %174 {offsets = [0, 32], sizes = [48, 16], strides = [1, 1]} : vector<48x96xf32> to vector<48x16xf32>
    %178 = vector.shape_cast %177 : vector<48x16xf32> to vector<2x24x16xf32>
    %179 = vector.extract_strided_slice %174 {offsets = [0, 64], sizes = [48, 16], strides = [1, 1]} : vector<48x96xf32> to vector<48x16xf32>
    %180 = vector.shape_cast %179 : vector<48x16xf32> to vector<2x24x16xf32>
    "tpu.trace_start"() <{level = 10 : i32, message = "bqd,bkd->bqk"}> : () -> ()
    %cst_81 = arith.constant dense<0.000000e+00> : vector<2x24x24xf32>
    %181 = tpu.matmul %176, %178, %cst_81 {dimension_numbers = #tpu.dot_dimension_numbers<[2], [2], [1], [1], [0, 0, 0, 1, 1, 1], [0], [0]>} : vector<2x24x16xf32>, vector<2x24x16xf32>, vector<2x24x24xf32> -> vector<2x24x24xf32>
    "tpu.trace_stop"() : () -> ()
    %cst_82 = arith.constant 2.500000e-01 : f32
    %182 = vector.broadcast %cst_82 : f32 to vector<2x24x24xf32>
    %183 = arith.mulf %181, %182 : vector<2x24x24xf32>
    %184 = vector.broadcast %11 : vector<1x1x24xf32> to vector<2x24x24xf32>
    %185 = arith.addf %183, %184 : vector<2x24x24xf32>
    %cst_83 = arith.constant dense<0xFF800000> : vector<2x24xf32>
    %186 = vector.multi_reduction <maximumf>, %185, %cst_83 [2] : vector<2x24x24xf32> to vector<2x24xf32>
    %187 = vector.shape_cast %186 : vector<2x24xf32> to vector<2x24x1xf32>
    %188 = vector.broadcast %187 : vector<2x24x1xf32> to vector<2x24x24xf32>
    %189 = arith.subf %185, %188 : vector<2x24x24xf32>
    %190 = math.exp %189 : vector<2x24x24xf32>
    %cst_84 = arith.constant dense<0.000000e+00> : vector<2x24xf32>
    %191 = vector.multi_reduction <add>, %190, %cst_84 [2] : vector<2x24x24xf32> to vector<2x24xf32>
    %192 = vector.shape_cast %191 : vector<2x24xf32> to vector<2x24x1xf32>
    %193 = tpu.reciprocal %192 {approx = true} : vector<2x24x1xf32> -> vector<2x24x1xf32>
    %194 = vector.broadcast %193 : vector<2x24x1xf32> to vector<2x24x24xf32>
    %195 = arith.mulf %190, %194 : vector<2x24x24xf32>
    "tpu.trace_start"() <{level = 10 : i32, message = "bqk,bkd->bqd"}> : () -> ()
    %cst_85 = arith.constant dense<0.000000e+00> : vector<2x24x16xf32>
    %196 = tpu.matmul %195, %180, %cst_85 {dimension_numbers = #tpu.dot_dimension_numbers<[2], [1], [1], [2], [0, 0, 0, 1, 1, 2], [0], [0]>} : vector<2x24x24xf32>, vector<2x24x16xf32>, vector<2x24x16xf32> -> vector<2x24x16xf32>
    "tpu.trace_stop"() : () -> ()
    %197 = vector.shape_cast %196 : vector<2x24x16xf32> to vector<48x16xf32>
    %198 = vector.extract_strided_slice %174 {offsets = [0, 16], sizes = [48, 16], strides = [1, 1]} : vector<48x96xf32> to vector<48x16xf32>
    %199 = vector.shape_cast %198 : vector<48x16xf32> to vector<2x24x16xf32>
    %200 = vector.extract_strided_slice %174 {offsets = [0, 48], sizes = [48, 16], strides = [1, 1]} : vector<48x96xf32> to vector<48x16xf32>
    %201 = vector.shape_cast %200 : vector<48x16xf32> to vector<2x24x16xf32>
    %202 = vector.extract_strided_slice %174 {offsets = [0, 80], sizes = [48, 16], strides = [1, 1]} : vector<48x96xf32> to vector<48x16xf32>
    %203 = vector.shape_cast %202 : vector<48x16xf32> to vector<2x24x16xf32>
    "tpu.trace_start"() <{level = 10 : i32, message = "bqd,bkd->bqk"}> : () -> ()
    %cst_86 = arith.constant dense<0.000000e+00> : vector<2x24x24xf32>
    %204 = tpu.matmul %199, %201, %cst_86 {dimension_numbers = #tpu.dot_dimension_numbers<[2], [2], [1], [1], [0, 0, 0, 1, 1, 1], [0], [0]>} : vector<2x24x16xf32>, vector<2x24x16xf32>, vector<2x24x24xf32> -> vector<2x24x24xf32>
    "tpu.trace_stop"() : () -> ()
    %cst_87 = arith.constant 2.500000e-01 : f32
    %205 = vector.broadcast %cst_87 : f32 to vector<2x24x24xf32>
    %206 = arith.mulf %204, %205 : vector<2x24x24xf32>
    %207 = vector.broadcast %11 : vector<1x1x24xf32> to vector<2x24x24xf32>
    %208 = arith.addf %206, %207 : vector<2x24x24xf32>
    %cst_88 = arith.constant dense<0xFF800000> : vector<2x24xf32>
    %209 = vector.multi_reduction <maximumf>, %208, %cst_88 [2] : vector<2x24x24xf32> to vector<2x24xf32>
    %210 = vector.shape_cast %209 : vector<2x24xf32> to vector<2x24x1xf32>
    %211 = vector.broadcast %210 : vector<2x24x1xf32> to vector<2x24x24xf32>
    %212 = arith.subf %208, %211 : vector<2x24x24xf32>
    %213 = math.exp %212 : vector<2x24x24xf32>
    %cst_89 = arith.constant dense<0.000000e+00> : vector<2x24xf32>
    %214 = vector.multi_reduction <add>, %213, %cst_89 [2] : vector<2x24x24xf32> to vector<2x24xf32>
    %215 = vector.shape_cast %214 : vector<2x24xf32> to vector<2x24x1xf32>
    %216 = tpu.reciprocal %215 {approx = true} : vector<2x24x1xf32> -> vector<2x24x1xf32>
    %217 = vector.broadcast %216 : vector<2x24x1xf32> to vector<2x24x24xf32>
    %218 = arith.mulf %213, %217 : vector<2x24x24xf32>
    "tpu.trace_start"() <{level = 10 : i32, message = "bqk,bkd->bqd"}> : () -> ()
    %cst_90 = arith.constant dense<0.000000e+00> : vector<2x24x16xf32>
    %219 = tpu.matmul %218, %203, %cst_90 {dimension_numbers = #tpu.dot_dimension_numbers<[2], [1], [1], [2], [0, 0, 0, 1, 1, 2], [0], [0]>} : vector<2x24x24xf32>, vector<2x24x16xf32>, vector<2x24x16xf32> -> vector<2x24x16xf32>
    "tpu.trace_stop"() : () -> ()
    %220 = vector.shape_cast %219 : vector<2x24x16xf32> to vector<48x16xf32>
    %221 = tpu.concatenate %197, %220 in 1 : vector<48x16xf32>, vector<48x16xf32> -> vector<48x32xf32>
    %222 = arith.addf %141, %221 : vector<48x32xf32>
    %c1_91 = arith.constant 1 : index
    %c0_92 = arith.constant 0 : index
    %c0_93 = arith.constant 0 : index
    %223 = vector.load %arg8[%c1_91, %c0_92, %c0_93] : memref<2x1x32xf32, #tpu.memory_space<vmem>>, vector<1x1x32xf32>
    %224 = vector.shape_cast %223 : vector<1x1x32xf32> to vector<1x32xf32>
    %c1_94 = arith.constant 1 : index
    %c0_95 = arith.constant 0 : index
    %c0_96 = arith.constant 0 : index
    %225 = vector.load %arg9[%c1_94, %c0_95, %c0_96] : memref<2x1x32xf32, #tpu.memory_space<vmem>>, vector<1x1x32xf32>
    %226 = vector.shape_cast %225 : vector<1x1x32xf32> to vector<1x32xf32>
    %cst_97 = arith.constant dense<0.000000e+00> : vector<48xf32>
    %227 = vector.multi_reduction <add>, %222, %cst_97 [1] : vector<48x32xf32> to vector<48xf32>
    %228 = vector.shape_cast %227 : vector<48xf32> to vector<48x1xf32>
    %cst_98 = arith.constant 3.200000e+01 : f32
    %229 = vector.broadcast %cst_98 : f32 to vector<48x1xf32>
    %230 = arith.divf %228, %229 : vector<48x1xf32>
    %231 = vector.broadcast %230 : vector<48x1xf32> to vector<48x32xf32>
    %232 = arith.subf %222, %231 : vector<48x32xf32>
    %233 = arith.mulf %232, %232 : vector<48x32xf32>
    %cst_99 = arith.constant dense<0.000000e+00> : vector<48xf32>
    %234 = vector.multi_reduction <add>, %233, %cst_99 [1] : vector<48x32xf32> to vector<48xf32>
    %235 = vector.shape_cast %234 : vector<48xf32> to vector<48x1xf32>
    %cst_100 = arith.constant 3.200000e+01 : f32
    %236 = vector.broadcast %cst_100 : f32 to vector<48x1xf32>
    %237 = arith.divf %235, %236 : vector<48x1xf32>
    %238 = vector.broadcast %230 : vector<48x1xf32> to vector<48x32xf32>
    %239 = arith.subf %222, %238 : vector<48x32xf32>
    %cst_101 = arith.constant 9.99999974E-6 : f32
    %240 = vector.broadcast %cst_101 : f32 to vector<48x1xf32>
    %241 = arith.addf %237, %240 : vector<48x1xf32>
    %242 = math.sqrt %241 : vector<48x1xf32>
    %243 = vector.broadcast %242 : vector<48x1xf32> to vector<48x32xf32>
    %244 = arith.divf %239, %243 : vector<48x32xf32>
    %245 = vector.broadcast %224 : vector<1x32xf32> to vector<48x32xf32>
    %246 = arith.mulf %244, %245 : vector<48x32xf32>
    %247 = vector.broadcast %226 : vector<1x32xf32> to vector<48x32xf32>
    %248 = arith.addf %246, %247 : vector<48x32xf32>
    %c1_102 = arith.constant 1 : index
    %c0_103 = arith.constant 0 : index
    %c0_104 = arith.constant 0 : index
    %249 = vector.load %arg10[%c1_102, %c0_103, %c0_104] : memref<2x32x128xf32, #tpu.memory_space<vmem>>, vector<1x32x128xf32>
    %250 = vector.shape_cast %249 : vector<1x32x128xf32> to vector<32x128xf32>
    %cst_105 = arith.constant dense<0.000000e+00> : vector<48x128xf32>
    %251 = tpu.matmul %248, %250, %cst_105 {dimension_numbers = #tpu.dot_dimension_numbers<[1], [0], [0], [1], [0, 0, 1, 1], [], []>} : vector<48x32xf32>, vector<32x128xf32>, vector<48x128xf32> -> vector<48x128xf32>
    %c1_106 = arith.constant 1 : index
    %c0_107 = arith.constant 0 : index
    %c0_108 = arith.constant 0 : index
    %252 = vector.load %arg11[%c1_106, %c0_107, %c0_108] : memref<2x1x128xf32, #tpu.memory_space<vmem>>, vector<1x1x128xf32>
    %253 = vector.shape_cast %252 : vector<1x1x128xf32> to vector<1x128xf32>
    %254 = vector.broadcast %253 : vector<1x128xf32> to vector<48x128xf32>
    %255 = arith.addf %251, %254 : vector<48x128xf32>
    %cst_109 = arith.constant 5.000000e-01 : f32
    %256 = vector.broadcast %cst_109 : f32 to vector<48x128xf32>
    %257 = arith.mulf %256, %255 : vector<48x128xf32>
    %cst_110 = arith.constant 0.707106769 : f32
    %258 = vector.broadcast %cst_110 : f32 to vector<48x128xf32>
    %259 = arith.mulf %255, %258 : vector<48x128xf32>
    %260 = math.erf %259 : vector<48x128xf32>
    %cst_111 = arith.constant 1.000000e+00 : f32
    %261 = vector.broadcast %cst_111 : f32 to vector<48x128xf32>
    %262 = arith.addf %261, %260 : vector<48x128xf32>
    %263 = arith.mulf %257, %262 : vector<48x128xf32>
    %c1_112 = arith.constant 1 : index
    %c0_113 = arith.constant 0 : index
    %c0_114 = arith.constant 0 : index
    %264 = vector.load %arg12[%c1_112, %c0_113, %c0_114] : memref<2x128x32xf32, #tpu.memory_space<vmem>>, vector<1x128x32xf32>
    %265 = vector.shape_cast %264 : vector<1x128x32xf32> to vector<128x32xf32>
    %cst_115 = arith.constant dense<0.000000e+00> : vector<48x32xf32>
    %266 = tpu.matmul %263, %265, %cst_115 {dimension_numbers = #tpu.dot_dimension_numbers<[1], [0], [0], [1], [0, 0, 1, 1], [], []>} : vector<48x128xf32>, vector<128x32xf32>, vector<48x32xf32> -> vector<48x32xf32>
    %267 = arith.addf %222, %266 : vector<48x32xf32>
    %c1_116 = arith.constant 1 : index
    %c0_117 = arith.constant 0 : index
    %c0_118 = arith.constant 0 : index
    %268 = vector.load %arg13[%c1_116, %c0_117, %c0_118] : memref<2x1x32xf32, #tpu.memory_space<vmem>>, vector<1x1x32xf32>
    %269 = vector.shape_cast %268 : vector<1x1x32xf32> to vector<1x32xf32>
    %270 = vector.broadcast %269 : vector<1x32xf32> to vector<48x32xf32>
    %271 = arith.addf %267, %270 : vector<48x32xf32>
    %272 = vector.shape_cast %271 : vector<48x32xf32> to vector<2x24x32xf32>
    %273 = vector.extract_strided_slice %272 {offsets = [0, 0, 0], sizes = [2, 1, 32], strides = [1, 1, 1]} : vector<2x24x32xf32> to vector<2x1x32xf32>
    %274 = vector.shape_cast %273 : vector<2x1x32xf32> to vector<2x32xf32>
    %c0_119 = arith.constant 0 : index
    %c0_120 = arith.constant 0 : index
    %275 = vector.load %arg14[%c0_119, %c0_120] : memref<32x128xf32, #tpu.memory_space<vmem>>, vector<32x128xf32>
    %cst_121 = arith.constant dense<0.000000e+00> : vector<2x128xf32>
    %276 = tpu.matmul %274, %275, %cst_121 {dimension_numbers = #tpu.dot_dimension_numbers<[1], [0], [0], [1], [0, 0, 1, 1], [], []>} : vector<2x32xf32>, vector<32x128xf32>, vector<2x128xf32> -> vector<2x128xf32>
    %c0_122 = arith.constant 0 : index
    %c0_123 = arith.constant 0 : index
    %277 = vector.load %arg15[%c0_122, %c0_123] : memref<1x128xf32, #tpu.memory_space<vmem>>, vector<1x128xf32>
    %278 = vector.broadcast %277 : vector<1x128xf32> to vector<2x128xf32>
    %279 = arith.addf %276, %278 : vector<2x128xf32>
    %cst_124 = arith.constant dense<0xFF800000> : vector<2xf32>
    %280 = vector.multi_reduction <maximumf>, %279, %cst_124 [1] : vector<2x128xf32> to vector<2xf32>
    %281 = vector.shape_cast %280 : vector<2xf32> to vector<2x1xf32>
    %282 = vector.broadcast %281 : vector<2x1xf32> to vector<2x128xf32>
    %283 = arith.subf %279, %282 : vector<2x128xf32>
    %284 = math.exp %283 : vector<2x128xf32>
    %cst_125 = arith.constant dense<0.000000e+00> : vector<2xf32>
    %285 = vector.multi_reduction <add>, %284, %cst_125 [1] : vector<2x128xf32> to vector<2xf32>
    %286 = vector.shape_cast %285 : vector<2xf32> to vector<2x1xf32>
    %287 = vector.broadcast %286 : vector<2x1xf32> to vector<2x128xf32>
    %288 = arith.divf %284, %287 : vector<2x128xf32>
    %c0_126 = arith.constant 0 : index
    %c0_127 = arith.constant 0 : index
    %289 = vector.load %arg16[%c0_126, %c0_127] : memref<2x128xf32, #tpu.memory_space<vmem>>, vector<2x128xf32>
    tpu.vector_store %arg16[%c0_126, %c0_127], %288 {strides = array<i32>} : memref<2x128xf32, #tpu.memory_space<vmem>>, vector<2x128xf32>,
    return
  }
  func.func @transform_0(%arg0: i32) -> (i32, i32, i32) {
    %c0_i32 = arith.constant 0 : i32
    %c0_i32_0 = arith.constant 0 : i32
    %c0_i32_1 = arith.constant 0 : i32
    return %arg0, %c0_i32, %c0_i32_0 : i32, i32, i32
  }
  func.func @transform_1(%arg0: i32) -> (i32, i32) {
    %c0_i32 = arith.constant 0 : i32
    %c0_i32_0 = arith.constant 0 : i32
    %c0_i32_1 = arith.constant 0 : i32
    return %c0_i32, %c0_i32_0 : i32, i32
  }
  func.func @transform_2(%arg0: i32) -> (i32, i32) {
    %c0_i32 = arith.constant 0 : i32
    %c0_i32_0 = arith.constant 0 : i32
    %c0_i32_1 = arith.constant 0 : i32
    return %c0_i32, %c0_i32_0 : i32, i32
  }
  func.func @transform_3(%arg0: i32) -> (i32, i32, i32) {
    %c0_i32 = arith.constant 0 : i32
    %c0_i32_0 = arith.constant 0 : i32
    %c0_i32_1 = arith.constant 0 : i32
    %c0_i32_2 = arith.constant 0 : i32
    return %c0_i32, %c0_i32_0, %c0_i32_1 : i32, i32, i32
  }
  func.func @transform_4(%arg0: i32) -> (i32, i32, i32) {
    %c0_i32 = arith.constant 0 : i32
    %c0_i32_0 = arith.constant 0 : i32
    %c0_i32_1 = arith.constant 0 : i32
    %c0_i32_2 = arith.constant 0 : i32
    return %c0_i32, %c0_i32_0, %c0_i32_1 : i32, i32, i32
  }
  func.func @transform_5(%arg0: i32) -> (i32, i32, i32) {
    %c0_i32 = arith.constant 0 : i32
    %c0_i32_0 = arith.constant 0 : i32
    %c0_i32_1 = arith.constant 0 : i32
    %c0_i32_2 = arith.constant 0 : i32
    return %c0_i32, %c0_i32_0, %c0_i32_1 : i32, i32, i32
  }
  func.func @transform_6(%arg0: i32) -> (i32, i32, i32) {
    %c0_i32 = arith.constant 0 : i32
    %c0_i32_0 = arith.constant 0 : i32
    %c0_i32_1 = arith.constant 0 : i32
    %c0_i32_2 = arith.constant 0 : i32
    return %c0_i32, %c0_i32_0, %c0_i32_1 : i32, i32, i32
  }
  func.func @transform_7(%arg0: i32) -> (i32, i32, i32) {
    %c0_i32 = arith.constant 0 : i32
    %c0_i32_0 = arith.constant 0 : i32
    %c0_i32_1 = arith.constant 0 : i32
    %c0_i32_2 = arith.constant 0 : i32
    return %c0_i32, %c0_i32_0, %c0_i32_1 : i32, i32, i32
  }
  func.func @transform_8(%arg0: i32) -> (i32, i32, i32) {
    %c0_i32 = arith.constant 0 : i32
    %c0_i32_0 = arith.constant 0 : i32
    %c0_i32_1 = arith.constant 0 : i32
    %c0_i32_2 = arith.constant 0 : i32
    return %c0_i32, %c0_i32_0, %c0_i32_1 : i32, i32, i32
  }
  func.func @transform_9(%arg0: i32) -> (i32, i32, i32) {
    %c0_i32 = arith.constant 0 : i32
    %c0_i32_0 = arith.constant 0 : i32
    %c0_i32_1 = arith.constant 0 : i32
    %c0_i32_2 = arith.constant 0 : i32
    return %c0_i32, %c0_i32_0, %c0_i32_1 : i32, i32, i32
  }
  func.func @transform_10(%arg0: i32) -> (i32, i32, i32) {
    %c0_i32 = arith.constant 0 : i32
    %c0_i32_0 = arith.constant 0 : i32
    %c0_i32_1 = arith.constant 0 : i32
    %c0_i32_2 = arith.constant 0 : i32
    return %c0_i32, %c0_i32_0, %c0_i32_1 : i32, i32, i32
  }
  func.func @transform_11(%arg0: i32) -> (i32, i32, i32) {
    %c0_i32 = arith.constant 0 : i32
    %c0_i32_0 = arith.constant 0 : i32
    %c0_i32_1 = arith.constant 0 : i32
    %c0_i32_2 = arith.constant 0 : i32
    return %c0_i32, %c0_i32_0, %c0_i32_1 : i32, i32, i32
  }
  func.func @transform_12(%arg0: i32) -> (i32, i32, i32) {
    %c0_i32 = arith.constant 0 : i32
    %c0_i32_0 = arith.constant 0 : i32
    %c0_i32_1 = arith.constant 0 : i32
    %c0_i32_2 = arith.constant 0 : i32
    return %c0_i32, %c0_i32_0, %c0_i32_1 : i32, i32, i32
  }
  func.func @transform_13(%arg0: i32) -> (i32, i32) {
    %c0_i32 = arith.constant 0 : i32
    %c0_i32_0 = arith.constant 0 : i32
    %c0_i32_1 = arith.constant 0 : i32
    return %c0_i32, %c0_i32_0 : i32, i32
  }
  func.func @transform_14(%arg0: i32) -> (i32, i32) {
    %c0_i32 = arith.constant 0 : i32
    %c0_i32_0 = arith.constant 0 : i32
    %c0_i32_1 = arith.constant 0 : i32
    return %c0_i32, %c0_i32_0 : i32, i32
  }
  func.func @transform_15(%arg0: i32) -> (i32, i32) {
    %c0_i32 = arith.constant 0 : i32
    %c0_i32_0 = arith.constant 0 : i32
    return %arg0, %c0_i32 : i32, i32
  }
}

</mosaic_0001>

<llo_original>
// kernel: forward.1
$region0: #{forward.1}
  #allocation0 [shape = 'u32[]', space=smem, size = 0x4, offset = 0x4, fixed_abs, tag = 'smem constant byte address 0x4 - core index']
  #allocation1 [shape = 'u32[72,128]{1,0:T(1,128)}', space=vmem, size = 0x9000, scoped, tag = 'internal scratch']
  %s0 = inlined_call_operand.vmem [shape: f32[2,24,64], index: 0, kind: input, shape index: {}]
  %s1 = inlined_call_operand.vmem [shape: f32[48,32], index: 1, kind: input, shape index: {}]
  %s2 = inlined_call_operand.vmem [shape: f32[64,32], index: 2, kind: input, shape index: {}]
  %s3 = inlined_call_operand.vmem [shape: f32[2,1,32], index: 3, kind: input, shape index: {}, may-alias: {3,7}]
  %s4 = inlined_call_operand.vmem [shape: f32[2,1,32], index: 4, kind: input, shape index: {}, may-alias: {4,8}]
  %s5 = inlined_call_operand.vmem [shape: f32[2,32,96], index: 5, kind: input, shape index: {}]
  %s6 = inlined_call_operand.vmem [shape: f32[2,1,96], index: 6, kind: input, shape index: {}]
  %s7 = inlined_call_operand.vmem [shape: f32[2,1,32], index: 7, kind: input, shape index: {}, may-alias: {3,7}]
  %s8 = inlined_call_operand.vmem [shape: f32[2,1,32], index: 8, kind: input, shape index: {}, may-alias: {4,8}]
  %s9 = inlined_call_operand.vmem [shape: f32[2,32,128], index: 9, kind: input, shape index: {}]
  %s10 = inlined_call_operand.vmem [shape: f32[2,1,128], index: 10, kind: input, shape index: {}]
  %s11 = inlined_call_operand.vmem [shape: f32[2,128,32], index: 11, kind: input, shape index: {}]
  %s12 = inlined_call_operand.vmem [shape: f32[2,1,32], index: 12, kind: input, shape index: {}]
  %s13 = inlined_call_operand.vmem [shape: f32[32,128], index: 13, kind: input, shape index: {}]
  %s14 = inlined_call_operand.vmem [shape: f32[1,128], index: 14, kind: input, shape index: {}]
  %s15 = inlined_call_operand.hbm [shape: f32[2,128], index: 15, kind: output, shape index: {}]
  %s16 = sld [smem:[#allocation0]]
  $region70: #{forward.1} parent=0
    _
  %s18 = ssub.s32 1, %s16
  %s19 = scalar_select 0, %s18, %s16
  $region1: #{forward.1} parent=0
    #allocation2 [shape = 'u8[1024]{0}', space=vmem, size = 0x400, scoped, tag = 'output window, operand 0, single buffered']
    #allocation3 [shape = 's32[1]{0}', space=sflag, size = 0x4, scoped, tag = 'scoped memory for forward.1']
    %20 = vsyncpa [#allocation3], 0
    // Predicated region
    $region2: #{forward.1} parent=1 // pred_check
      _
    $region3: #{forward.1} parent=1 // pred_check_branch
      %22 = sbr.rel (0) target = $region5
    $region4: #{forward.1} parent=1 // pred_region
      _
    $region5: #{forward.1} parent=1 // pred_fallthru
      _
    // Predicated region
    $region6: #{forward.1} parent=1 // pred_check
      _
    $region7: #{forward.1} parent=1 // pred_check_branch
      %24 = sbr.rel (0) target = $region9
    $region8: #{forward.1} parent=1 // pred_region
      _
    $region9: #{forward.1} parent=1 // pred_fallthru
      _
    // Predicated region
    $region10: #{forward.1} parent=1 // pred_check
      _
    $region11: #{forward.1} parent=1 // pred_check_branch
      %26 = sbr.rel (0) target = $region13
    $region12: #{forward.1} parent=1 // pred_region
      _
    $region13: #{forward.1} parent=1 // pred_fallthru
      _
    // Predicated region
    $region14: #{forward.1} parent=1 // pred_check
      _
    $region15: #{forward.1} parent=1 // pred_check_branch
      %28 = sbr.rel (0) target = $region17
    $region16: #{forward.1} parent=1 // pred_region
      _
    $region17: #{forward.1} parent=1 // pred_fallthru
      _
    // Predicated region
    $region18: #{forward.1} parent=1 // pred_check
      _
    $region19: #{forward.1} parent=1 // pred_check_branch
      %30 = sbr.rel (0) target = $region21
    $region20: #{forward.1} parent=1 // pred_region
      _
    $region21: #{forward.1} parent=1 // pred_fallthru
      _
    // Predicated region
    $region22: #{forward.1} parent=1 // pred_check
      _
    $region23: #{forward.1} parent=1 // pred_check_branch
      %32 = sbr.rel (0) target = $region25
    $region24: #{forward.1} parent=1 // pred_region
      _
    $region25: #{forward.1} parent=1 // pred_fallthru
      _
    // Predicated region
    $region26: #{forward.1} parent=1 // pred_check
      _
    $region27: #{forward.1} parent=1 // pred_check_branch
      %34 = sbr.rel (0) target = $region29
    $region28: #{forward.1} parent=1 // pred_region
      _
    $region29: #{forward.1} parent=1 // pred_fallthru
      _
    // Predicated region
    $region30: #{forward.1} parent=1 // pred_check
      _
    $region31: #{forward.1} parent=1 // pred_check_branch
      %36 = sbr.rel (0) target = $region33
    $region32: #{forward.1} parent=1 // pred_region
      _
    $region33: #{forward.1} parent=1 // pred_fallthru
      _
    // Predicated region
    $region34: #{forward.1} parent=1 // pred_check
      _
    $region35: #{forward.1} parent=1 // pred_check_branch
      %38 = sbr.rel (0) target = $region37
    $region36: #{forward.1} parent=1 // pred_region
      _
    $region37: #{forward.1} parent=1 // pred_fallthru
      _
    // Predicated region
    $region38: #{forward.1} parent=1 // pred_check
      _
    $region39: #{forward.1} parent=1 // pred_check_branch
      %40 = sbr.rel (0) target = $region41
    $region40: #{forward.1} parent=1 // pred_region
      _
    $region41: #{forward.1} parent=1 // pred_fallthru
      _
    // Predicated region
    $region42: #{forward.1} parent=1 // pred_check
      _
    $region43: #{forward.1} parent=1 // pred_check_branch
      %42 = sbr.rel (0) target = $region45
    $region44: #{forward.1} parent=1 // pred_region
      _
    $region45: #{forward.1} parent=1 // pred_fallthru
      _
    // Predicated region
    $region46: #{forward.1} parent=1 // pred_check
      _
    $region47: #{forward.1} parent=1 // pred_check_branch
      %44 = sbr.rel (0) target = $region49
    $region48: #{forward.1} parent=1 // pred_region
      _
    $region49: #{forward.1} parent=1 // pred_fallthru
      _
    // Predicated region
    $region50: #{forward.1} parent=1 // pred_check
      _
    $region51: #{forward.1} parent=1 // pred_check_branch
      %46 = sbr.rel (0) target = $region53
    $region52: #{forward.1} parent=1 // pred_region
      _
    $region53: #{forward.1} parent=1 // pred_fallthru
      _
    // Predicated region
    $region54: #{forward.1} parent=1 // pred_check
      _
    $region55: #{forward.1} parent=1 // pred_check_branch
      %48 = sbr.rel (0) target = $region57
    $region56: #{forward.1} parent=1 // pred_region
      _
    $region57: #{forward.1} parent=1 // pred_fallthru
      _
    // Predicated region
    $region58: #{forward.1} parent=1 // pred_check
      _
    $region59: #{forward.1} parent=1 // pred_check_branch
      %50 = sbr.rel (0) target = $region61
    $region60: #{forward.1} parent=1 // pred_region
      _
    $region61: #{forward.1} parent=1 // pred_fallthru
      _
    %v51 = vld [vmem:[%s0] sm:$0xff]
    %v52 = vld [vmem:[%s0 + $0x8] sm:$0xff]
    %v53 = vld [vmem:[%s0 + $0x10] sm:$0xff]
    %v54 = vld [vmem:[%s0 + $0x18] sm:$0xff]
    %v55 = vld [vmem:[%s0 + $0x20] sm:$0xff]
    %v56 = vld [vmem:[%s0 + $0x28] sm:$0xff]
    %v57 = vld [vmem:[%s2] sm:$0xff]
    %v58 = vld [vmem:[%s2 + $0x8] sm:$0xff]
    %v59 = vld [vmem:[%s2 + $0x10] sm:$0xff]
    %v60 = vld [vmem:[%s2 + $0x18] sm:$0xff]
    %v61 = vld [vmem:[%s2 + $0x20] sm:$0xff]
    %v62 = vld [vmem:[%s2 + $0x28] sm:$0xff]
    %v63 = vld [vmem:[%s2 + $0x30] sm:$0xff]
    %v64 = vld [vmem:[%s2 + $0x38] sm:$0xff]
    %v65 = vld [vmem:[%s1] sm:$0xff]
    %v66 = vld [vmem:[%s1 + $0x8] sm:$0xff]
    %v67 = vld [vmem:[%s1 + $0x10] sm:$0xff]
    %v68 = vld [vmem:[%s1 + $0x18] sm:$0xff]
    %v69 = vld [vmem:[%s1 + $0x20] sm:$0xff]
    %v70 = vld [vmem:[%s1 + $0x28] sm:$0xff]
    %vm71 = vcmask 523264
    %v73 = vsel %vm71, %v51, 0
    %v76 = vsel %vm71, %v52, 0
    %v79 = vsel %vm71, %v53, 0
    %v82 = vsel %vm71, %v54, 0
    %v85 = vsel %vm71, %v55, 0
    %v88 = vsel %vm71, %v56, 0
    %90 = vmatpush.msra.mxu0 0.0
    %91 = vmatpush.msra.mxu0 0.0
    %92 = vmatpush.msra.mxu0 0.0
    %93 = vmatpush.msra.mxu0 0.0
    %94 = vmatpush.msra.mxu0 0.0
    %95 = vmatpush.msra.mxu0 0.0
    %96 = vmatpush.msra.mxu0 0.0
    %97 = vmatpush.msra.mxu0 0.0
    %98 = vmatpush.msra.mxu0 %v64
    %99 = vmatpush.msra.mxu0 %v63
    %100 = vmatpush.msra.mxu0 %v62
    %101 = vmatpush.msra.mxu0 %v61
    %102 = vmatpush.msra.mxu0 %v60
    %103 = vmatpush.msra.mxu0 %v59
    %104 = vmatpush.msra.mxu0 %v58
    %105 = vmatpush.msra.mxu0 %v57
    %106 = vmatmul.f32.gmra.mxu0 %v73
    %v107 = vpop.f32.mrf.mxu0
    %v108 = vadd.f32 %v65, %v107
    %109 = vmatmul.f32.gmra.mxu0 %v76
    %v110 = vpop.f32.mrf.mxu0
    %v111 = vadd.f32 %v66, %v110
    %112 = vmatmul.f32.gmra.mxu0 %v79
    %v113 = vpop.f32.mrf.mxu0
    %v114 = vadd.f32 %v67, %v113
    %115 = vmatmul.f32.gmra.mxu0 %v82
    %v116 = vpop.f32.mrf.mxu0
    %v117 = vadd.f32 %v68, %v116
    %118 = vmatmul.f32.gmra.mxu0 %v85
    %v119 = vpop.f32.mrf.mxu0
    %v120 = vadd.f32 %v69, %v119
    %121 = vmatmul.f32.gmra.mxu0 %v88
    %v122 = vpop.f32.mrf.mxu0
    %v123 = vadd.f32 %v70, %v122
    %124 = vdwg.mxu0
    %v125 = vlaneseq
    %v126 = vand.u32 %v125, 127
    %vm127 = vcmp.lt.s32.totalorder %v126, 17
    %v128 = vsel %vm127, 0.0, -1e+30
    %v129 = vld [vmem:[%s3] sm:$0x1]
    %v130 = vld [vmem:[%s4] sm:$0x1]
    %vm131 = vcmask 261120
    %v132 = vsel %vm131, %v108, 0.0
    %133 = vadd.xlane.f32.xlu0 %v132
    %v134 = vpop.xlane.xlu0 %133
    %v135 = vsel %vm131, %v111, 0.0
    %136 = vadd.xlane.f32.xlu0 %v135
    %v137 = vpop.xlane.xlu0 %136
    %v138 = vsel %vm131, %v114, 0.0
    %139 = vadd.xlane.f32.xlu0 %v138
    %v140 = vpop.xlane.xlu0 %139
    %v141 = vsel %vm131, %v117, 0.0
    %142 = vadd.xlane.f32.xlu0 %v141
    %v143 = vpop.xlane.xlu0 %142
    %v144 = vsel %vm131, %v120, 0.0
    %145 = vadd.xlane.f32.xlu0 %v144
    %v146 = vpop.xlane.xlu0 %145
    %v147 = vsel %vm131, %v123, 0.0
    %148 = vadd.xlane.f32.xlu0 %v147
    %v149 = vpop.xlane.xlu0 %148
    %v150 = vrcp.pop 32.0
    %v151 = vmul.f32 32.0, %v150
    %v152 = vsub.f32 1.0, %v151
    %v153 = vmul.f32 %v150, %v152
    %v154 = vadd.f32 %v150, %v153
    %vm155 = vweird.f32 %v150
    %v156 = vsel %vm155, %v150, %v154
    %v157 = vmul.f32 %v134, %v156
    %v158 = vmul.f32 %v137, %v156
    %v159 = vmul.f32 %v140, %v156
    %v160 = vmul.f32 %v143, %v156
    %v161 = vmul.f32 %v146, %v156
    %v162 = vmul.f32 %v149, %v156
    %v163 = vsub.f32 %v108, %v157
    %v164 = vsub.f32 %v111, %v158
    %v165 = vsub.f32 %v114, %v159
    %v166 = vsub.f32 %v117, %v160
    %v167 = vsub.f32 %v120, %v161
    %v168 = vsub.f32 %v123, %v162
    %v169 = vmul.f32 %v163, %v163
    %v170 = vmul.f32 %v164, %v164
    %v171 = vmul.f32 %v165, %v165
    %v172 = vmul.f32 %v166, %v166
    %v173 = vmul.f32 %v167, %v167
    %v174 = vmul.f32 %v168, %v168
    %v175 = vsel %vm131, %v169, 0.0
    %176 = vadd.xlane.f32.xlu0 %v175
    %v177 = vpop.xlane.xlu0 %176
    %v178 = vsel %vm131, %v170, 0.0
    %179 = vadd.xlane.f32.xlu0 %v178
    %v180 = vpop.xlane.xlu0 %179
    %v181 = vsel %vm131, %v171, 0.0
    %182 = vadd.xlane.f32.xlu0 %v181
    %v183 = vpop.xlane.xlu0 %182
    %v184 = vsel %vm131, %v172, 0.0
    %185 = vadd.xlane.f32.xlu0 %v184
    %v186 = vpop.xlane.xlu0 %185
    %v187 = vsel %vm131, %v173, 0.0
    %188 = vadd.xlane.f32.xlu0 %v187
    %v189 = vpop.xlane.xlu0 %188
    %v190 = vsel %vm131, %v174, 0.0
    %191 = vadd.xlane.f32.xlu0 %v190
    %v192 = vpop.xlane.xlu0 %191
    %v193 = vmul.f32 %v177, %v156
    %v194 = vmul.f32 %v180, %v156
    %v195 = vmul.f32 %v183, %v156
    %v196 = vmul.f32 %v186, %v156
    %v197 = vmul.f32 %v189, %v156
    %v198 = vmul.f32 %v192, %v156
    %v199 = vadd.f32 %v193, 1e-05
    %v200 = vadd.f32 %v194, 1e-05
    %v201 = vadd.f32 %v195, 1e-05
    %v202 = vadd.f32 %v196, 1e-05
    %v203 = vadd.f32 %v197, 1e-05
    %v204 = vadd.f32 %v198, 1e-05
    %v205 = vrsqrt.pop %v199
    %v206 = vmul.f32 %v205, %v199
    %v207 = vmul.f32 %v206, %v205
    %v208 = vmul.f32 0.5, %v207
    %v209 = vsub.f32 1.5, %v208
    %v210 = vmul.f32 %v205, %v209
    %v211 = vmul.f32 %v199, %v210
    %vm212 = vcmp.eq.f32.partialorder %v199, inf
    %v213 = vsel %vm212, %v199, %v211
    %vm214 = vcmp.eq.f32.partialorder %v199, 0.0
    %v215 = vand.u32 %v199, 2147483648
    %v216 = vsel %vm214, %v215, %v213
    %v217 = vrsqrt.pop %v200
    %v218 = vmul.f32 %v217, %v200
    %v219 = vmul.f32 %v218, %v217
    %v220 = vmul.f32 0.5, %v219
    %v221 = vsub.f32 1.5, %v220
    %v222 = vmul.f32 %v217, %v221
    %v223 = vmul.f32 %v200, %v222
    %vm224 = vcmp.eq.f32.partialorder %v200, inf
    %v225 = vsel %vm224, %v200, %v223
    %vm226 = vcmp.eq.f32.partialorder %v200, 0.0
    %v227 = vand.u32 %v200, 2147483648
    %v228 = vsel %vm226, %v227, %v225
    %v229 = vrsqrt.pop %v201
    %v230 = vmul.f32 %v229, %v201
    %v231 = vmul.f32 %v230, %v229
    %v232 = vmul.f32 0.5, %v231
    %v233 = vsub.f32 1.5, %v232
    %v234 = vmul.f32 %v229, %v233
    %v235 = vmul.f32 %v201, %v234
    %vm236 = vcmp.eq.f32.partialorder %v201, inf
    %v237 = vsel %vm236, %v201, %v235
    %vm238 = vcmp.eq.f32.partialorder %v201, 0.0
    %v239 = vand.u32 %v201, 2147483648
    %v240 = vsel %vm238, %v239, %v237
    %v241 = vrsqrt.pop %v202
    %v242 = vmul.f32 %v241, %v202
    %v243 = vmul.f32 %v242, %v241
    %v244 = vmul.f32 0.5, %v243
    %v245 = vsub.f32 1.5, %v244
    %v246 = vmul.f32 %v241, %v245
    %v247 = vmul.f32 %v202, %v246
    %vm248 = vcmp.eq.f32.partialorder %v202, inf
    %v249 = vsel %vm248, %v202, %v247
    %vm250 = vcmp.eq.f32.partialorder %v202, 0.0
    %v251 = vand.u32 %v202, 2147483648
    %v252 = vsel %vm250, %v251, %v249
    %v253 = vrsqrt.pop %v203
    %v254 = vmul.f32 %v253, %v203
    %v255 = vmul.f32 %v254, %v253
    %v256 = vmul.f32 0.5, %v255
    %v257 = vsub.f32 1.5, %v256
    %v258 = vmul.f32 %v253, %v257
    %v259 = vmul.f32 %v203, %v258
    %vm260 = vcmp.eq.f32.partialorder %v203, inf
    %v261 = vsel %vm260, %v203, %v259
    %vm262 = vcmp.eq.f32.partialorder %v203, 0.0
    %v263 = vand.u32 %v203, 2147483648
    %v264 = vsel %vm262, %v263, %v261
    %v265 = vrsqrt.pop %v204
    %v266 = vmul.f32 %v265, %v204
    %v267 = vmul.f32 %v266, %v265
    %v268 = vmul.f32 0.5, %v267
    %v269 = vsub.f32 1.5, %v268
    %v270 = vmul.f32 %v265, %v269
    %v271 = vmul.f32 %v204, %v270
    %vm272 = vcmp.eq.f32.partialorder %v204, inf
    %v273 = vsel %vm272, %v204, %v271
    %vm274 = vcmp.eq.f32.partialorder %v204, 0.0
    %v275 = vand.u32 %v204, 2147483648
    %v276 = vsel %vm274, %v275, %v273
    %v277 = vrcp.pop %v216
    %v278 = vmul.f32 %v216, %v277
    %v279 = vsub.f32 1.0, %v278
    %v280 = vmul.f32 %v277, %v279
    %v281 = vadd.f32 %v277, %v280
    %vm282 = vweird.f32 %v216
    %vm283 = vweird.f32 %v277
    %vm284 = vmor %vm282, %vm283
    %v285 = vsel %vm284, %v277, %v281
    %v286 = vand.u32 2147483647, %v216
    %vm287 = vcmp.eq.f32.partialorder %v286, 8.507059e+37
    %v288 = vand.u32 %v216, 2147483648
    %v289 = vor.u32 1.1754944e-38, %v288
    %v290 = vsel %vm287, %v289, %v285
    %v291 = vmul.f32 %v163, %v290
    %v292 = vrcp.pop %v228
    %v293 = vmul.f32 %v228, %v292
    %v294 = vsub.f32 1.0, %v293
    %v295 = vmul.f32 %v292, %v294
    %v296 = vadd.f32 %v292, %v295
    %vm297 = vweird.f32 %v228
    %vm298 = vweird.f32 %v292
    %vm299 = vmor %vm297, %vm298
    %v300 = vsel %vm299, %v292, %v296
    %v301 = vand.u32 2147483647, %v228
    %vm302 = vcmp.eq.f32.partialorder %v301, 8.507059e+37
    %v303 = vand.u32 %v228, 2147483648
    %v304 = vor.u32 1.1754944e-38, %v303
    %v305 = vsel %vm302, %v304, %v300
    %v306 = vmul.f32 %v164, %v305
    %v307 = vrcp.pop %v240
    %v308 = vmul.f32 %v240, %v307
    %v309 = vsub.f32 1.0, %v308
    %v310 = vmul.f32 %v307, %v309
    %v311 = vadd.f32 %v307, %v310
    %vm312 = vweird.f32 %v240
    %vm313 = vweird.f32 %v307
    %vm314 = vmor %vm312, %vm313
    %v315 = vsel %vm314, %v307, %v311
    %v316 = vand.u32 2147483647, %v240
    %vm317 = vcmp.eq.f32.partialorder %v316, 8.507059e+37
    %v318 = vand.u32 %v240, 2147483648
    %v319 = vor.u32 1.1754944e-38, %v318
    %v320 = vsel %vm317, %v319, %v315
    %v321 = vmul.f32 %v165, %v320
    %v322 = vrcp.pop %v252
    %v323 = vmul.f32 %v252, %v322
    %v324 = vsub.f32 1.0, %v323
    %v325 = vmul.f32 %v322, %v324
    %v326 = vadd.f32 %v322, %v325
    %vm327 = vweird.f32 %v252
    %vm328 = vweird.f32 %v322
    %vm329 = vmor %vm327, %vm328
    %v330 = vsel %vm329, %v322, %v326
    %v331 = vand.u32 2147483647, %v252
    %vm332 = vcmp.eq.f32.partialorder %v331, 8.507059e+37
    %v333 = vand.u32 %v252, 2147483648
    %v334 = vor.u32 1.1754944e-38, %v333
    %v335 = vsel %vm332, %v334, %v330
    %v336 = vmul.f32 %v166, %v335
    %v337 = vrcp.pop %v264
    %v338 = vmul.f32 %v264, %v337
    %v339 = vsub.f32 1.0, %v338
    %v340 = vmul.f32 %v337, %v339
    %v341 = vadd.f32 %v337, %v340
    %vm342 = vweird.f32 %v264
    %vm343 = vweird.f32 %v337
    %vm344 = vmor %vm342, %vm343
    %v345 = vsel %vm344, %v337, %v341
    %v346 = vand.u32 2147483647, %v264
    %vm347 = vcmp.eq.f32.partialorder %v346, 8.507059e+37
    %v348 = vand.u32 %v264, 2147483648
    %v349 = vor.u32 1.1754944e-38, %v348
    %v350 = vsel %vm347, %v349, %v345
    %v351 = vmul.f32 %v167, %v350
    %v352 = vrcp.pop %v276
    %v353 = vmul.f32 %v276, %v352
    %v354 = vsub.f32 1.0, %v353
    %v355 = vmul.f32 %v352, %v354
    %v356 = vadd.f32 %v352, %v355
    %vm357 = vweird.f32 %v276
    %vm358 = vweird.f32 %v352
    %vm359 = vmor %vm357, %vm358
    %v360 = vsel %vm359, %v352, %v356
    %v361 = vand.u32 2147483647, %v276
    %vm362 = vcmp.eq.f32.partialorder %v361, 8.507059e+37
    %v363 = vand.u32 %v276, 2147483648
    %v364 = vor.u32 1.1754944e-38, %v363
    %v365 = vsel %vm362, %v364, %v360
    %v366 = vmul.f32 %v168, %v365
    %v368 = vperm.slane %v129, 0
    %v370 = vmul.f32 %v291, %v368
    %v371 = vmul.f32 %v306, %v368
    %v372 = vmul.f32 %v321, %v368
    %v373 = vmul.f32 %v336, %v368
    %v374 = vmul.f32 %v351, %v368
    %v375 = vmul.f32 %v366, %v368
    %v377 = vperm.slane %v130, 0
    %v379 = vadd.f32 %v370, %v377
    %v380 = vadd.f32 %v371, %v377
    %v381 = vadd.f32 %v372, %v377
    %v382 = vadd.f32 %v373, %v377
    %v383 = vadd.f32 %v374, %v377
    %v384 = vadd.f32 %v375, %v377
    %v385 = vld [vmem:[%s5] sm:$0xff]
    %v386 = vld [vmem:[%s5 + $0x8] sm:$0xff]
    %v387 = vld [vmem:[%s5 + $0x10] sm:$0xff]
    %v388 = vld [vmem:[%s5 + $0x18] sm:$0xff]
    %v389 = vld [vmem:[%s6] sm:$0x1]
    %v391 = vperm.slane %v389, 0
    %v394 = vsel %vm131, %v379, 0
    %v397 = vsel %vm131, %v380, 0
    %v400 = vsel %vm131, %v381, 0
    %v403 = vsel %vm131, %v382, 0
    %v406 = vsel %vm131, %v383, 0
    %v409 = vsel %vm131, %v384, 0
    %411 = vmatpush.msra.mxu0 0.0
    %412 = vmatpush.msra.mxu0 0.0
    %413 = vmatpush.msra.mxu0 0.0
    %414 = vmatpush.msra.mxu0 0.0
    %415 = vmatpush.msra.mxu0 0.0
    %416 = vmatpush.msra.mxu0 0.0
    %417 = vmatpush.msra.mxu0 0.0
    %418 = vmatpush.msra.mxu0 0.0
    %419 = vmatpush.msra.mxu0 0.0
    %420 = vmatpush.msra.mxu0 0.0
    %421 = vmatpush.msra.mxu0 0.0
    %422 = vmatpush.msra.mxu0 0.0
    %423 = vmatpush.msra.mxu0 %v388
    %424 = vmatpush.msra.mxu0 %v387
    %425 = vmatpush.msra.mxu0 %v386
    %426 = vmatpush.msra.mxu0 %v385
    %427 = vmatmul.f32.gmra.mxu0 %v394
    %v428 = vpop.f32.mrf.mxu0
    %v429 = vadd.f32 %v391, %v428
    %430 = vmatmul.f32.gmra.mxu0 %v397
    %v431 = vpop.f32.mrf.mxu0
    %v432 = vadd.f32 %v391, %v431
    %433 = vmatmul.f32.gmra.mxu0 %v400
    %v434 = vpop.f32.mrf.mxu0
    %v435 = vadd.f32 %v391, %v434
    %436 = vmatmul.f32.gmra.mxu0 %v403
    %v437 = vpop.f32.mrf.mxu0
    %v438 = vadd.f32 %v391, %v437
    %439 = vmatmul.f32.gmra.mxu0 %v406
    %v440 = vpop.f32.mrf.mxu0
    %v441 = vadd.f32 %v391, %v440
    %442 = vmatmul.f32.gmra.mxu0 %v409
    %v443 = vpop.f32.mrf.mxu0
    %v444 = vadd.f32 %v391, %v443
    %445 = vdwg.mxu0
    %449 = vrot.lane.b32.xlu0 %v429, 96
    %v450 = vpop.permute.xlu0 %449
    %451 = vrot.lane.b32.xlu0 %v432, 96
    %v452 = vpop.permute.xlu0 %451
    %453 = vrot.lane.b32.xlu0 %v435, 96
    %v454 = vpop.permute.xlu0 %453
    %vm455 = vcmask 130048
    %v456 = vsel %vm455, %v429, 0
    %v458 = vsel %vm455, %v432, 0
    %v460 = vsel %vm455, %v435, 0
    %v462 = vsel %vm455, %v450, 0
    %v464 = vsel %vm455, %v452, 0
    %v466 = vsel %vm455, %v454, 0
    %468 = vmatpush.xpose.msra.mxu0 0.0
    %469 = vmatpush.xpose.msra.mxu0 0.0
    %470 = vmatpush.xpose.msra.mxu0 0.0
    %471 = vmatpush.xpose.msra.mxu0 0.0
    %472 = vmatpush.xpose.msra.mxu0 0.0
    %473 = vmatpush.xpose.msra.mxu0 0.0
    %474 = vmatpush.xpose.msra.mxu0 0.0
    %475 = vmatpush.xpose.msra.mxu0 0.0
    %476 = vmatpush.xpose.msra.mxu0 0.0
    %477 = vmatpush.xpose.msra.mxu0 0.0
    %478 = vmatpush.xpose.msra.mxu0 0.0
    %479 = vmatpush.xpose.msra.mxu0 0.0
    %480 = vmatpush.xpose.msra.mxu0 0.0
    %481 = vmatpush.xpose.msra.mxu0 %v466
    %482 = vmatpush.xpose.msra.mxu0 %v464
    %483 = vmatpush.xpose.msra.mxu0 %v462
    %484 = vmatmul.f32.gmra.mxu0 %v456
    %v485 = vpop.f32.mrf.mxu0
    %v486 = vadd.f32 0.0, %v485
    %487 = vmatmul.f32.gmra.mxu0 %v458
    %v488 = vpop.f32.mrf.mxu0
    %v489 = vadd.f32 0.0, %v488
    %490 = vmatmul.f32.gmra.mxu0 %v460
    %v491 = vpop.f32.mrf.mxu0
    %v492 = vadd.f32 0.0, %v491
    %493 = vdwg.mxu0
    %497 = vrot.lane.b32.xlu0 %v438, 96
    %v498 = vpop.permute.xlu0 %497
    %499 = vrot.lane.b32.xlu0 %v441, 96
    %v500 = vpop.permute.xlu0 %499
    %501 = vrot.lane.b32.xlu0 %v444, 96
    %v502 = vpop.permute.xlu0 %501
    %v503 = vsel %vm455, %v438, 0
    %v505 = vsel %vm455, %v441, 0
    %v507 = vsel %vm455, %v444, 0
    %v509 = vsel %vm455, %v498, 0
    %v511 = vsel %vm455, %v500, 0
    %v513 = vsel %vm455, %v502, 0
    %515 = vmatpush.xpose.msra.mxu0 0.0
    %516 = vmatpush.xpose.msra.mxu0 0.0
    %517 = vmatpush.xpose.msra.mxu0 0.0
    %518 = vmatpush.xpose.msra.mxu0 0.0
    %519 = vmatpush.xpose.msra.mxu0 0.0
    %520 = vmatpush.xpose.msra.mxu0 0.0
    %521 = vmatpush.xpose.msra.mxu0 0.0
    %522 = vmatpush.xpose.msra.mxu0 0.0
    %523 = vmatpush.xpose.msra.mxu0 0.0
    %524 = vmatpush.xpose.msra.mxu0 0.0
    %525 = vmatpush.xpose.msra.mxu0 0.0
    %526 = vmatpush.xpose.msra.mxu0 0.0
    %527 = vmatpush.xpose.msra.mxu0 0.0
    %528 = vmatpush.xpose.msra.mxu0 %v513
    %529 = vmatpush.xpose.msra.mxu0 %v511
    %530 = vmatpush.xpose.msra.mxu0 %v509
    %531 = vmatmul.f32.gmra.mxu0 %v503
    %v532 = vpop.f32.mrf.mxu0
    %v533 = vadd.f32 0.0, %v532
    %534 = vmatmul.f32.gmra.mxu0 %v505
    %v535 = vpop.f32.mrf.mxu0
    %v536 = vadd.f32 0.0, %v535
    %537 = vmatmul.f32.gmra.mxu0 %v507
    %v538 = vpop.f32.mrf.mxu0
    %v539 = vadd.f32 0.0, %v538
    %540 = vdwg.mxu0
    %v541 = vmul.f32 %v486, 0.25
    %v542 = vmul.f32 %v489, 0.25
    %v543 = vmul.f32 %v492, 0.25
    %v544 = vmul.f32 %v533, 0.25
    %v545 = vmul.f32 %v536, 0.25
    %v546 = vmul.f32 %v539, 0.25
    %v547 = vadd.f32 %v541, %v128
    %v548 = vadd.f32 %v542, %v128
    %v549 = vadd.f32 %v543, %v128
    %v550 = vadd.f32 %v544, %v128
    %v551 = vadd.f32 %v545, %v128
    %v552 = vadd.f32 %v546, %v128
    %vm553 = vcmask 195584
    %v554 = vsel %vm553, %v547, -inf
    %555 = vmax.xlane.f32.xlu0 %v554
    %v556 = vpop.xlane.xlu0 %555
    %v557 = vsel %vm553, %v548, -inf
    %558 = vmax.xlane.f32.xlu0 %v557
    %v559 = vpop.xlane.xlu0 %558
    %v560 = vsel %vm553, %v549, -inf
    %561 = vmax.xlane.f32.xlu0 %v560
    %v562 = vpop.xlane.xlu0 %561
    %v563 = vsel %vm553, %v550, -inf
    %564 = vmax.xlane.f32.xlu0 %v563
    %v565 = vpop.xlane.xlu0 %564
    %v566 = vsel %vm553, %v551, -inf
    %567 = vmax.xlane.f32.xlu0 %v566
    %v568 = vpop.xlane.xlu0 %567
    %v569 = vsel %vm553, %v552, -inf
    %570 = vmax.xlane.f32.xlu0 %v569
    %v571 = vpop.xlane.xlu0 %570
    %v572 = vsub.f32 %v547, %v556
    %v573 = vsub.f32 %v548, %v559
    %v574 = vsub.f32 %v549, %v562
    %v575 = vsub.f32 %v550, %v565
    %v576 = vsub.f32 %v551, %v568
    %v577 = vsub.f32 %v552, %v571
    %v578 = vmul.f32 %v572, 1.442695
    %v579 = vpow.pop %v578
    %v580 = vmul.f32 %v573, 1.442695
    %v581 = vpow.pop %v580
    %v582 = vmul.f32 %v574, 1.442695
    %v583 = vpow.pop %v582
    %v584 = vmul.f32 %v575, 1.442695
    %v585 = vpow.pop %v584
    %v586 = vmul.f32 %v576, 1.442695
    %v587 = vpow.pop %v586
    %v588 = vmul.f32 %v577, 1.442695
    %v589 = vpow.pop %v588
    %v590 = vsel %vm553, %v579, 0.0
    %591 = vadd.xlane.f32.xlu0 %v590
    %v592 = vpop.xlane.xlu0 %591
    %v593 = vsel %vm553, %v581, 0.0
    %594 = vadd.xlane.f32.xlu0 %v593
    %v595 = vpop.xlane.xlu0 %594
    %v596 = vsel %vm553, %v583, 0.0
    %597 = vadd.xlane.f32.xlu0 %v596
    %v598 = vpop.xlane.xlu0 %597
    %v599 = vsel %vm553, %v585, 0.0
    %600 = vadd.xlane.f32.xlu0 %v599
    %v601 = vpop.xlane.xlu0 %600
    %v602 = vsel %vm553, %v587, 0.0
    %603 = vadd.xlane.f32.xlu0 %v602
    %v604 = vpop.xlane.xlu0 %603
    %v605 = vsel %vm553, %v589, 0.0
    %606 = vadd.xlane.f32.xlu0 %v605
    %v607 = vpop.xlane.xlu0 %606
    %v608 = vrcp.pop %v592
    %v609 = vrcp.pop %v595
    %v610 = vrcp.pop %v598
    %v611 = vrcp.pop %v601
    %v612 = vrcp.pop %v604
    %v613 = vrcp.pop %v607
    %v614 = vmul.f32 %v579, %v608
    %v615 = vmul.f32 %v581, %v609
    %v616 = vmul.f32 %v583, %v610
    %v617 = vmul.f32 %v585, %v611
    %v618 = vmul.f32 %v587, %v612
    %v619 = vmul.f32 %v589, %v613
    %620 = vrot.lane.b32.xlu0 %v429, 64
    %v621 = vpop.permute.xlu0 %620
    %622 = vrot.lane.b32.xlu0 %v432, 64
    %v623 = vpop.permute.xlu0 %622
    %624 = vrot.lane.b32.xlu0 %v435, 64
    %v625 = vpop.permute.xlu0 %624
    %v630 = vsel %vm553, %v614, 0
    %v633 = vsel %vm553, %v615, 0
    %v636 = vsel %vm553, %v616, 0
    %638 = vmatpush.msra.mxu0 0.0
    %639 = vmatpush.msra.mxu0 0.0
    %640 = vmatpush.msra.mxu0 0.0
    %641 = vmatpush.msra.mxu0 0.0
    %642 = vmatpush.msra.mxu0 0.0
    %643 = vmatpush.msra.mxu0 0.0
    %644 = vmatpush.msra.mxu0 0.0
    %645 = vmatpush.msra.mxu0 0.0
    %646 = vmatpush.msra.mxu0 0.0
    %647 = vmatpush.msra.mxu0 0.0
    %648 = vmatpush.msra.mxu0 0.0
    %649 = vmatpush.msra.mxu0 0.0
    %650 = vmatpush.msra.mxu0 0.0
    %651 = vmatpush.msra.mxu0 %v625
    %652 = vmatpush.msra.mxu0 %v623
    %653 = vmatpush.msra.mxu0 %v621
    %654 = vmatmul.f32.gmra.mxu0 %v630
    %v655 = vpop.f32.mrf.mxu0
    %v656 = vadd.f32 0.0, %v655
    %657 = vmatmul.f32.gmra.mxu0 %v633
    %v658 = vpop.f32.mrf.mxu0
    %v659 = vadd.f32 0.0, %v658
    %660 = vmatmul.f32.gmra.mxu0 %v636
    %v661 = vpop.f32.mrf.mxu0
    %v662 = vadd.f32 0.0, %v661
    %663 = vdwg.mxu0
    %664 = vrot.lane.b32.xlu0 %v438, 64
    %v665 = vpop.permute.xlu0 %664
    %666 = vrot.lane.b32.xlu0 %v441, 64
    %v667 = vpop.permute.xlu0 %666
    %668 = vrot.lane.b32.xlu0 %v444, 64
    %v669 = vpop.permute.xlu0 %668
    %v674 = vsel %vm553, %v617, 0
    %v677 = vsel %vm553, %v618, 0
    %v680 = vsel %vm553, %v619, 0
    %682 = vmatpush.msra.mxu0 0.0
    %683 = vmatpush.msra.mxu0 0.0
    %684 = vmatpush.msra.mxu0 0.0
    %685 = vmatpush.msra.mxu0 0.0
    %686 = vmatpush.msra.mxu0 0.0
    %687 = vmatpush.msra.mxu0 0.0
    %688 = vmatpush.msra.mxu0 0.0
    %689 = vmatpush.msra.mxu0 0.0
    %690 = vmatpush.msra.mxu0 0.0
    %691 = vmatpush.msra.mxu0 0.0
    %692 = vmatpush.msra.mxu0 0.0
    %693 = vmatpush.msra.mxu0 0.0
    %694 = vmatpush.msra.mxu0 0.0
    %695 = vmatpush.msra.mxu0 %v669
    %696 = vmatpush.msra.mxu0 %v667
    %697 = vmatpush.msra.mxu0 %v665
    %698 = vmatmul.f32.gmra.mxu0 %v674
    %v699 = vpop.f32.mrf.mxu0
    %v700 = vadd.f32 0.0, %v699
    %701 = vmatmul.f32.gmra.mxu0 %v677
    %v702 = vpop.f32.mrf.mxu0
    %v703 = vadd.f32 0.0, %v702
    %704 = vmatmul.f32.gmra.mxu0 %v680
    %v705 = vpop.f32.mrf.mxu0
    %v706 = vadd.f32 0.0, %v705
    %707 = vdwg.mxu0
    %708 = vrot.lane.b32.xlu0 %v429, 112
    %v709 = vpop.permute.xlu0 %708
    %710 = vrot.lane.b32.xlu0 %v432, 112
    %v711 = vpop.permute.xlu0 %710
    %712 = vrot.lane.b32.xlu0 %v435, 112
    %v713 = vpop.permute.xlu0 %712
    %714 = vrot.lane.b32.xlu0 %v429, 80
    %v715 = vpop.permute.xlu0 %714
    %716 = vrot.lane.b32.xlu0 %v432, 80
    %v717 = vpop.permute.xlu0 %716
    %718 = vrot.lane.b32.xlu0 %v435, 80
    %v719 = vpop.permute.xlu0 %718
    %v720 = vsel %vm455, %v709, 0
    %v722 = vsel %vm455, %v711, 0
    %v724 = vsel %vm455, %v713, 0
    %v726 = vsel %vm455, %v715, 0
    %v728 = vsel %vm455, %v717, 0
    %v730 = vsel %vm455, %v719, 0
    %732 = vmatpush.xpose.msra.mxu0 0.0
    %733 = vmatpush.xpose.msra.mxu0 0.0
    %734 = vmatpush.xpose.msra.mxu0 0.0
    %735 = vmatpush.xpose.msra.mxu0 0.0
    %736 = vmatpush.xpose.msra.mxu0 0.0
    %737 = vmatpush.xpose.msra.mxu0 0.0
    %738 = vmatpush.xpose.msra.mxu0 0.0
    %739 = vmatpush.xpose.msra.mxu0 0.0
    %740 = vmatpush.xpose.msra.mxu0 0.0
    %741 = vmatpush.xpose.msra.mxu0 0.0
    %742 = vmatpush.xpose.msra.mxu0 0.0
    %743 = vmatpush.xpose.msra.mxu0 0.0
    %744 = vmatpush.xpose.msra.mxu0 0.0
    %745 = vmatpush.xpose.msra.mxu0 %v730
    %746 = vmatpush.xpose.msra.mxu0 %v728
    %747 = vmatpush.xpose.msra.mxu0 %v726
    %748 = vmatmul.f32.gmra.mxu0 %v720
    %v749 = vpop.f32.mrf.mxu0
    %v750 = vadd.f32 0.0, %v749
    %751 = vmatmul.f32.gmra.mxu0 %v722
    %v752 = vpop.f32.mrf.mxu0
    %v753 = vadd.f32 0.0, %v752
    %754 = vmatmul.f32.gmra.mxu0 %v724
    %v755 = vpop.f32.mrf.mxu0
    %v756 = vadd.f32 0.0, %v755
    %757 = vdwg.mxu0
    %758 = vrot.lane.b32.xlu0 %v438, 112
    %v759 = vpop.permute.xlu0 %758
    %760 = vrot.lane.b32.xlu0 %v441, 112
    %v761 = vpop.permute.xlu0 %760
    %762 = vrot.lane.b32.xlu0 %v444, 112
    %v763 = vpop.permute.xlu0 %762
    %764 = vrot.lane.b32.xlu0 %v438, 80
    %v765 = vpop.permute.xlu0 %764
    %766 = vrot.lane.b32.xlu0 %v441, 80
    %v767 = vpop.permute.xlu0 %766
    %768 = vrot.lane.b32.xlu0 %v444, 80
    %v769 = vpop.permute.xlu0 %768
    %v770 = vsel %vm455, %v759, 0
    %v772 = vsel %vm455, %v761, 0
    %v774 = vsel %vm455, %v763, 0
    %v776 = vsel %vm455, %v765, 0
    %v778 = vsel %vm455, %v767, 0
    %v780 = vsel %vm455, %v769, 0
    %782 = vmatpush.xpose.msra.mxu0 0.0
    %783 = vmatpush.xpose.msra.mxu0 0.0
    %784 = vmatpush.xpose.msra.mxu0 0.0
    %785 = vmatpush.xpose.msra.mxu0 0.0
    %786 = vmatpush.xpose.msra.mxu0 0.0
    %787 = vmatpush.xpose.msra.mxu0 0.0
    %788 = vmatpush.xpose.msra.mxu0 0.0
    %789 = vmatpush.xpose.msra.mxu0 0.0
    %790 = vmatpush.xpose.msra.mxu0 0.0
    %791 = vmatpush.xpose.msra.mxu0 0.0
    %792 = vmatpush.xpose.msra.mxu0 0.0
    %793 = vmatpush.xpose.msra.mxu0 0.0
    %794 = vmatpush.xpose.msra.mxu0 0.0
    %795 = vmatpush.xpose.msra.mxu0 %v780
    %796 = vmatpush.xpose.msra.mxu0 %v778
    %797 = vmatpush.xpose.msra.mxu0 %v776
    %798 = vmatmul.f32.gmra.mxu0 %v770
    %v799 = vpop.f32.mrf.mxu0
    %v800 = vadd.f32 0.0, %v799
    %801 = vmatmul.f32.gmra.mxu0 %v772
    %v802 = vpop.f32.mrf.mxu0
    %v803 = vadd.f32 0.0, %v802
    %804 = vmatmul.f32.gmra.mxu0 %v774
    %v805 = vpop.f32.mrf.mxu0
    %v806 = vadd.f32 0.0, %v805
    %807 = vdwg.mxu0
    %v808 = vmul.f32 %v750, 0.25
    %v809 = vmul.f32 %v753, 0.25
    %v810 = vmul.f32 %v756, 0.25
    %v811 = vmul.f32 %v800, 0.25
    %v812 = vmul.f32 %v803, 0.25
    %v813 = vmul.f32 %v806, 0.25
    %v814 = vadd.f32 %v808, %v128
    %v815 = vadd.f32 %v809, %v128
    %v816 = vadd.f32 %v810, %v128
    %v817 = vadd.f32 %v811, %v128
    %v818 = vadd.f32 %v812, %v128
    %v819 = vadd.f32 %v813, %v128
    %v820 = vsel %vm553, %v814, -inf
    %821 = vmax.xlane.f32.xlu0 %v820
    %v822 = vpop.xlane.xlu0 %821
    %v823 = vsel %vm553, %v815, -inf
    %824 = vmax.xlane.f32.xlu0 %v823
    %v825 = vpop.xlane.xlu0 %824
    %v826 = vsel %vm553, %v816, -inf
    %827 = vmax.xlane.f32.xlu0 %v826
    %v828 = vpop.xlane.xlu0 %827
    %v829 = vsel %vm553, %v817, -inf
    %830 = vmax.xlane.f32.xlu0 %v829
    %v831 = vpop.xlane.xlu0 %830
    %v832 = vsel %vm553, %v818, -inf
    %833 = vmax.xlane.f32.xlu0 %v832
    %v834 = vpop.xlane.xlu0 %833
    %v835 = vsel %vm553, %v819, -inf
    %836 = vmax.xlane.f32.xlu0 %v835
    %v837 = vpop.xlane.xlu0 %836
    %v838 = vsub.f32 %v814, %v822
    %v839 = vsub.f32 %v815, %v825
    %v840 = vsub.f32 %v816, %v828
    %v841 = vsub.f32 %v817, %v831
    %v842 = vsub.f32 %v818, %v834
    %v843 = vsub.f32 %v819, %v837
    %v844 = vmul.f32 %v838, 1.442695
    %v845 = vpow.pop %v844
    %v846 = vmul.f32 %v839, 1.442695
    %v847 = vpow.pop %v846
    %v848 = vmul.f32 %v840, 1.442695
    %v849 = vpow.pop %v848
    %v850 = vmul.f32 %v841, 1.442695
    %v851 = vpow.pop %v850
    %v852 = vmul.f32 %v842, 1.442695
    %v853 = vpow.pop %v852
    %v854 = vmul.f32 %v843, 1.442695
    %v855 = vpow.pop %v854
    %v856 = vsel %vm553, %v845, 0.0
    %857 = vadd.xlane.f32.xlu0 %v856
    %v858 = vpop.xlane.xlu0 %857
    %v859 = vsel %vm553, %v847, 0.0
    %860 = vadd.xlane.f32.xlu0 %v859
    %v861 = vpop.xlane.xlu0 %860
    %v862 = vsel %vm553, %v849, 0.0
    %863 = vadd.xlane.f32.xlu0 %v862
    %v864 = vpop.xlane.xlu0 %863
    %v865 = vsel %vm553, %v851, 0.0
    %866 = vadd.xlane.f32.xlu0 %v865
    %v867 = vpop.xlane.xlu0 %866
    %v868 = vsel %vm553, %v853, 0.0
    %869 = vadd.xlane.f32.xlu0 %v868
    %v870 = vpop.xlane.xlu0 %869
    %v871 = vsel %vm553, %v855, 0.0
    %872 = vadd.xlane.f32.xlu0 %v871
    %v873 = vpop.xlane.xlu0 %872
    %v874 = vrcp.pop %v858
    %v875 = vrcp.pop %v861
    %v876 = vrcp.pop %v864
    %v877 = vrcp.pop %v867
    %v878 = vrcp.pop %v870
    %v879 = vrcp.pop %v873
    %v880 = vmul.f32 %v845, %v874
    %v881 = vmul.f32 %v847, %v875
    %v882 = vmul.f32 %v849, %v876
    %v883 = vmul.f32 %v851, %v877
    %v884 = vmul.f32 %v853, %v878
    %v885 = vmul.f32 %v855, %v879
    %886 = vrot.lane.b32.xlu0 %v429, 48
    %v887 = vpop.permute.xlu0 %886
    %888 = vrot.lane.b32.xlu0 %v432, 48
    %v889 = vpop.permute.xlu0 %888
    %890 = vrot.lane.b32.xlu0 %v435, 48
    %v891 = vpop.permute.xlu0 %890
    %v896 = vsel %vm553, %v880, 0
    %v899 = vsel %vm553, %v881, 0
    %v902 = vsel %vm553, %v882, 0
    %904 = vmatpush.msra.mxu0 0.0
    %905 = vmatpush.msra.mxu0 0.0
    %906 = vmatpush.msra.mxu0 0.0
    %907 = vmatpush.msra.mxu0 0.0
    %908 = vmatpush.msra.mxu0 0.0
    %909 = vmatpush.msra.mxu0 0.0
    %910 = vmatpush.msra.mxu0 0.0
    %911 = vmatpush.msra.mxu0 0.0
    %912 = vmatpush.msra.mxu0 0.0
    %913 = vmatpush.msra.mxu0 0.0
    %914 = vmatpush.msra.mxu0 0.0
    %915 = vmatpush.msra.mxu0 0.0
    %916 = vmatpush.msra.mxu0 0.0
    %917 = vmatpush.msra.mxu0 %v891
    %918 = vmatpush.msra.mxu0 %v889
    %919 = vmatpush.msra.mxu0 %v887
    %920 = vmatmul.f32.gmra.mxu0 %v896
    %v921 = vpop.f32.mrf.mxu0
    %v922 = vadd.f32 0.0, %v921
    %923 = vmatmul.f32.gmra.mxu0 %v899
    %v924 = vpop.f32.mrf.mxu0
    %v925 = vadd.f32 0.0, %v924
    %926 = vmatmul.f32.gmra.mxu0 %v902
    %v927 = vpop.f32.mrf.mxu0
    %v928 = vadd.f32 0.0, %v927
    %929 = vdwg.mxu0
    %930 = vrot.lane.b32.xlu0 %v438, 48
    %v931 = vpop.permute.xlu0 %930
    %932 = vrot.lane.b32.xlu0 %v441, 48
    %v933 = vpop.permute.xlu0 %932
    %934 = vrot.lane.b32.xlu0 %v444, 48
    %v935 = vpop.permute.xlu0 %934
    %v940 = vsel %vm553, %v883, 0
    %v943 = vsel %vm553, %v884, 0
    %v946 = vsel %vm553, %v885, 0
    %948 = vmatpush.msra.mxu0 0.0
    %949 = vmatpush.msra.mxu0 0.0
    %950 = vmatpush.msra.mxu0 0.0
    %951 = vmatpush.msra.mxu0 0.0
    %952 = vmatpush.msra.mxu0 0.0
    %953 = vmatpush.msra.mxu0 0.0
    %954 = vmatpush.msra.mxu0 0.0
    %955 = vmatpush.msra.mxu0 0.0
    %956 = vmatpush.msra.mxu0 0.0
    %957 = vmatpush.msra.mxu0 0.0
    %958 = vmatpush.msra.mxu0 0.0
    %959 = vmatpush.msra.mxu0 0.0
    %960 = vmatpush.msra.mxu0 0.0
    %961 = vmatpush.msra.mxu0 %v935
    %962 = vmatpush.msra.mxu0 %v933
    %963 = vmatpush.msra.mxu0 %v931
    %964 = vmatmul.f32.gmra.mxu0 %v940
    %v965 = vpop.f32.mrf.mxu0
    %v966 = vadd.f32 0.0, %v965
    %967 = vmatmul.f32.gmra.mxu0 %v943
    %v968 = vpop.f32.mrf.mxu0
    %v969 = vadd.f32 0.0, %v968
    %970 = vmatmul.f32.gmra.mxu0 %v946
    %v971 = vpop.f32.mrf.mxu0
    %v972 = vadd.f32 0.0, %v971
    %973 = vdwg.mxu0
    %980 = vrot.lane.b32.xlu0 %v922, 16
    %v981 = vpop.permute.xlu0 %980
    %982 = vrot.lane.b32.xlu0 %v925, 16
    %v983 = vpop.permute.xlu0 %982
    %984 = vrot.lane.b32.xlu0 %v928, 16
    %v985 = vpop.permute.xlu0 %984
    %986 = vrot.lane.b32.xlu0 %v966, 16
    %v987 = vpop.permute.xlu0 %986
    %988 = vrot.lane.b32.xlu0 %v969, 16
    %v989 = vpop.permute.xlu0 %988
    %990 = vrot.lane.b32.xlu0 %v972, 16
    %v991 = vpop.permute.xlu0 %990
    %v998 = vsel %vm455, %v656, %v981
    %v999 = vsel %vm455, %v659, %v983
    %v1000 = vsel %vm455, %v662, %v985
    %v1001 = vsel %vm455, %v700, %v987
    %v1002 = vsel %vm455, %v703, %v989
    %v1003 = vsel %vm455, %v706, %v991
    %v1004 = vadd.f32 %v108, %v998
    %v1005 = vadd.f32 %v111, %v999
    %v1006 = vadd.f32 %v114, %v1000
    %v1007 = vadd.f32 %v117, %v1001
    %v1008 = vadd.f32 %v120, %v1002
    %v1009 = vadd.f32 %v123, %v1003
    %v1010 = vld [vmem:[%s7] sm:$0x1]
    %v1011 = vld [vmem:[%s8] sm:$0x1]
    %v1012 = vsel %vm131, %v1004, 0.0
    %1013 = vadd.xlane.f32.xlu0 %v1012
    %v1014 = vpop.xlane.xlu0 %1013
    %v1015 = vsel %vm131, %v1005, 0.0
    %1016 = vadd.xlane.f32.xlu0 %v1015
    %v1017 = vpop.xlane.xlu0 %1016
    %v1018 = vsel %vm131, %v1006, 0.0
    %1019 = vadd.xlane.f32.xlu0 %v1018
    %v1020 = vpop.xlane.xlu0 %1019
    %v1021 = vsel %vm131, %v1007, 0.0
    %1022 = vadd.xlane.f32.xlu0 %v1021
    %v1023 = vpop.xlane.xlu0 %1022
    %v1024 = vsel %vm131, %v1008, 0.0
    %1025 = vadd.xlane.f32.xlu0 %v1024
    %v1026 = vpop.xlane.xlu0 %1025
    %v1027 = vsel %vm131, %v1009, 0.0
    %1028 = vadd.xlane.f32.xlu0 %v1027
    %v1029 = vpop.xlane.xlu0 %1028
    %v1030 = vmul.f32 %v1014, %v156
    %v1031 = vmul.f32 %v1017, %v156
    %v1032 = vmul.f32 %v1020, %v156
    %v1033 = vmul.f32 %v1023, %v156
    %v1034 = vmul.f32 %v1026, %v156
    %v1035 = vmul.f32 %v1029, %v156
    %v1036 = vsub.f32 %v1004, %v1030
    %v1037 = vsub.f32 %v1005, %v1031
    %v1038 = vsub.f32 %v1006, %v1032
    %v1039 = vsub.f32 %v1007, %v1033
    %v1040 = vsub.f32 %v1008, %v1034
    %v1041 = vsub.f32 %v1009, %v1035
    %v1042 = vmul.f32 %v1036, %v1036
    %v1043 = vmul.f32 %v1037, %v1037
    %v1044 = vmul.f32 %v1038, %v1038
    %v1045 = vmul.f32 %v1039, %v1039
    %v1046 = vmul.f32 %v1040, %v1040
    %v1047 = vmul.f32 %v1041, %v1041
    %v1048 = vsel %vm131, %v1042, 0.0
    %1049 = vadd.xlane.f32.xlu0 %v1048
    %v1050 = vpop.xlane.xlu0 %1049
    %v1051 = vsel %vm131, %v1043, 0.0
    %1052 = vadd.xlane.f32.xlu0 %v1051
    %v1053 = vpop.xlane.xlu0 %1052
    %v1054 = vsel %vm131, %v1044, 0.0
    %1055 = vadd.xlane.f32.xlu0 %v1054
    %v1056 = vpop.xlane.xlu0 %1055
    %v1057 = vsel %vm131, %v1045, 0.0
    %1058 = vadd.xlane.f32.xlu0 %v1057
    %v1059 = vpop.xlane.xlu0 %1058
    %v1060 = vsel %vm131, %v1046, 0.0
    %1061 = vadd.xlane.f32.xlu0 %v1060
    %v1062 = vpop.xlane.xlu0 %1061
    %v1063 = vsel %vm131, %v1047, 0.0
    %1064 = vadd.xlane.f32.xlu0 %v1063
    %v1065 = vpop.xlane.xlu0 %1064
    %v1066 = vmul.f32 %v1050, %v156
    %v1067 = vmul.f32 %v1053, %v156
    %v1068 = vmul.f32 %v1056, %v156
    %v1069 = vmul.f32 %v1059, %v156
    %v1070 = vmul.f32 %v1062, %v156
    %v1071 = vmul.f32 %v1065, %v156
    %v1072 = vadd.f32 %v1066, 1e-05
    %v1073 = vadd.f32 %v1067, 1e-05
    %v1074 = vadd.f32 %v1068, 1e-05
    %v1075 = vadd.f32 %v1069, 1e-05
    %v1076 = vadd.f32 %v1070, 1e-05
    %v1077 = vadd.f32 %v1071, 1e-05
    %v1078 = vrsqrt.pop %v1072
    %v1079 = vmul.f32 %v1078, %v1072
    %v1080 = vmul.f32 %v1079, %v1078
    %v1081 = vmul.f32 0.5, %v1080
    %v1082 = vsub.f32 1.5, %v1081
    %v1083 = vmul.f32 %v1078, %v1082
    %v1084 = vmul.f32 %v1072, %v1083
    %vm1085 = vcmp.eq.f32.partialorder %v1072, inf
    %v1086 = vsel %vm1085, %v1072, %v1084
    %vm1087 = vcmp.eq.f32.partialorder %v1072, 0.0
    %v1088 = vand.u32 %v1072, 2147483648
    %v1089 = vsel %vm1087, %v1088, %v1086
    %v1090 = vrsqrt.pop %v1073
    %v1091 = vmul.f32 %v1090, %v1073
    %v1092 = vmul.f32 %v1091, %v1090
    %v1093 = vmul.f32 0.5, %v1092
    %v1094 = vsub.f32 1.5, %v1093
    %v1095 = vmul.f32 %v1090, %v1094
    %v1096 = vmul.f32 %v1073, %v1095
    %vm1097 = vcmp.eq.f32.partialorder %v1073, inf
    %v1098 = vsel %vm1097, %v1073, %v1096
    %vm1099 = vcmp.eq.f32.partialorder %v1073, 0.0
    %v1100 = vand.u32 %v1073, 2147483648
    %v1101 = vsel %vm1099, %v1100, %v1098
    %v1102 = vrsqrt.pop %v1074
    %v1103 = vmul.f32 %v1102, %v1074
    %v1104 = vmul.f32 %v1103, %v1102
    %v1105 = vmul.f32 0.5, %v1104
    %v1106 = vsub.f32 1.5, %v1105
    %v1107 = vmul.f32 %v1102, %v1106
    %v1108 = vmul.f32 %v1074, %v1107
    %vm1109 = vcmp.eq.f32.partialorder %v1074, inf
    %v1110 = vsel %vm1109, %v1074, %v1108
    %vm1111 = vcmp.eq.f32.partialorder %v1074, 0.0
    %v1112 = vand.u32 %v1074, 2147483648
    %v1113 = vsel %vm1111, %v1112, %v1110
    %v1114 = vrsqrt.pop %v1075
    %v1115 = vmul.f32 %v1114, %v1075
    %v1116 = vmul.f32 %v1115, %v1114
    %v1117 = vmul.f32 0.5, %v1116
    %v1118 = vsub.f32 1.5, %v1117
    %v1119 = vmul.f32 %v1114, %v1118
    %v1120 = vmul.f32 %v1075, %v1119
    %vm1121 = vcmp.eq.f32.partialorder %v1075, inf
    %v1122 = vsel %vm1121, %v1075, %v1120
    %vm1123 = vcmp.eq.f32.partialorder %v1075, 0.0
    %v1124 = vand.u32 %v1075, 2147483648
    %v1125 = vsel %vm1123, %v1124, %v1122
    %v1126 = vrsqrt.pop %v1076
    %v1127 = vmul.f32 %v1126, %v1076
    %v1128 = vmul.f32 %v1127, %v1126
    %v1129 = vmul.f32 0.5, %v1128
    %v1130 = vsub.f32 1.5, %v1129
    %v1131 = vmul.f32 %v1126, %v1130
    %v1132 = vmul.f32 %v1076, %v1131
    %vm1133 = vcmp.eq.f32.partialorder %v1076, inf
    %v1134 = vsel %vm1133, %v1076, %v1132
    %vm1135 = vcmp.eq.f32.partialorder %v1076, 0.0
    %v1136 = vand.u32 %v1076, 2147483648
    %v1137 = vsel %vm1135, %v1136, %v1134
    %v1138 = vrsqrt.pop %v1077
    %v1139 = vmul.f32 %v1138, %v1077
    %v1140 = vmul.f32 %v1139, %v1138
    %v1141 = vmul.f32 0.5, %v1140
    %v1142 = vsub.f32 1.5, %v1141
    %v1143 = vmul.f32 %v1138, %v1142
    %v1144 = vmul.f32 %v1077, %v1143
    %vm1145 = vcmp.eq.f32.partialorder %v1077, inf
    %v1146 = vsel %vm1145, %v1077, %v1144
    %vm1147 = vcmp.eq.f32.partialorder %v1077, 0.0
    %v1148 = vand.u32 %v1077, 2147483648
    %v1149 = vsel %vm1147, %v1148, %v1146
    %v1150 = vrcp.pop %v1089
    %v1151 = vmul.f32 %v1089, %v1150
    %v1152 = vsub.f32 1.0, %v1151
    %v1153 = vmul.f32 %v1150, %v1152
    %v1154 = vadd.f32 %v1150, %v1153
    %vm1155 = vweird.f32 %v1089
    %vm1156 = vweird.f32 %v1150
    %vm1157 = vmor %vm1155, %vm1156
    %v1158 = vsel %vm1157, %v1150, %v1154
    %v1159 = vand.u32 2147483647, %v1089
    %vm1160 = vcmp.eq.f32.partialorder %v1159, 8.507059e+37
    %v1161 = vand.u32 %v1089, 2147483648
    %v1162 = vor.u32 1.1754944e-38, %v1161
    %v1163 = vsel %vm1160, %v1162, %v1158
    %v1164 = vmul.f32 %v1036, %v1163
    %v1165 = vrcp.pop %v1101
    %v1166 = vmul.f32 %v1101, %v1165
    %v1167 = vsub.f32 1.0, %v1166
    %v1168 = vmul.f32 %v1165, %v1167
    %v1169 = vadd.f32 %v1165, %v1168
    %vm1170 = vweird.f32 %v1101
    %vm1171 = vweird.f32 %v1165
    %vm1172 = vmor %vm1170, %vm1171
    %v1173 = vsel %vm1172, %v1165, %v1169
    %v1174 = vand.u32 2147483647, %v1101
    %vm1175 = vcmp.eq.f32.partialorder %v1174, 8.507059e+37
    %v1176 = vand.u32 %v1101, 2147483648
    %v1177 = vor.u32 1.1754944e-38, %v1176
    %v1178 = vsel %vm1175, %v1177, %v1173
    %v1179 = vmul.f32 %v1037, %v1178
    %v1180 = vrcp.pop %v1113
    %v1181 = vmul.f32 %v1113, %v1180
    %v1182 = vsub.f32 1.0, %v1181
    %v1183 = vmul.f32 %v1180, %v1182
    %v1184 = vadd.f32 %v1180, %v1183
    %vm1185 = vweird.f32 %v1113
    %vm1186 = vweird.f32 %v1180
    %vm1187 = vmor %vm1185, %vm1186
    %v1188 = vsel %vm1187, %v1180, %v1184
    %v1189 = vand.u32 2147483647, %v1113
    %vm1190 = vcmp.eq.f32.partialorder %v1189, 8.507059e+37
    %v1191 = vand.u32 %v1113, 2147483648
    %v1192 = vor.u32 1.1754944e-38, %v1191
    %v1193 = vsel %vm1190, %v1192, %v1188
    %v1194 = vmul.f32 %v1038, %v1193
    %v1195 = vrcp.pop %v1125
    %v1196 = vmul.f32 %v1125, %v1195
    %v1197 = vsub.f32 1.0, %v1196
    %v1198 = vmul.f32 %v1195, %v1197
    %v1199 = vadd.f32 %v1195, %v1198
    %vm1200 = vweird.f32 %v1125
    %vm1201 = vweird.f32 %v1195
    %vm1202 = vmor %vm1200, %vm1201
    %v1203 = vsel %vm1202, %v1195, %v1199
    %v1204 = vand.u32 2147483647, %v1125
    %vm1205 = vcmp.eq.f32.partialorder %v1204, 8.507059e+37
    %v1206 = vand.u32 %v1125, 2147483648
    %v1207 = vor.u32 1.1754944e-38, %v1206
    %v1208 = vsel %vm1205, %v1207, %v1203
    %v1209 = vmul.f32 %v1039, %v1208
    %v1210 = vrcp.pop %v1137
    %v1211 = vmul.f32 %v1137, %v1210
    %v1212 = vsub.f32 1.0, %v1211
    %v1213 = vmul.f32 %v1210, %v1212
    %v1214 = vadd.f32 %v1210, %v1213
    %vm1215 = vweird.f32 %v1137
    %vm1216 = vweird.f32 %v1210
    %vm1217 = vmor %vm1215, %vm1216
    %v1218 = vsel %vm1217, %v1210, %v1214
    %v1219 = vand.u32 2147483647, %v1137
    %vm1220 = vcmp.eq.f32.partialorder %v1219, 8.507059e+37
    %v1221 = vand.u32 %v1137, 2147483648
    %v1222 = vor.u32 1.1754944e-38, %v1221
    %v1223 = vsel %vm1220, %v1222, %v1218
    %v1224 = vmul.f32 %v1040, %v1223
    %v1225 = vrcp.pop %v1149
    %v1226 = vmul.f32 %v1149, %v1225
    %v1227 = vsub.f32 1.0, %v1226
    %v1228 = vmul.f32 %v1225, %v1227
    %v1229 = vadd.f32 %v1225, %v1228
    %vm1230 = vweird.f32 %v1149
    %vm1231 = vweird.f32 %v1225
    %vm1232 = vmor %vm1230, %vm1231
    %v1233 = vsel %vm1232, %v1225, %v1229
    %v1234 = vand.u32 2147483647, %v1149
    %vm1235 = vcmp.eq.f32.partialorder %v1234, 8.507059e+37
    %v1236 = vand.u32 %v1149, 2147483648
    %v1237 = vor.u32 1.1754944e-38, %v1236
    %v1238 = vsel %vm1235, %v1237, %v1233
    %v1239 = vmul.f32 %v1041, %v1238
    %v1241 = vperm.slane %v1010, 0
    %v1243 = vmul.f32 %v1164, %v1241
    %v1244 = vmul.f32 %v1179, %v1241
    %v1245 = vmul.f32 %v1194, %v1241
    %v1246 = vmul.f32 %v1209, %v1241
    %v1247 = vmul.f32 %v1224, %v1241
    %v1248 = vmul.f32 %v1239, %v1241
    %v1250 = vperm.slane %v1011, 0
    %v1252 = vadd.f32 %v1243, %v1250
    %v1253 = vadd.f32 %v1244, %v1250
    %v1254 = vadd.f32 %v1245, %v1250
    %v1255 = vadd.f32 %v1246, %v1250
    %v1256 = vadd.f32 %v1247, %v1250
    %v1257 = vadd.f32 %v1248, %v1250
    %v1258 = vld [vmem:[%s9] sm:$0xff]
    %v1259 = vld [vmem:[%s9 + $0x8] sm:$0xff]
    %v1260 = vld [vmem:[%s9 + $0x10] sm:$0xff]
    %v1261 = vld [vmem:[%s9 + $0x18] sm:$0xff]
    %v1262 = vld [vmem:[%s10] sm:$0x1]
    %v1264 = vperm.slane %v1262, 0
    %v1267 = vsel %vm131, %v1252, 0
    %v1270 = vsel %vm131, %v1253, 0
    %v1273 = vsel %vm131, %v1254, 0
    %v1276 = vsel %vm131, %v1255, 0
    %v1279 = vsel %vm131, %v1256, 0
    %v1282 = vsel %vm131, %v1257, 0
    %1284 = vmatpush.msra.mxu0 0.0
    %1285 = vmatpush.msra.mxu0 0.0
    %1286 = vmatpush.msra.mxu0 0.0
    %1287 = vmatpush.msra.mxu0 0.0
    %1288 = vmatpush.msra.mxu0 0.0
    %1289 = vmatpush.msra.mxu0 0.0
    %1290 = vmatpush.msra.mxu0 0.0
    %1291 = vmatpush.msra.mxu0 0.0
    %1292 = vmatpush.msra.mxu0 0.0
    %1293 = vmatpush.msra.mxu0 0.0
    %1294 = vmatpush.msra.mxu0 0.0
    %1295 = vmatpush.msra.mxu0 0.0
    %1296 = vmatpush.msra.mxu0 %v1261
    %1297 = vmatpush.msra.mxu0 %v1260
    %1298 = vmatpush.msra.mxu0 %v1259
    %1299 = vmatpush.msra.mxu0 %v1258
    %1300 = vmatmul.f32.gmra.mxu0 %v1267
    %v1301 = vpop.f32.mrf.mxu0
    %v1302 = vadd.f32 %v1264, %v1301
    %1303 = vmatmul.f32.gmra.mxu0 %v1270
    %v1304 = vpop.f32.mrf.mxu0
    %v1305 = vadd.f32 %v1264, %v1304
    %1306 = vmatmul.f32.gmra.mxu0 %v1273
    %v1307 = vpop.f32.mrf.mxu0
    %v1308 = vadd.f32 %v1264, %v1307
    %1309 = vmatmul.f32.gmra.mxu0 %v1276
    %v1310 = vpop.f32.mrf.mxu0
    %v1311 = vadd.f32 %v1264, %v1310
    %1312 = vmatmul.f32.gmra.mxu0 %v1279
    %v1313 = vpop.f32.mrf.mxu0
    %v1314 = vadd.f32 %v1264, %v1313
    %1315 = vmatmul.f32.gmra.mxu0 %v1282
    %v1316 = vpop.f32.mrf.mxu0
    %v1317 = vadd.f32 %v1264, %v1316
    %1318 = vdwg.mxu0
    %v1319 = vmul.f32 %v1302, 0.5
    %v1320 = vmul.f32 %v1305, 0.5
    %v1321 = vmul.f32 %v1308, 0.5
    %v1322 = vmul.f32 %v1311, 0.5
    %v1323 = vmul.f32 %v1314, 0.5
    %v1324 = vmul.f32 %v1317, 0.5
    %v1325 = vmul.f32 %v1302, 0.70710677
    %v1326 = vmul.f32 %v1305, 0.70710677
    %v1327 = vmul.f32 %v1308, 0.70710677
    %v1328 = vmul.f32 %v1311, 0.70710677
    %v1329 = vmul.f32 %v1314, 0.70710677
    %v1330 = vmul.f32 %v1317, 0.70710677
    %v1331 = vmul.f32 %v1325, %v1325
    %v1332 = vmin.f32 16.0, %v1331
    %v1333 = vmul.f32 %v1332, 2.1237322e-06
    %v1334 = vadd.f32 %v1333, 0.00028619796
    %v1335 = vmul.f32 %v1332, %v1334
    %v1336 = vadd.f32 %v1335, 0.0036580483
    %v1337 = vmul.f32 %v1332, %v1336
    %v1338 = vadd.f32 %v1337, 0.05243302
    %v1339 = vmul.f32 %v1332, %v1338
    %v1340 = vadd.f32 %v1339, 0.18741608
    %v1341 = vmul.f32 %v1332, %v1340
    %v1342 = vadd.f32 %v1341, 1.1283791
    %v1343 = vmul.f32 %v1325, %v1342
    %v1344 = vmul.f32 %v1332, 3.8918573e-05
    %v1345 = vadd.f32 %v1344, 0.001143296
    %v1346 = vmul.f32 %v1332, %v1345
    %v1347 = vadd.f32 %v1346, 0.014752088
    %v1348 = vmul.f32 %v1332, %v1347
    %v1349 = vadd.f32 %v1348, 0.112945676
    %v1350 = vmul.f32 %v1332, %v1349
    %v1351 = vadd.f32 %v1350, 0.4994258
    %v1352 = vmul.f32 %v1332, %v1351
    %v1353 = vadd.f32 %v1352, 1.0
    %v1354 = vrcp.pop %v1353
    %v1355 = vmul.f32 %v1353, %v1354
    %v1356 = vsub.f32 1.0, %v1355
    %v1357 = vmul.f32 %v1354, %v1356
    %v1358 = vadd.f32 %v1354, %v1357
    %vm1359 = vweird.f32 %v1353
    %vm1360 = vweird.f32 %v1354
    %vm1361 = vmor %vm1359, %vm1360
    %v1362 = vsel %vm1361, %v1354, %v1358
    %v1363 = vand.u32 2147483647, %v1353
    %vm1364 = vcmp.eq.f32.partialorder %v1363, 8.507059e+37
    %v1365 = vand.u32 %v1353, 2147483648
    %v1366 = vor.u32 1.1754944e-38, %v1365
    %v1367 = vsel %vm1364, %v1366, %v1362
    %v1368 = vmul.f32 %v1343, %v1367
    %v1369 = vmin.f32 %v1368, 1.0
    %v1370 = vmax.f32 %v1369, -1.0
    %v1371 = vmul.f32 %v1326, %v1326
    %v1372 = vmin.f32 16.0, %v1371
    %v1373 = vmul.f32 %v1372, 2.1237322e-06
    %v1374 = vadd.f32 %v1373, 0.00028619796
    %v1375 = vmul.f32 %v1372, %v1374
    %v1376 = vadd.f32 %v1375, 0.0036580483
    %v1377 = vmul.f32 %v1372, %v1376
    %v1378 = vadd.f32 %v1377, 0.05243302
    %v1379 = vmul.f32 %v1372, %v1378
    %v1380 = vadd.f32 %v1379, 0.18741608
    %v1381 = vmul.f32 %v1372, %v1380
    %v1382 = vadd.f32 %v1381, 1.1283791
    %v1383 = vmul.f32 %v1326, %v1382
    %v1384 = vmul.f32 %v1372, 3.8918573e-05
    %v1385 = vadd.f32 %v1384, 0.001143296
    %v1386 = vmul.f32 %v1372, %v1385
    %v1387 = vadd.f32 %v1386, 0.014752088
    %v1388 = vmul.f32 %v1372, %v1387
    %v1389 = vadd.f32 %v1388, 0.112945676
    %v1390 = vmul.f32 %v1372, %v1389
    %v1391 = vadd.f32 %v1390, 0.4994258
    %v1392 = vmul.f32 %v1372, %v1391
    %v1393 = vadd.f32 %v1392, 1.0
    %v1394 = vrcp.pop %v1393
    %v1395 = vmul.f32 %v1393, %v1394
    %v1396 = vsub.f32 1.0, %v1395
    %v1397 = vmul.f32 %v1394, %v1396
    %v1398 = vadd.f32 %v1394, %v1397
    %vm1399 = vweird.f32 %v1393
    %vm1400 = vweird.f32 %v1394
    %vm1401 = vmor %vm1399, %vm1400
    %v1402 = vsel %vm1401, %v1394, %v1398
    %v1403 = vand.u32 2147483647, %v1393
    %vm1404 = vcmp.eq.f32.partialorder %v1403, 8.507059e+37
    %v1405 = vand.u32 %v1393, 2147483648
    %v1406 = vor.u32 1.1754944e-38, %v1405
    %v1407 = vsel %vm1404, %v1406, %v1402
    %v1408 = vmul.f32 %v1383, %v1407
    %v1409 = vmin.f32 %v1408, 1.0
    %v1410 = vmax.f32 %v1409, -1.0
    %v1411 = vmul.f32 %v1327, %v1327
    %v1412 = vmin.f32 16.0, %v1411
    %v1413 = vmul.f32 %v1412, 2.1237322e-06
    %v1414 = vadd.f32 %v1413, 0.00028619796
    %v1415 = vmul.f32 %v1412, %v1414
    %v1416 = vadd.f32 %v1415, 0.0036580483
    %v1417 = vmul.f32 %v1412, %v1416
    %v1418 = vadd.f32 %v1417, 0.05243302
    %v1419 = vmul.f32 %v1412, %v1418
    %v1420 = vadd.f32 %v1419, 0.18741608
    %v1421 = vmul.f32 %v1412, %v1420
    %v1422 = vadd.f32 %v1421, 1.1283791
    %v1423 = vmul.f32 %v1327, %v1422
    %v1424 = vmul.f32 %v1412, 3.8918573e-05
    %v1425 = vadd.f32 %v1424, 0.001143296
    %v1426 = vmul.f32 %v1412, %v1425
    %v1427 = vadd.f32 %v1426, 0.014752088
    %v1428 = vmul.f32 %v1412, %v1427
    %v1429 = vadd.f32 %v1428, 0.112945676
    %v1430 = vmul.f32 %v1412, %v1429
    %v1431 = vadd.f32 %v1430, 0.4994258
    %v1432 = vmul.f32 %v1412, %v1431
    %v1433 = vadd.f32 %v1432, 1.0
    %v1434 = vrcp.pop %v1433
    %v1435 = vmul.f32 %v1433, %v1434
    %v1436 = vsub.f32 1.0, %v1435
    %v1437 = vmul.f32 %v1434, %v1436
    %v1438 = vadd.f32 %v1434, %v1437
    %vm1439 = vweird.f32 %v1433
    %vm1440 = vweird.f32 %v1434
    %vm1441 = vmor %vm1439, %vm1440
    %v1442 = vsel %vm1441, %v1434, %v1438
    %v1443 = vand.u32 2147483647, %v1433
    %vm1444 = vcmp.eq.f32.partialorder %v1443, 8.507059e+37
    %v1445 = vand.u32 %v1433, 2147483648
    %v1446 = vor.u32 1.1754944e-38, %v1445
    %v1447 = vsel %vm1444, %v1446, %v1442
    %v1448 = vmul.f32 %v1423, %v1447
    %v1449 = vmin.f32 %v1448, 1.0
    %v1450 = vmax.f32 %v1449, -1.0
    %v1451 = vmul.f32 %v1328, %v1328
    %v1452 = vmin.f32 16.0, %v1451
    %v1453 = vmul.f32 %v1452, 2.1237322e-06
    %v1454 = vadd.f32 %v1453, 0.00028619796
    %v1455 = vmul.f32 %v1452, %v1454
    %v1456 = vadd.f32 %v1455, 0.0036580483
    %v1457 = vmul.f32 %v1452, %v1456
    %v1458 = vadd.f32 %v1457, 0.05243302
    %v1459 = vmul.f32 %v1452, %v1458
    %v1460 = vadd.f32 %v1459, 0.18741608
    %v1461 = vmul.f32 %v1452, %v1460
    %v1462 = vadd.f32 %v1461, 1.1283791
    %v1463 = vmul.f32 %v1328, %v1462
    %v1464 = vmul.f32 %v1452, 3.8918573e-05
    %v1465 = vadd.f32 %v1464, 0.001143296
    %v1466 = vmul.f32 %v1452, %v1465
    %v1467 = vadd.f32 %v1466, 0.014752088
    %v1468 = vmul.f32 %v1452, %v1467
    %v1469 = vadd.f32 %v1468, 0.112945676
    %v1470 = vmul.f32 %v1452, %v1469
    %v1471 = vadd.f32 %v1470, 0.4994258
    %v1472 = vmul.f32 %v1452, %v1471
    %v1473 = vadd.f32 %v1472, 1.0
    %v1474 = vrcp.pop %v1473
    %v1475 = vmul.f32 %v1473, %v1474
    %v1476 = vsub.f32 1.0, %v1475
    %v1477 = vmul.f32 %v1474, %v1476
    %v1478 = vadd.f32 %v1474, %v1477
    %vm1479 = vweird.f32 %v1473
    %vm1480 = vweird.f32 %v1474
    %vm1481 = vmor %vm1479, %vm1480
    %v1482 = vsel %vm1481, %v1474, %v1478
    %v1483 = vand.u32 2147483647, %v1473
    %vm1484 = vcmp.eq.f32.partialorder %v1483, 8.507059e+37
    %v1485 = vand.u32 %v1473, 2147483648
    %v1486 = vor.u32 1.1754944e-38, %v1485
    %v1487 = vsel %vm1484, %v1486, %v1482
    %v1488 = vmul.f32 %v1463, %v1487
    %v1489 = vmin.f32 %v1488, 1.0
    %v1490 = vmax.f32 %v1489, -1.0
    %v1491 = vmul.f32 %v1329, %v1329
    %v1492 = vmin.f32 16.0, %v1491
    %v1493 = vmul.f32 %v1492, 2.1237322e-06
    %v1494 = vadd.f32 %v1493, 0.00028619796
    %v1495 = vmul.f32 %v1492, %v1494
    %v1496 = vadd.f32 %v1495, 0.0036580483
    %v1497 = vmul.f32 %v1492, %v1496
    %v1498 = vadd.f32 %v1497, 0.05243302
    %v1499 = vmul.f32 %v1492, %v1498
    %v1500 = vadd.f32 %v1499, 0.18741608
    %v1501 = vmul.f32 %v1492, %v1500
    %v1502 = vadd.f32 %v1501, 1.1283791
    %v1503 = vmul.f32 %v1329, %v1502
    %v1504 = vmul.f32 %v1492, 3.8918573e-05
    %v1505 = vadd.f32 %v1504, 0.001143296
    %v1506 = vmul.f32 %v1492, %v1505
    %v1507 = vadd.f32 %v1506, 0.014752088
    %v1508 = vmul.f32 %v1492, %v1507
    %v1509 = vadd.f32 %v1508, 0.112945676
    %v1510 = vmul.f32 %v1492, %v1509
    %v1511 = vadd.f32 %v1510, 0.4994258
    %v1512 = vmul.f32 %v1492, %v1511
    %v1513 = vadd.f32 %v1512, 1.0
    %v1514 = vrcp.pop %v1513
    %v1515 = vmul.f32 %v1513, %v1514
    %v1516 = vsub.f32 1.0, %v1515
    %v1517 = vmul.f32 %v1514, %v1516
    %v1518 = vadd.f32 %v1514, %v1517
    %vm1519 = vweird.f32 %v1513
    %vm1520 = vweird.f32 %v1514
    %vm1521 = vmor %vm1519, %vm1520
    %v1522 = vsel %vm1521, %v1514, %v1518
    %v1523 = vand.u32 2147483647, %v1513
    %vm1524 = vcmp.eq.f32.partialorder %v1523, 8.507059e+37
    %v1525 = vand.u32 %v1513, 2147483648
    %v1526 = vor.u32 1.1754944e-38, %v1525
    %v1527 = vsel %vm1524, %v1526, %v1522
    %v1528 = vmul.f32 %v1503, %v1527
    %v1529 = vmin.f32 %v1528, 1.0
    %v1530 = vmax.f32 %v1529, -1.0
    %v1531 = vmul.f32 %v1330, %v1330
    %v1532 = vmin.f32 16.0, %v1531
    %v1533 = vmul.f32 %v1532, 2.1237322e-06
    %v1534 = vadd.f32 %v1533, 0.00028619796
    %v1535 = vmul.f32 %v1532, %v1534
    %v1536 = vadd.f32 %v1535, 0.0036580483
    %v1537 = vmul.f32 %v1532, %v1536
    %v1538 = vadd.f32 %v1537, 0.05243302
    %v1539 = vmul.f32 %v1532, %v1538
    %v1540 = vadd.f32 %v1539, 0.18741608
    %v1541 = vmul.f32 %v1532, %v1540
    %v1542 = vadd.f32 %v1541, 1.1283791
    %v1543 = vmul.f32 %v1330, %v1542
    %v1544 = vmul.f32 %v1532, 3.8918573e-05
    %v1545 = vadd.f32 %v1544, 0.001143296
    %v1546 = vmul.f32 %v1532, %v1545
    %v1547 = vadd.f32 %v1546, 0.014752088
    %v1548 = vmul.f32 %v1532, %v1547
    %v1549 = vadd.f32 %v1548, 0.112945676
    %v1550 = vmul.f32 %v1532, %v1549
    %v1551 = vadd.f32 %v1550, 0.4994258
    %v1552 = vmul.f32 %v1532, %v1551
    %v1553 = vadd.f32 %v1552, 1.0
    %v1554 = vrcp.pop %v1553
    %v1555 = vmul.f32 %v1553, %v1554
    %v1556 = vsub.f32 1.0, %v1555
    %v1557 = vmul.f32 %v1554, %v1556
    %v1558 = vadd.f32 %v1554, %v1557
    %vm1559 = vweird.f32 %v1553
    %vm1560 = vweird.f32 %v1554
    %vm1561 = vmor %vm1559, %vm1560
    %v1562 = vsel %vm1561, %v1554, %v1558
    %v1563 = vand.u32 2147483647, %v1553
    %vm1564 = vcmp.eq.f32.partialorder %v1563, 8.507059e+37
    %v1565 = vand.u32 %v1553, 2147483648
    %v1566 = vor.u32 1.1754944e-38, %v1565
    %v1567 = vsel %vm1564, %v1566, %v1562
    %v1568 = vmul.f32 %v1543, %v1567
    %v1569 = vmin.f32 %v1568, 1.0
    %v1570 = vmax.f32 %v1569, -1.0
    %v1571 = vadd.f32 %v1370, 1.0
    %v1572 = vadd.f32 %v1410, 1.0
    %v1573 = vadd.f32 %v1450, 1.0
    %v1574 = vadd.f32 %v1490, 1.0
    %v1575 = vadd.f32 %v1530, 1.0
    %v1576 = vadd.f32 %v1570, 1.0
    %v1577 = vmul.f32 %v1319, %v1571
    %v1578 = vmul.f32 %v1320, %v1572
    %v1579 = vmul.f32 %v1321, %v1573
    %v1580 = vmul.f32 %v1322, %v1574
    %v1581 = vmul.f32 %v1323, %v1575
    %v1582 = vmul.f32 %v1324, %v1576
    %v1583 = vld [vmem:[%s11] sm:$0xff]
    %v1584 = vld [vmem:[%s11 + $0x8] sm:$0xff]
    %v1585 = vld [vmem:[%s11 + $0x10] sm:$0xff]
    %v1586 = vld [vmem:[%s11 + $0x18] sm:$0xff]
    %v1587 = vld [vmem:[%s11 + $0x20] sm:$0xff]
    %v1588 = vld [vmem:[%s11 + $0x28] sm:$0xff]
    %v1589 = vld [vmem:[%s11 + $0x30] sm:$0xff]
    %v1590 = vld [vmem:[%s11 + $0x38] sm:$0xff]
    %v1591 = vld [vmem:[%s11 + $0x40] sm:$0xff]
    %v1592 = vld [vmem:[%s11 + $0x48] sm:$0xff]
    %v1593 = vld [vmem:[%s11 + $0x50] sm:$0xff]
    %v1594 = vld [vmem:[%s11 + $0x58] sm:$0xff]
    %v1595 = vld [vmem:[%s11 + $0x60] sm:$0xff]
    %v1596 = vld [vmem:[%s11 + $0x68] sm:$0xff]
    %v1597 = vld [vmem:[%s11 + $0x70] sm:$0xff]
    %v1598 = vld [vmem:[%s11 + $0x78] sm:$0xff]
    %1599 = vmatpush.msra.mxu0 %v1598
    %1600 = vmatpush.msra.mxu0 %v1597
    %1601 = vmatpush.msra.mxu0 %v1596
    %1602 = vmatpush.msra.mxu0 %v1595
    %1603 = vmatpush.msra.mxu0 %v1594
    %1604 = vmatpush.msra.mxu0 %v1593
    %1605 = vmatpush.msra.mxu0 %v1592
    %1606 = vmatpush.msra.mxu0 %v1591
    %1607 = vmatpush.msra.mxu0 %v1590
    %1608 = vmatpush.msra.mxu0 %v1589
    %1609 = vmatpush.msra.mxu0 %v1588
    %1610 = vmatpush.msra.mxu0 %v1587
    %1611 = vmatpush.msra.mxu0 %v1586
    %1612 = vmatpush.msra.mxu0 %v1585
    %1613 = vmatpush.msra.mxu0 %v1584
    %1614 = vmatpush.msra.mxu0 %v1583
    %1615 = vmatmul.f32.gmra.mxu0 %v1577
    %v1616 = vpop.f32.mrf.mxu0
    %v1617 = vadd.f32 0.0, %v1616
    %1618 = vmatmul.f32.gmra.mxu0 %v1578
    %v1619 = vpop.f32.mrf.mxu0
    %v1620 = vadd.f32 0.0, %v1619
    %1621 = vmatmul.f32.gmra.mxu0 %v1579
    %v1622 = vpop.f32.mrf.mxu0
    %v1623 = vadd.f32 0.0, %v1622
    %1624 = vmatmul.f32.gmra.mxu0 %v1580
    %v1625 = vpop.f32.mrf.mxu0
    %v1626 = vadd.f32 0.0, %v1625
    %1627 = vmatmul.f32.gmra.mxu0 %v1581
    %v1628 = vpop.f32.mrf.mxu0
    %v1629 = vadd.f32 0.0, %v1628
    %1630 = vmatmul.f32.gmra.mxu0 %v1582
    %v1631 = vpop.f32.mrf.mxu0
    %v1632 = vadd.f32 0.0, %v1631
    %1633 = vdwg.mxu0
    %v1634 = vadd.f32 %v1004, %v1617
    %v1635 = vadd.f32 %v1005, %v1620
    %v1636 = vadd.f32 %v1006, %v1623
    %v1637 = vadd.f32 %v1007, %v1626
    %v1638 = vadd.f32 %v1008, %v1629
    %v1639 = vadd.f32 %v1009, %v1632
    %v1640 = vld [vmem:[%s12] sm:$0x1]
    %v1642 = vperm.slane %v1640, 0
    %v1644 = vadd.f32 %v1634, %v1642
    %v1645 = vadd.f32 %v1635, %v1642
    %v1646 = vadd.f32 %v1636, %v1642
    %v1647 = vadd.f32 %v1637, %v1642
    %v1648 = vadd.f32 %v1638, %v1642
    %v1649 = vadd.f32 %v1639, %v1642
    %s1650 = scalar_lea.vmem %s3, 1
    %v1651 = vld [vmem:[%s1650] sm:$0x1]
    %s1652 = scalar_lea.vmem %s4, 1
    %v1653 = vld [vmem:[%s1652] sm:$0x1]
    %v1654 = vsel %vm131, %v1644, 0.0
    %1655 = vadd.xlane.f32.xlu0 %v1654
    %v1656 = vpop.xlane.xlu0 %1655
    %v1657 = vsel %vm131, %v1645, 0.0
    %1658 = vadd.xlane.f32.xlu0 %v1657
    %v1659 = vpop.xlane.xlu0 %1658
    %v1660 = vsel %vm131, %v1646, 0.0
    %1661 = vadd.xlane.f32.xlu0 %v1660
    %v1662 = vpop.xlane.xlu0 %1661
    %v1663 = vsel %vm131, %v1647, 0.0
    %1664 = vadd.xlane.f32.xlu0 %v1663
    %v1665 = vpop.xlane.xlu0 %1664
    %v1666 = vsel %vm131, %v1648, 0.0
    %1667 = vadd.xlane.f32.xlu0 %v1666
    %v1668 = vpop.xlane.xlu0 %1667
    %v1669 = vsel %vm131, %v1649, 0.0
    %1670 = vadd.xlane.f32.xlu0 %v1669
    %v1671 = vpop.xlane.xlu0 %1670
    %v1672 = vmul.f32 %v1656, %v156
    %v1673 = vmul.f32 %v1659, %v156
    %v1674 = vmul.f32 %v1662, %v156
    %v1675 = vmul.f32 %v1665, %v156
    %v1676 = vmul.f32 %v1668, %v156
    %v1677 = vmul.f32 %v1671, %v156
    %v1678 = vsub.f32 %v1644, %v1672
    %v1679 = vsub.f32 %v1645, %v1673
    %v1680 = vsub.f32 %v1646, %v1674
    %v1681 = vsub.f32 %v1647, %v1675
    %v1682 = vsub.f32 %v1648, %v1676
    %v1683 = vsub.f32 %v1649, %v1677
    %v1684 = vmul.f32 %v1678, %v1678
    %v1685 = vmul.f32 %v1679, %v1679
    %v1686 = vmul.f32 %v1680, %v1680
    %v1687 = vmul.f32 %v1681, %v1681
    %v1688 = vmul.f32 %v1682, %v1682
    %v1689 = vmul.f32 %v1683, %v1683
    %v1690 = vsel %vm131, %v1684, 0.0
    %1691 = vadd.xlane.f32.xlu0 %v1690
    %v1692 = vpop.xlane.xlu0 %1691
    %v1693 = vsel %vm131, %v1685, 0.0
    %1694 = vadd.xlane.f32.xlu0 %v1693
    %v1695 = vpop.xlane.xlu0 %1694
    %v1696 = vsel %vm131, %v1686, 0.0
    %1697 = vadd.xlane.f32.xlu0 %v1696
    %v1698 = vpop.xlane.xlu0 %1697
    %v1699 = vsel %vm131, %v1687, 0.0
    %1700 = vadd.xlane.f32.xlu0 %v1699
    %v1701 = vpop.xlane.xlu0 %1700
    %v1702 = vsel %vm131, %v1688, 0.0
    %1703 = vadd.xlane.f32.xlu0 %v1702
    %v1704 = vpop.xlane.xlu0 %1703
    %v1705 = vsel %vm131, %v1689, 0.0
    %1706 = vadd.xlane.f32.xlu0 %v1705
    %v1707 = vpop.xlane.xlu0 %1706
    %v1708 = vmul.f32 %v1692, %v156
    %v1709 = vmul.f32 %v1695, %v156
    %v1710 = vmul.f32 %v1698, %v156
    %v1711 = vmul.f32 %v1701, %v156
    %v1712 = vmul.f32 %v1704, %v156
    %v1713 = vmul.f32 %v1707, %v156
    %v1714 = vadd.f32 %v1708, 1e-05
    %v1715 = vadd.f32 %v1709, 1e-05
    %v1716 = vadd.f32 %v1710, 1e-05
    %v1717 = vadd.f32 %v1711, 1e-05
    %v1718 = vadd.f32 %v1712, 1e-05
    %v1719 = vadd.f32 %v1713, 1e-05
    %v1720 = vrsqrt.pop %v1714
    %v1721 = vmul.f32 %v1720, %v1714
    %v1722 = vmul.f32 %v1721, %v1720
    %v1723 = vmul.f32 0.5, %v1722
    %v1724 = vsub.f32 1.5, %v1723
    %v1725 = vmul.f32 %v1720, %v1724
    %v1726 = vmul.f32 %v1714, %v1725
    %vm1727 = vcmp.eq.f32.partialorder %v1714, inf
    %v1728 = vsel %vm1727, %v1714, %v1726
    %vm1729 = vcmp.eq.f32.partialorder %v1714, 0.0
    %v1730 = vand.u32 %v1714, 2147483648
    %v1731 = vsel %vm1729, %v1730, %v1728
    %v1732 = vrsqrt.pop %v1715
    %v1733 = vmul.f32 %v1732, %v1715
    %v1734 = vmul.f32 %v1733, %v1732
    %v1735 = vmul.f32 0.5, %v1734
    %v1736 = vsub.f32 1.5, %v1735
    %v1737 = vmul.f32 %v1732, %v1736
    %v1738 = vmul.f32 %v1715, %v1737
    %vm1739 = vcmp.eq.f32.partialorder %v1715, inf
    %v1740 = vsel %vm1739, %v1715, %v1738
    %vm1741 = vcmp.eq.f32.partialorder %v1715, 0.0
    %v1742 = vand.u32 %v1715, 2147483648
    %v1743 = vsel %vm1741, %v1742, %v1740
    %v1744 = vrsqrt.pop %v1716
    %v1745 = vmul.f32 %v1744, %v1716
    %v1746 = vmul.f32 %v1745, %v1744
    %v1747 = vmul.f32 0.5, %v1746
    %v1748 = vsub.f32 1.5, %v1747
    %v1749 = vmul.f32 %v1744, %v1748
    %v1750 = vmul.f32 %v1716, %v1749
    %vm1751 = vcmp.eq.f32.partialorder %v1716, inf
    %v1752 = vsel %vm1751, %v1716, %v1750
    %vm1753 = vcmp.eq.f32.partialorder %v1716, 0.0
    %v1754 = vand.u32 %v1716, 2147483648
    %v1755 = vsel %vm1753, %v1754, %v1752
    %v1756 = vrsqrt.pop %v1717
    %v1757 = vmul.f32 %v1756, %v1717
    %v1758 = vmul.f32 %v1757, %v1756
    %v1759 = vmul.f32 0.5, %v1758
    %v1760 = vsub.f32 1.5, %v1759
    %v1761 = vmul.f32 %v1756, %v1760
    %v1762 = vmul.f32 %v1717, %v1761
    %vm1763 = vcmp.eq.f32.partialorder %v1717, inf
    %v1764 = vsel %vm1763, %v1717, %v1762
    %vm1765 = vcmp.eq.f32.partialorder %v1717, 0.0
    %v1766 = vand.u32 %v1717, 2147483648
    %v1767 = vsel %vm1765, %v1766, %v1764
    %v1768 = vrsqrt.pop %v1718
    %v1769 = vmul.f32 %v1768, %v1718
    %v1770 = vmul.f32 %v1769, %v1768
    %v1771 = vmul.f32 0.5, %v1770
    %v1772 = vsub.f32 1.5, %v1771
    %v1773 = vmul.f32 %v1768, %v1772
    %v1774 = vmul.f32 %v1718, %v1773
    %vm1775 = vcmp.eq.f32.partialorder %v1718, inf
    %v1776 = vsel %vm1775, %v1718, %v1774
    %vm1777 = vcmp.eq.f32.partialorder %v1718, 0.0
    %v1778 = vand.u32 %v1718, 2147483648
    %v1779 = vsel %vm1777, %v1778, %v1776
    %v1780 = vrsqrt.pop %v1719
    %v1781 = vmul.f32 %v1780, %v1719
    %v1782 = vmul.f32 %v1781, %v1780
    %v1783 = vmul.f32 0.5, %v1782
    %v1784 = vsub.f32 1.5, %v1783
    %v1785 = vmul.f32 %v1780, %v1784
    %v1786 = vmul.f32 %v1719, %v1785
    %vm1787 = vcmp.eq.f32.partialorder %v1719, inf
    %v1788 = vsel %vm1787, %v1719, %v1786
    %vm1789 = vcmp.eq.f32.partialorder %v1719, 0.0
    %v1790 = vand.u32 %v1719, 2147483648
    %v1791 = vsel %vm1789, %v1790, %v1788
    %v1792 = vrcp.pop %v1731
    %v1793 = vmul.f32 %v1731, %v1792
    %v1794 = vsub.f32 1.0, %v1793
    %v1795 = vmul.f32 %v1792, %v1794
    %v1796 = vadd.f32 %v1792, %v1795
    %vm1797 = vweird.f32 %v1731
    %vm1798 = vweird.f32 %v1792
    %vm1799 = vmor %vm1797, %vm1798
    %v1800 = vsel %vm1799, %v1792, %v1796
    %v1801 = vand.u32 2147483647, %v1731
    %vm1802 = vcmp.eq.f32.partialorder %v1801, 8.507059e+37
    %v1803 = vand.u32 %v1731, 2147483648
    %v1804 = vor.u32 1.1754944e-38, %v1803
    %v1805 = vsel %vm1802, %v1804, %v1800
    %v1806 = vmul.f32 %v1678, %v1805
    %v1807 = vrcp.pop %v1743
    %v1808 = vmul.f32 %v1743, %v1807
    %v1809 = vsub.f32 1.0, %v1808
    %v1810 = vmul.f32 %v1807, %v1809
    %v1811 = vadd.f32 %v1807, %v1810
    %vm1812 = vweird.f32 %v1743
    %vm1813 = vweird.f32 %v1807
    %vm1814 = vmor %vm1812, %vm1813
    %v1815 = vsel %vm1814, %v1807, %v1811
    %v1816 = vand.u32 2147483647, %v1743
    %vm1817 = vcmp.eq.f32.partialorder %v1816, 8.507059e+37
    %v1818 = vand.u32 %v1743, 2147483648
    %v1819 = vor.u32 1.1754944e-38, %v1818
    %v1820 = vsel %vm1817, %v1819, %v1815
    %v1821 = vmul.f32 %v1679, %v1820
    %v1822 = vrcp.pop %v1755
    %v1823 = vmul.f32 %v1755, %v1822
    %v1824 = vsub.f32 1.0, %v1823
    %v1825 = vmul.f32 %v1822, %v1824
    %v1826 = vadd.f32 %v1822, %v1825
    %vm1827 = vweird.f32 %v1755
    %vm1828 = vweird.f32 %v1822
    %vm1829 = vmor %vm1827, %vm1828
    %v1830 = vsel %vm1829, %v1822, %v1826
    %v1831 = vand.u32 2147483647, %v1755
    %vm1832 = vcmp.eq.f32.partialorder %v1831, 8.507059e+37
    %v1833 = vand.u32 %v1755, 2147483648
    %v1834 = vor.u32 1.1754944e-38, %v1833
    %v1835 = vsel %vm1832, %v1834, %v1830
    %v1836 = vmul.f32 %v1680, %v1835
    %v1837 = vrcp.pop %v1767
    %v1838 = vmul.f32 %v1767, %v1837
    %v1839 = vsub.f32 1.0, %v1838
    %v1840 = vmul.f32 %v1837, %v1839
    %v1841 = vadd.f32 %v1837, %v1840
    %vm1842 = vweird.f32 %v1767
    %vm1843 = vweird.f32 %v1837
    %vm1844 = vmor %vm1842, %vm1843
    %v1845 = vsel %vm1844, %v1837, %v1841
    %v1846 = vand.u32 2147483647, %v1767
    %vm1847 = vcmp.eq.f32.partialorder %v1846, 8.507059e+37
    %v1848 = vand.u32 %v1767, 2147483648
    %v1849 = vor.u32 1.1754944e-38, %v1848
    %v1850 = vsel %vm1847, %v1849, %v1845
    %v1851 = vmul.f32 %v1681, %v1850
    %v1852 = vrcp.pop %v1779
    %v1853 = vmul.f32 %v1779, %v1852
    %v1854 = vsub.f32 1.0, %v1853
    %v1855 = vmul.f32 %v1852, %v1854
    %v1856 = vadd.f32 %v1852, %v1855
    %vm1857 = vweird.f32 %v1779
    %vm1858 = vweird.f32 %v1852
    %vm1859 = vmor %vm1857, %vm1858
    %v1860 = vsel %vm1859, %v1852, %v1856
    %v1861 = vand.u32 2147483647, %v1779
    %vm1862 = vcmp.eq.f32.partialorder %v1861, 8.507059e+37
    %v1863 = vand.u32 %v1779, 2147483648
    %v1864 = vor.u32 1.1754944e-38, %v1863
    %v1865 = vsel %vm1862, %v1864, %v1860
    %v1866 = vmul.f32 %v1682, %v1865
    %v1867 = vrcp.pop %v1791
    %v1868 = vmul.f32 %v1791, %v1867
    %v1869 = vsub.f32 1.0, %v1868
    %v1870 = vmul.f32 %v1867, %v1869
    %v1871 = vadd.f32 %v1867, %v1870
    %vm1872 = vweird.f32 %v1791
    %vm1873 = vweird.f32 %v1867
    %vm1874 = vmor %vm1872, %vm1873
    %v1875 = vsel %vm1874, %v1867, %v1871
    %v1876 = vand.u32 2147483647, %v1791
    %vm1877 = vcmp.eq.f32.partialorder %v1876, 8.507059e+37
    %v1878 = vand.u32 %v1791, 2147483648
    %v1879 = vor.u32 1.1754944e-38, %v1878
    %v1880 = vsel %vm1877, %v1879, %v1875
    %v1881 = vmul.f32 %v1683, %v1880
    %v1883 = vperm.slane %v1651, 0
    %v1885 = vmul.f32 %v1806, %v1883
    %v1886 = vmul.f32 %v1821, %v1883
    %v1887 = vmul.f32 %v1836, %v1883
    %v1888 = vmul.f32 %v1851, %v1883
    %v1889 = vmul.f32 %v1866, %v1883
    %v1890 = vmul.f32 %v1881, %v1883
    %v1892 = vperm.slane %v1653, 0
    %v1894 = vadd.f32 %v1885, %v1892
    %v1895 = vadd.f32 %v1886, %v1892
    %v1896 = vadd.f32 %v1887, %v1892
    %v1897 = vadd.f32 %v1888, %v1892
    %v1898 = vadd.f32 %v1889, %v1892
    %v1899 = vadd.f32 %v1890, %v1892
    %s1900 = scalar_lea.vmem %s5, 32
    %v1901 = vld [vmem:[%s1900] sm:$0xff]
    %v1902 = vld [vmem:[%s1900 + $0x8] sm:$0xff]
    %v1903 = vld [vmem:[%s1900 + $0x10] sm:$0xff]
    %v1904 = vld [vmem:[%s1900 + $0x18] sm:$0xff]
    %s1905 = scalar_lea.vmem %s6, 1
    %v1906 = vld [vmem:[%s1905] sm:$0x1]
    %v1908 = vperm.slane %v1906, 0
    %v1911 = vsel %vm131, %v1894, 0
    %v1914 = vsel %vm131, %v1895, 0
    %v1917 = vsel %vm131, %v1896, 0
    %v1920 = vsel %vm131, %v1897, 0
    %v1923 = vsel %vm131, %v1898, 0
    %v1926 = vsel %vm131, %v1899, 0
    %1928 = vmatpush.msra.mxu0 0.0
    %1929 = vmatpush.msra.mxu0 0.0
    %1930 = vmatpush.msra.mxu0 0.0
    %1931 = vmatpush.msra.mxu0 0.0
    %1932 = vmatpush.msra.mxu0 0.0
    %1933 = vmatpush.msra.mxu0 0.0
    %1934 = vmatpush.msra.mxu0 0.0
    %1935 = vmatpush.msra.mxu0 0.0
    %1936 = vmatpush.msra.mxu0 0.0
    %1937 = vmatpush.msra.mxu0 0.0
    %1938 = vmatpush.msra.mxu0 0.0
    %1939 = vmatpush.msra.mxu0 0.0
    %1940 = vmatpush.msra.mxu0 %v1904
    %1941 = vmatpush.msra.mxu0 %v1903
    %1942 = vmatpush.msra.mxu0 %v1902
    %1943 = vmatpush.msra.mxu0 %v1901
    %1944 = vmatmul.f32.gmra.mxu0 %v1911
    %v1945 = vpop.f32.mrf.mxu0
    %v1946 = vadd.f32 %v1908, %v1945
    %1947 = vmatmul.f32.gmra.mxu0 %v1914
    %v1948 = vpop.f32.mrf.mxu0
    %v1949 = vadd.f32 %v1908, %v1948
    %1950 = vmatmul.f32.gmra.mxu0 %v1917
    %v1951 = vpop.f32.mrf.mxu0
    %v1952 = vadd.f32 %v1908, %v1951
    %1953 = vmatmul.f32.gmra.mxu0 %v1920
    %v1954 = vpop.f32.mrf.mxu0
    %v1955 = vadd.f32 %v1908, %v1954
    %1956 = vmatmul.f32.gmra.mxu0 %v1923
    %v1957 = vpop.f32.mrf.mxu0
    %v1958 = vadd.f32 %v1908, %v1957
    %1959 = vmatmul.f32.gmra.mxu0 %v1926
    %v1960 = vpop.f32.mrf.mxu0
    %v1961 = vadd.f32 %v1908, %v1960
    %1962 = vdwg.mxu0
    %1966 = vrot.lane.b32.xlu0 %v1946, 96
    %v1967 = vpop.permute.xlu0 %1966
    %1968 = vrot.lane.b32.xlu0 %v1949, 96
    %v1969 = vpop.permute.xlu0 %1968
    %1970 = vrot.lane.b32.xlu0 %v1952, 96
    %v1971 = vpop.permute.xlu0 %1970
    %v1972 = vsel %vm455, %v1946, 0
    %v1974 = vsel %vm455, %v1949, 0
    %v1976 = vsel %vm455, %v1952, 0
    %v1978 = vsel %vm455, %v1967, 0
    %v1980 = vsel %vm455, %v1969, 0
    %v1982 = vsel %vm455, %v1971, 0
    %1984 = vmatpush.xpose.msra.mxu0 0.0
    %1985 = vmatpush.xpose.msra.mxu0 0.0
    %1986 = vmatpush.xpose.msra.mxu0 0.0
    %1987 = vmatpush.xpose.msra.mxu0 0.0
    %1988 = vmatpush.xpose.msra.mxu0 0.0
    %1989 = vmatpush.xpose.msra.mxu0 0.0
    %1990 = vmatpush.xpose.msra.mxu0 0.0
    %1991 = vmatpush.xpose.msra.mxu0 0.0
    %1992 = vmatpush.xpose.msra.mxu0 0.0
    %1993 = vmatpush.xpose.msra.mxu0 0.0
    %1994 = vmatpush.xpose.msra.mxu0 0.0
    %1995 = vmatpush.xpose.msra.mxu0 0.0
    %1996 = vmatpush.xpose.msra.mxu0 0.0
    %1997 = vmatpush.xpose.msra.mxu0 %v1982
    %1998 = vmatpush.xpose.msra.mxu0 %v1980
    %1999 = vmatpush.xpose.msra.mxu0 %v1978
    %2000 = vmatmul.f32.gmra.mxu0 %v1972
    %v2001 = vpop.f32.mrf.mxu0
    %v2002 = vadd.f32 0.0, %v2001
    %2003 = vmatmul.f32.gmra.mxu0 %v1974
    %v2004 = vpop.f32.mrf.mxu0
    %v2005 = vadd.f32 0.0, %v2004
    %2006 = vmatmul.f32.gmra.mxu0 %v1976
    %v2007 = vpop.f32.mrf.mxu0
    %v2008 = vadd.f32 0.0, %v2007
    %2009 = vdwg.mxu0
    %2013 = vrot.lane.b32.xlu0 %v1955, 96
    %v2014 = vpop.permute.xlu0 %2013
    %2015 = vrot.lane.b32.xlu0 %v1958, 96
    %v2016 = vpop.permute.xlu0 %2015
    %2017 = vrot.lane.b32.xlu0 %v1961, 96
    %v2018 = vpop.permute.xlu0 %2017
    %v2019 = vsel %vm455, %v1955, 0
    %v2021 = vsel %vm455, %v1958, 0
    %v2023 = vsel %vm455, %v1961, 0
    %v2025 = vsel %vm455, %v2014, 0
    %v2027 = vsel %vm455, %v2016, 0
    %v2029 = vsel %vm455, %v2018, 0
    %2031 = vmatpush.xpose.msra.mxu0 0.0
    %2032 = vmatpush.xpose.msra.mxu0 0.0
    %2033 = vmatpush.xpose.msra.mxu0 0.0
    %2034 = vmatpush.xpose.msra.mxu0 0.0
    %2035 = vmatpush.xpose.msra.mxu0 0.0
    %2036 = vmatpush.xpose.msra.mxu0 0.0
    %2037 = vmatpush.xpose.msra.mxu0 0.0
    %2038 = vmatpush.xpose.msra.mxu0 0.0
    %2039 = vmatpush.xpose.msra.mxu0 0.0
    %2040 = vmatpush.xpose.msra.mxu0 0.0
    %2041 = vmatpush.xpose.msra.mxu0 0.0
    %2042 = vmatpush.xpose.msra.mxu0 0.0
    %2043 = vmatpush.xpose.msra.mxu0 0.0
    %2044 = vmatpush.xpose.msra.mxu0 %v2029
    %2045 = vmatpush.xpose.msra.mxu0 %v2027
    %2046 = vmatpush.xpose.msra.mxu0 %v2025
    %2047 = vmatmul.f32.gmra.mxu0 %v2019
    %v2048 = vpop.f32.mrf.mxu0
    %v2049 = vadd.f32 0.0, %v2048
    %2050 = vmatmul.f32.gmra.mxu0 %v2021
    %v2051 = vpop.f32.mrf.mxu0
    %v2052 = vadd.f32 0.0, %v2051
    %2053 = vmatmul.f32.gmra.mxu0 %v2023
    %v2054 = vpop.f32.mrf.mxu0
    %v2055 = vadd.f32 0.0, %v2054
    %2056 = vdwg.mxu0
    %v2057 = vmul.f32 %v2002, 0.25
    %v2058 = vmul.f32 %v2005, 0.25
    %v2059 = vmul.f32 %v2008, 0.25
    %v2060 = vmul.f32 %v2049, 0.25
    %v2061 = vmul.f32 %v2052, 0.25
    %v2062 = vmul.f32 %v2055, 0.25
    %v2063 = vadd.f32 %v2057, %v128
    %v2064 = vadd.f32 %v2058, %v128
    %v2065 = vadd.f32 %v2059, %v128
    %v2066 = vadd.f32 %v2060, %v128
    %v2067 = vadd.f32 %v2061, %v128
    %v2068 = vadd.f32 %v2062, %v128
    %v2069 = vsel %vm553, %v2063, -inf
    %2070 = vmax.xlane.f32.xlu0 %v2069
    %v2071 = vpop.xlane.xlu0 %2070
    %v2072 = vsel %vm553, %v2064, -inf
    %2073 = vmax.xlane.f32.xlu0 %v2072
    %v2074 = vpop.xlane.xlu0 %2073
    %v2075 = vsel %vm553, %v2065, -inf
    %2076 = vmax.xlane.f32.xlu0 %v2075
    %v2077 = vpop.xlane.xlu0 %2076
    %v2078 = vsel %vm553, %v2066, -inf
    %2079 = vmax.xlane.f32.xlu0 %v2078
    %v2080 = vpop.xlane.xlu0 %2079
    %v2081 = vsel %vm553, %v2067, -inf
    %2082 = vmax.xlane.f32.xlu0 %v2081
    %v2083 = vpop.xlane.xlu0 %2082
    %v2084 = vsel %vm553, %v2068, -inf
    %2085 = vmax.xlane.f32.xlu0 %v2084
    %v2086 = vpop.xlane.xlu0 %2085
    %v2087 = vsub.f32 %v2063, %v2071
    %v2088 = vsub.f32 %v2064, %v2074
    %v2089 = vsub.f32 %v2065, %v2077
    %v2090 = vsub.f32 %v2066, %v2080
    %v2091 = vsub.f32 %v2067, %v2083
    %v2092 = vsub.f32 %v2068, %v2086
    %v2093 = vmul.f32 %v2087, 1.442695
    %v2094 = vpow.pop %v2093
    %v2095 = vmul.f32 %v2088, 1.442695
    %v2096 = vpow.pop %v2095
    %v2097 = vmul.f32 %v2089, 1.442695
    %v2098 = vpow.pop %v2097
    %v2099 = vmul.f32 %v2090, 1.442695
    %v2100 = vpow.pop %v2099
    %v2101 = vmul.f32 %v2091, 1.442695
    %v2102 = vpow.pop %v2101
    %v2103 = vmul.f32 %v2092, 1.442695
    %v2104 = vpow.pop %v2103
    %v2105 = vsel %vm553, %v2094, 0.0
    %2106 = vadd.xlane.f32.xlu0 %v2105
    %v2107 = vpop.xlane.xlu0 %2106
    %v2108 = vsel %vm553, %v2096, 0.0
    %2109 = vadd.xlane.f32.xlu0 %v2108
    %v2110 = vpop.xlane.xlu0 %2109
    %v2111 = vsel %vm553, %v2098, 0.0
    %2112 = vadd.xlane.f32.xlu0 %v2111
    %v2113 = vpop.xlane.xlu0 %2112
    %v2114 = vsel %vm553, %v2100, 0.0
    %2115 = vadd.xlane.f32.xlu0 %v2114
    %v2116 = vpop.xlane.xlu0 %2115
    %v2117 = vsel %vm553, %v2102, 0.0
    %2118 = vadd.xlane.f32.xlu0 %v2117
    %v2119 = vpop.xlane.xlu0 %2118
    %v2120 = vsel %vm553, %v2104, 0.0
    %2121 = vadd.xlane.f32.xlu0 %v2120
    %v2122 = vpop.xlane.xlu0 %2121
    %v2123 = vrcp.pop %v2107
    %v2124 = vrcp.pop %v2110
    %v2125 = vrcp.pop %v2113
    %v2126 = vrcp.pop %v2116
    %v2127 = vrcp.pop %v2119
    %v2128 = vrcp.pop %v2122
    %v2129 = vmul.f32 %v2094, %v2123
    %v2130 = vmul.f32 %v2096, %v2124
    %v2131 = vmul.f32 %v2098, %v2125
    %v2132 = vmul.f32 %v2100, %v2126
    %v2133 = vmul.f32 %v2102, %v2127
    %v2134 = vmul.f32 %v2104, %v2128
    %2135 = vrot.lane.b32.xlu0 %v1946, 64
    %v2136 = vpop.permute.xlu0 %2135
    %2137 = vrot.lane.b32.xlu0 %v1949, 64
    %v2138 = vpop.permute.xlu0 %2137
    %2139 = vrot.lane.b32.xlu0 %v1952, 64
    %v2140 = vpop.permute.xlu0 %2139
    %v2145 = vsel %vm553, %v2129, 0
    %v2148 = vsel %vm553, %v2130, 0
    %v2151 = vsel %vm553, %v2131, 0
    %2153 = vmatpush.msra.mxu0 0.0
    %2154 = vmatpush.msra.mxu0 0.0
    %2155 = vmatpush.msra.mxu0 0.0
    %2156 = vmatpush.msra.mxu0 0.0
    %2157 = vmatpush.msra.mxu0 0.0
    %2158 = vmatpush.msra.mxu0 0.0
    %2159 = vmatpush.msra.mxu0 0.0
    %2160 = vmatpush.msra.mxu0 0.0
    %2161 = vmatpush.msra.mxu0 0.0
    %2162 = vmatpush.msra.mxu0 0.0
    %2163 = vmatpush.msra.mxu0 0.0
    %2164 = vmatpush.msra.mxu0 0.0
    %2165 = vmatpush.msra.mxu0 0.0
    %2166 = vmatpush.msra.mxu0 %v2140
    %2167 = vmatpush.msra.mxu0 %v2138
    %2168 = vmatpush.msra.mxu0 %v2136
    %2169 = vmatmul.f32.gmra.mxu0 %v2145
    %v2170 = vpop.f32.mrf.mxu0
    %v2171 = vadd.f32 0.0, %v2170
    %2172 = vmatmul.f32.gmra.mxu0 %v2148
    %v2173 = vpop.f32.mrf.mxu0
    %v2174 = vadd.f32 0.0, %v2173
    %2175 = vmatmul.f32.gmra.mxu0 %v2151
    %v2176 = vpop.f32.mrf.mxu0
    %v2177 = vadd.f32 0.0, %v2176
    %2178 = vdwg.mxu0
    %2179 = vrot.lane.b32.xlu0 %v1955, 64
    %v2180 = vpop.permute.xlu0 %2179
    %2181 = vrot.lane.b32.xlu0 %v1958, 64
    %v2182 = vpop.permute.xlu0 %2181
    %2183 = vrot.lane.b32.xlu0 %v1961, 64
    %v2184 = vpop.permute.xlu0 %2183
    %v2189 = vsel %vm553, %v2132, 0
    %v2192 = vsel %vm553, %v2133, 0
    %v2195 = vsel %vm553, %v2134, 0
    %2197 = vmatpush.msra.mxu0 0.0
    %2198 = vmatpush.msra.mxu0 0.0
    %2199 = vmatpush.msra.mxu0 0.0
    %2200 = vmatpush.msra.mxu0 0.0
    %2201 = vmatpush.msra.mxu0 0.0
    %2202 = vmatpush.msra.mxu0 0.0
    %2203 = vmatpush.msra.mxu0 0.0
    %2204 = vmatpush.msra.mxu0 0.0
    %2205 = vmatpush.msra.mxu0 0.0
    %2206 = vmatpush.msra.mxu0 0.0
    %2207 = vmatpush.msra.mxu0 0.0
    %2208 = vmatpush.msra.mxu0 0.0
    %2209 = vmatpush.msra.mxu0 0.0
    %2210 = vmatpush.msra.mxu0 %v2184
    %2211 = vmatpush.msra.mxu0 %v2182
    %2212 = vmatpush.msra.mxu0 %v2180
    %2213 = vmatmul.f32.gmra.mxu0 %v2189
    %v2214 = vpop.f32.mrf.mxu0
    %v2215 = vadd.f32 0.0, %v2214
    %2216 = vmatmul.f32.gmra.mxu0 %v2192
    %v2217 = vpop.f32.mrf.mxu0
    %v2218 = vadd.f32 0.0, %v2217
    %2219 = vmatmul.f32.gmra.mxu0 %v2195
    %v2220 = vpop.f32.mrf.mxu0
    %v2221 = vadd.f32 0.0, %v2220
    %2222 = vdwg.mxu0
    %2223 = vrot.lane.b32.xlu0 %v1946, 112
    %v2224 = vpop.permute.xlu0 %2223
    %2225 = vrot.lane.b32.xlu0 %v1949, 112
    %v2226 = vpop.permute.xlu0 %2225
    %2227 = vrot.lane.b32.xlu0 %v1952, 112
    %v2228 = vpop.permute.xlu0 %2227
    %2229 = vrot.lane.b32.xlu0 %v1946, 80
    %v2230 = vpop.permute.xlu0 %2229
    %2231 = vrot.lane.b32.xlu0 %v1949, 80
    %v2232 = vpop.permute.xlu0 %2231
    %2233 = vrot.lane.b32.xlu0 %v1952, 80
    %v2234 = vpop.permute.xlu0 %2233
    %v2235 = vsel %vm455, %v2224, 0
    %v2237 = vsel %vm455, %v2226, 0
    %v2239 = vsel %vm455, %v2228, 0
    %v2241 = vsel %vm455, %v2230, 0
    %v2243 = vsel %vm455, %v2232, 0
    %v2245 = vsel %vm455, %v2234, 0
    %2247 = vmatpush.xpose.msra.mxu0 0.0
    %2248 = vmatpush.xpose.msra.mxu0 0.0
    %2249 = vmatpush.xpose.msra.mxu0 0.0
    %2250 = vmatpush.xpose.msra.mxu0 0.0
    %2251 = vmatpush.xpose.msra.mxu0 0.0
    %2252 = vmatpush.xpose.msra.mxu0 0.0
    %2253 = vmatpush.xpose.msra.mxu0 0.0
    %2254 = vmatpush.xpose.msra.mxu0 0.0
    %2255 = vmatpush.xpose.msra.mxu0 0.0
    %2256 = vmatpush.xpose.msra.mxu0 0.0
    %2257 = vmatpush.xpose.msra.mxu0 0.0
    %2258 = vmatpush.xpose.msra.mxu0 0.0
    %2259 = vmatpush.xpose.msra.mxu0 0.0
    %2260 = vmatpush.xpose.msra.mxu0 %v2245
    %2261 = vmatpush.xpose.msra.mxu0 %v2243
    %2262 = vmatpush.xpose.msra.mxu0 %v2241
    %2263 = vmatmul.f32.gmra.mxu0 %v2235
    %v2264 = vpop.f32.mrf.mxu0
    %v2265 = vadd.f32 0.0, %v2264
    %2266 = vmatmul.f32.gmra.mxu0 %v2237
    %v2267 = vpop.f32.mrf.mxu0
    %v2268 = vadd.f32 0.0, %v2267
    %2269 = vmatmul.f32.gmra.mxu0 %v2239
    %v2270 = vpop.f32.mrf.mxu0
    %v2271 = vadd.f32 0.0, %v2270
    %2272 = vdwg.mxu0
    %2273 = vrot.lane.b32.xlu0 %v1955, 112
    %v2274 = vpop.permute.xlu0 %2273
    %2275 = vrot.lane.b32.xlu0 %v1958, 112
    %v2276 = vpop.permute.xlu0 %2275
    %2277 = vrot.lane.b32.xlu0 %v1961, 112
    %v2278 = vpop.permute.xlu0 %2277
    %2279 = vrot.lane.b32.xlu0 %v1955, 80
    %v2280 = vpop.permute.xlu0 %2279
    %2281 = vrot.lane.b32.xlu0 %v1958, 80
    %v2282 = vpop.permute.xlu0 %2281
    %2283 = vrot.lane.b32.xlu0 %v1961, 80
    %v2284 = vpop.permute.xlu0 %2283
    %v2285 = vsel %vm455, %v2274, 0
    %v2287 = vsel %vm455, %v2276, 0
    %v2289 = vsel %vm455, %v2278, 0
    %v2291 = vsel %vm455, %v2280, 0
    %v2293 = vsel %vm455, %v2282, 0
    %v2295 = vsel %vm455, %v2284, 0
    %2297 = vmatpush.xpose.msra.mxu0 0.0
    %2298 = vmatpush.xpose.msra.mxu0 0.0
    %2299 = vmatpush.xpose.msra.mxu0 0.0
    %2300 = vmatpush.xpose.msra.mxu0 0.0
    %2301 = vmatpush.xpose.msra.mxu0 0.0
    %2302 = vmatpush.xpose.msra.mxu0 0.0
    %2303 = vmatpush.xpose.msra.mxu0 0.0
    %2304 = vmatpush.xpose.msra.mxu0 0.0
    %2305 = vmatpush.xpose.msra.mxu0 0.0
    %2306 = vmatpush.xpose.msra.mxu0 0.0
    %2307 = vmatpush.xpose.msra.mxu0 0.0
    %2308 = vmatpush.xpose.msra.mxu0 0.0
    %2309 = vmatpush.xpose.msra.mxu0 0.0
    %2310 = vmatpush.xpose.msra.mxu0 %v2295
    %2311 = vmatpush.xpose.msra.mxu0 %v2293
    %2312 = vmatpush.xpose.msra.mxu0 %v2291
    %2313 = vmatmul.f32.gmra.mxu0 %v2285
    %v2314 = vpop.f32.mrf.mxu0
    %v2315 = vadd.f32 0.0, %v2314
    %2316 = vmatmul.f32.gmra.mxu0 %v2287
    %v2317 = vpop.f32.mrf.mxu0
    %v2318 = vadd.f32 0.0, %v2317
    %2319 = vmatmul.f32.gmra.mxu0 %v2289
    %v2320 = vpop.f32.mrf.mxu0
    %v2321 = vadd.f32 0.0, %v2320
    %2322 = vdwg.mxu0
    %v2323 = vmul.f32 %v2265, 0.25
    %v2324 = vmul.f32 %v2268, 0.25
    %v2325 = vmul.f32 %v2271, 0.25
    %v2326 = vmul.f32 %v2315, 0.25
    %v2327 = vmul.f32 %v2318, 0.25
    %v2328 = vmul.f32 %v2321, 0.25
    %v2329 = vadd.f32 %v2323, %v128
    %v2330 = vadd.f32 %v2324, %v128
    %v2331 = vadd.f32 %v2325, %v128
    %v2332 = vadd.f32 %v2326, %v128
    %v2333 = vadd.f32 %v2327, %v128
    %v2334 = vadd.f32 %v2328, %v128
    %v2335 = vsel %vm553, %v2329, -inf
    %2336 = vmax.xlane.f32.xlu0 %v2335
    %v2337 = vpop.xlane.xlu0 %2336
    %v2338 = vsel %vm553, %v2330, -inf
    %2339 = vmax.xlane.f32.xlu0 %v2338
    %v2340 = vpop.xlane.xlu0 %2339
    %v2341 = vsel %vm553, %v2331, -inf
    %2342 = vmax.xlane.f32.xlu0 %v2341
    %v2343 = vpop.xlane.xlu0 %2342
    %v2344 = vsel %vm553, %v2332, -inf
    %2345 = vmax.xlane.f32.xlu0 %v2344
    %v2346 = vpop.xlane.xlu0 %2345
    %v2347 = vsel %vm553, %v2333, -inf
    %2348 = vmax.xlane.f32.xlu0 %v2347
    %v2349 = vpop.xlane.xlu0 %2348
    %v2350 = vsel %vm553, %v2334, -inf
    %2351 = vmax.xlane.f32.xlu0 %v2350
    %v2352 = vpop.xlane.xlu0 %2351
    %v2353 = vsub.f32 %v2329, %v2337
    %v2354 = vsub.f32 %v2330, %v2340
    %v2355 = vsub.f32 %v2331, %v2343
    %v2356 = vsub.f32 %v2332, %v2346
    %v2357 = vsub.f32 %v2333, %v2349
    %v2358 = vsub.f32 %v2334, %v2352
    %v2359 = vmul.f32 %v2353, 1.442695
    %v2360 = vpow.pop %v2359
    %v2361 = vmul.f32 %v2354, 1.442695
    %v2362 = vpow.pop %v2361
    %v2363 = vmul.f32 %v2355, 1.442695
    %v2364 = vpow.pop %v2363
    %v2365 = vmul.f32 %v2356, 1.442695
    %v2366 = vpow.pop %v2365
    %v2367 = vmul.f32 %v2357, 1.442695
    %v2368 = vpow.pop %v2367
    %v2369 = vmul.f32 %v2358, 1.442695
    %v2370 = vpow.pop %v2369
    %v2371 = vsel %vm553, %v2360, 0.0
    %2372 = vadd.xlane.f32.xlu0 %v2371
    %v2373 = vpop.xlane.xlu0 %2372
    %v2374 = vsel %vm553, %v2362, 0.0
    %2375 = vadd.xlane.f32.xlu0 %v2374
    %v2376 = vpop.xlane.xlu0 %2375
    %v2377 = vsel %vm553, %v2364, 0.0
    %2378 = vadd.xlane.f32.xlu0 %v2377
    %v2379 = vpop.xlane.xlu0 %2378
    %v2380 = vsel %vm553, %v2366, 0.0
    %2381 = vadd.xlane.f32.xlu0 %v2380
    %v2382 = vpop.xlane.xlu0 %2381
    %v2383 = vsel %vm553, %v2368, 0.0
    %2384 = vadd.xlane.f32.xlu0 %v2383
    %v2385 = vpop.xlane.xlu0 %2384
    %v2386 = vsel %vm553, %v2370, 0.0
    %2387 = vadd.xlane.f32.xlu0 %v2386
    %v2388 = vpop.xlane.xlu0 %2387
    %v2389 = vrcp.pop %v2373
    %v2390 = vrcp.pop %v2376
    %v2391 = vrcp.pop %v2379
    %v2392 = vrcp.pop %v2382
    %v2393 = vrcp.pop %v2385
    %v2394 = vrcp.pop %v2388
    %v2395 = vmul.f32 %v2360, %v2389
    %v2396 = vmul.f32 %v2362, %v2390
    %v2397 = vmul.f32 %v2364, %v2391
    %v2398 = vmul.f32 %v2366, %v2392
    %v2399 = vmul.f32 %v2368, %v2393
    %v2400 = vmul.f32 %v2370, %v2394
    %2401 = vrot.lane.b32.xlu0 %v1946, 48
    %v2402 = vpop.permute.xlu0 %2401
    %2403 = vrot.lane.b32.xlu0 %v1949, 48
    %v2404 = vpop.permute.xlu0 %2403
    %2405 = vrot.lane.b32.xlu0 %v1952, 48
    %v2406 = vpop.permute.xlu0 %2405
    %v2411 = vsel %vm553, %v2395, 0
    %v2414 = vsel %vm553, %v2396, 0
    %v2417 = vsel %vm553, %v2397, 0
    %2419 = vmatpush.msra.mxu0 0.0
    %2420 = vmatpush.msra.mxu0 0.0
    %2421 = vmatpush.msra.mxu0 0.0
    %2422 = vmatpush.msra.mxu0 0.0
    %2423 = vmatpush.msra.mxu0 0.0
    %2424 = vmatpush.msra.mxu0 0.0
    %2425 = vmatpush.msra.mxu0 0.0
    %2426 = vmatpush.msra.mxu0 0.0
    %2427 = vmatpush.msra.mxu0 0.0
    %2428 = vmatpush.msra.mxu0 0.0
    %2429 = vmatpush.msra.mxu0 0.0
    %2430 = vmatpush.msra.mxu0 0.0
    %2431 = vmatpush.msra.mxu0 0.0
    %2432 = vmatpush.msra.mxu0 %v2406
    %2433 = vmatpush.msra.mxu0 %v2404
    %2434 = vmatpush.msra.mxu0 %v2402
    %2435 = vmatmul.f32.gmra.mxu0 %v2411
    %v2436 = vpop.f32.mrf.mxu0
    %v2437 = vadd.f32 0.0, %v2436
    %2438 = vmatmul.f32.gmra.mxu0 %v2414
    %v2439 = vpop.f32.mrf.mxu0
    %v2440 = vadd.f32 0.0, %v2439
    %2441 = vmatmul.f32.gmra.mxu0 %v2417
    %v2442 = vpop.f32.mrf.mxu0
    %v2443 = vadd.f32 0.0, %v2442
    %2444 = vdwg.mxu0
    %2445 = vrot.lane.b32.xlu0 %v1955, 48
    %v2446 = vpop.permute.xlu0 %2445
    %2447 = vrot.lane.b32.xlu0 %v1958, 48
    %v2448 = vpop.permute.xlu0 %2447
    %2449 = vrot.lane.b32.xlu0 %v1961, 48
    %v2450 = vpop.permute.xlu0 %2449
    %v2455 = vsel %vm553, %v2398, 0
    %v2458 = vsel %vm553, %v2399, 0
    %v2461 = vsel %vm553, %v2400, 0
    %2463 = vmatpush.msra.mxu0 0.0
    %2464 = vmatpush.msra.mxu0 0.0
    %2465 = vmatpush.msra.mxu0 0.0
    %2466 = vmatpush.msra.mxu0 0.0
    %2467 = vmatpush.msra.mxu0 0.0
    %2468 = vmatpush.msra.mxu0 0.0
    %2469 = vmatpush.msra.mxu0 0.0
    %2470 = vmatpush.msra.mxu0 0.0
    %2471 = vmatpush.msra.mxu0 0.0
    %2472 = vmatpush.msra.mxu0 0.0
    %2473 = vmatpush.msra.mxu0 0.0
    %2474 = vmatpush.msra.mxu0 0.0
    %2475 = vmatpush.msra.mxu0 0.0
    %2476 = vmatpush.msra.mxu0 %v2450
    %2477 = vmatpush.msra.mxu0 %v2448
    %2478 = vmatpush.msra.mxu0 %v2446
    %2479 = vmatmul.f32.gmra.mxu0 %v2455
    %v2480 = vpop.f32.mrf.mxu0
    %v2481 = vadd.f32 0.0, %v2480
    %2482 = vmatmul.f32.gmra.mxu0 %v2458
    %v2483 = vpop.f32.mrf.mxu0
    %v2484 = vadd.f32 0.0, %v2483
    %2485 = vmatmul.f32.gmra.mxu0 %v2461
    %v2486 = vpop.f32.mrf.mxu0
    %v2487 = vadd.f32 0.0, %v2486
    %2488 = vdwg.mxu0
    %2495 = vrot.lane.b32.xlu0 %v2437, 16
    %v2496 = vpop.permute.xlu0 %2495
    %2497 = vrot.lane.b32.xlu0 %v2440, 16
    %v2498 = vpop.permute.xlu0 %2497
    %2499 = vrot.lane.b32.xlu0 %v2443, 16
    %v2500 = vpop.permute.xlu0 %2499
    %2501 = vrot.lane.b32.xlu0 %v2481, 16
    %v2502 = vpop.permute.xlu0 %2501
    %2503 = vrot.lane.b32.xlu0 %v2484, 16
    %v2504 = vpop.permute.xlu0 %2503
    %2505 = vrot.lane.b32.xlu0 %v2487, 16
    %v2506 = vpop.permute.xlu0 %2505
    %v2513 = vsel %vm455, %v2171, %v2496
    %v2514 = vsel %vm455, %v2174, %v2498
    %v2515 = vsel %vm455, %v2177, %v2500
    %v2516 = vsel %vm455, %v2215, %v2502
    %v2517 = vsel %vm455, %v2218, %v2504
    %v2518 = vsel %vm455, %v2221, %v2506
    %v2519 = vadd.f32 %v1644, %v2513
    %v2520 = vadd.f32 %v1645, %v2514
    %v2521 = vadd.f32 %v1646, %v2515
    %v2522 = vadd.f32 %v1647, %v2516
    %v2523 = vadd.f32 %v1648, %v2517
    %v2524 = vadd.f32 %v1649, %v2518
    %s2525 = scalar_lea.vmem %s7, 1
    %v2526 = vld [vmem:[%s2525] sm:$0x1]
    %s2527 = scalar_lea.vmem %s8, 1
    %v2528 = vld [vmem:[%s2527] sm:$0x1]
    %v2529 = vsel %vm131, %v2519, 0.0
    %2530 = vadd.xlane.f32.xlu0 %v2529
    %v2531 = vpop.xlane.xlu0 %2530
    %v2532 = vsel %vm131, %v2520, 0.0
    %2533 = vadd.xlane.f32.xlu0 %v2532
    %v2534 = vpop.xlane.xlu0 %2533
    %v2535 = vsel %vm131, %v2521, 0.0
    %2536 = vadd.xlane.f32.xlu0 %v2535
    %v2537 = vpop.xlane.xlu0 %2536
    %v2538 = vsel %vm131, %v2522, 0.0
    %2539 = vadd.xlane.f32.xlu0 %v2538
    %v2540 = vpop.xlane.xlu0 %2539
    %v2541 = vsel %vm131, %v2523, 0.0
    %2542 = vadd.xlane.f32.xlu0 %v2541
    %v2543 = vpop.xlane.xlu0 %2542
    %v2544 = vsel %vm131, %v2524, 0.0
    %2545 = vadd.xlane.f32.xlu0 %v2544
    %v2546 = vpop.xlane.xlu0 %2545
    %v2547 = vmul.f32 %v2531, %v156
    %v2548 = vmul.f32 %v2534, %v156
    %v2549 = vmul.f32 %v2537, %v156
    %v2550 = vmul.f32 %v2540, %v156
    %v2551 = vmul.f32 %v2543, %v156
    %v2552 = vmul.f32 %v2546, %v156
    %v2553 = vsub.f32 %v2519, %v2547
    %v2554 = vsub.f32 %v2520, %v2548
    %v2555 = vsub.f32 %v2521, %v2549
    %v2556 = vsub.f32 %v2522, %v2550
    %v2557 = vsub.f32 %v2523, %v2551
    %v2558 = vsub.f32 %v2524, %v2552
    %v2559 = vmul.f32 %v2553, %v2553
    %v2560 = vmul.f32 %v2554, %v2554
    %v2561 = vmul.f32 %v2555, %v2555
    %v2562 = vmul.f32 %v2556, %v2556
    %v2563 = vmul.f32 %v2557, %v2557
    %v2564 = vmul.f32 %v2558, %v2558
    %v2565 = vsel %vm131, %v2559, 0.0
    %2566 = vadd.xlane.f32.xlu0 %v2565
    %v2567 = vpop.xlane.xlu0 %2566
    %v2568 = vsel %vm131, %v2560, 0.0
    %2569 = vadd.xlane.f32.xlu0 %v2568
    %v2570 = vpop.xlane.xlu0 %2569
    %v2571 = vsel %vm131, %v2561, 0.0
    %2572 = vadd.xlane.f32.xlu0 %v2571
    %v2573 = vpop.xlane.xlu0 %2572
    %v2574 = vsel %vm131, %v2562, 0.0
    %2575 = vadd.xlane.f32.xlu0 %v2574
    %v2576 = vpop.xlane.xlu0 %2575
    %v2577 = vsel %vm131, %v2563, 0.0
    %2578 = vadd.xlane.f32.xlu0 %v2577
    %v2579 = vpop.xlane.xlu0 %2578
    %v2580 = vsel %vm131, %v2564, 0.0
    %2581 = vadd.xlane.f32.xlu0 %v2580
    %v2582 = vpop.xlane.xlu0 %2581
    %v2583 = vmul.f32 %v2567, %v156
    %v2584 = vmul.f32 %v2570, %v156
    %v2585 = vmul.f32 %v2573, %v156
    %v2586 = vmul.f32 %v2576, %v156
    %v2587 = vmul.f32 %v2579, %v156
    %v2588 = vmul.f32 %v2582, %v156
    %v2589 = vadd.f32 %v2583, 1e-05
    %v2590 = vadd.f32 %v2584, 1e-05
    %v2591 = vadd.f32 %v2585, 1e-05
    %v2592 = vadd.f32 %v2586, 1e-05
    %v2593 = vadd.f32 %v2587, 1e-05
    %v2594 = vadd.f32 %v2588, 1e-05
    %v2595 = vrsqrt.pop %v2589
    %v2596 = vmul.f32 %v2595, %v2589
    %v2597 = vmul.f32 %v2596, %v2595
    %v2598 = vmul.f32 0.5, %v2597
    %v2599 = vsub.f32 1.5, %v2598
    %v2600 = vmul.f32 %v2595, %v2599
    %v2601 = vmul.f32 %v2589, %v2600
    %vm2602 = vcmp.eq.f32.partialorder %v2589, inf
    %v2603 = vsel %vm2602, %v2589, %v2601
    %vm2604 = vcmp.eq.f32.partialorder %v2589, 0.0
    %v2605 = vand.u32 %v2589, 2147483648
    %v2606 = vsel %vm2604, %v2605, %v2603
    %v2607 = vrsqrt.pop %v2590
    %v2608 = vmul.f32 %v2607, %v2590
    %v2609 = vmul.f32 %v2608, %v2607
    %v2610 = vmul.f32 0.5, %v2609
    %v2611 = vsub.f32 1.5, %v2610
    %v2612 = vmul.f32 %v2607, %v2611
    %v2613 = vmul.f32 %v2590, %v2612
    %vm2614 = vcmp.eq.f32.partialorder %v2590, inf
    %v2615 = vsel %vm2614, %v2590, %v2613
    %vm2616 = vcmp.eq.f32.partialorder %v2590, 0.0
    %v2617 = vand.u32 %v2590, 2147483648
    %v2618 = vsel %vm2616, %v2617, %v2615
    %v2619 = vrsqrt.pop %v2591
    %v2620 = vmul.f32 %v2619, %v2591
    %v2621 = vmul.f32 %v2620, %v2619
    %v2622 = vmul.f32 0.5, %v2621
    %v2623 = vsub.f32 1.5, %v2622
    %v2624 = vmul.f32 %v2619, %v2623
    %v2625 = vmul.f32 %v2591, %v2624
    %vm2626 = vcmp.eq.f32.partialorder %v2591, inf
    %v2627 = vsel %vm2626, %v2591, %v2625
    %vm2628 = vcmp.eq.f32.partialorder %v2591, 0.0
    %v2629 = vand.u32 %v2591, 2147483648
    %v2630 = vsel %vm2628, %v2629, %v2627
    %v2631 = vrsqrt.pop %v2592
    %v2632 = vmul.f32 %v2631, %v2592
    %v2633 = vmul.f32 %v2632, %v2631
    %v2634 = vmul.f32 0.5, %v2633
    %v2635 = vsub.f32 1.5, %v2634
    %v2636 = vmul.f32 %v2631, %v2635
    %v2637 = vmul.f32 %v2592, %v2636
    %vm2638 = vcmp.eq.f32.partialorder %v2592, inf
    %v2639 = vsel %vm2638, %v2592, %v2637
    %vm2640 = vcmp.eq.f32.partialorder %v2592, 0.0
    %v2641 = vand.u32 %v2592, 2147483648
    %v2642 = vsel %vm2640, %v2641, %v2639
    %v2643 = vrsqrt.pop %v2593
    %v2644 = vmul.f32 %v2643, %v2593
    %v2645 = vmul.f32 %v2644, %v2643
    %v2646 = vmul.f32 0.5, %v2645
    %v2647 = vsub.f32 1.5, %v2646
    %v2648 = vmul.f32 %v2643, %v2647
    %v2649 = vmul.f32 %v2593, %v2648
    %vm2650 = vcmp.eq.f32.partialorder %v2593, inf
    %v2651 = vsel %vm2650, %v2593, %v2649
    %vm2652 = vcmp.eq.f32.partialorder %v2593, 0.0
    %v2653 = vand.u32 %v2593, 2147483648
    %v2654 = vsel %vm2652, %v2653, %v2651
    %v2655 = vrsqrt.pop %v2594
    %v2656 = vmul.f32 %v2655, %v2594
    %v2657 = vmul.f32 %v2656, %v2655
    %v2658 = vmul.f32 0.5, %v2657
    %v2659 = vsub.f32 1.5, %v2658
    %v2660 = vmul.f32 %v2655, %v2659
    %v2661 = vmul.f32 %v2594, %v2660
    %vm2662 = vcmp.eq.f32.partialorder %v2594, inf
    %v2663 = vsel %vm2662, %v2594, %v2661
    %vm2664 = vcmp.eq.f32.partialorder %v2594, 0.0
    %v2665 = vand.u32 %v2594, 2147483648
    %v2666 = vsel %vm2664, %v2665, %v2663
    %v2667 = vrcp.pop %v2606
    %v2668 = vmul.f32 %v2606, %v2667
    %v2669 = vsub.f32 1.0, %v2668
    %v2670 = vmul.f32 %v2667, %v2669
    %v2671 = vadd.f32 %v2667, %v2670
    %vm2672 = vweird.f32 %v2606
    %vm2673 = vweird.f32 %v2667
    %vm2674 = vmor %vm2672, %vm2673
    %v2675 = vsel %vm2674, %v2667, %v2671
    %v2676 = vand.u32 2147483647, %v2606
    %vm2677 = vcmp.eq.f32.partialorder %v2676, 8.507059e+37
    %v2678 = vand.u32 %v2606, 2147483648
    %v2679 = vor.u32 1.1754944e-38, %v2678
    %v2680 = vsel %vm2677, %v2679, %v2675
    %v2681 = vmul.f32 %v2553, %v2680
    %v2682 = vrcp.pop %v2618
    %v2683 = vmul.f32 %v2618, %v2682
    %v2684 = vsub.f32 1.0, %v2683
    %v2685 = vmul.f32 %v2682, %v2684
    %v2686 = vadd.f32 %v2682, %v2685
    %vm2687 = vweird.f32 %v2618
    %vm2688 = vweird.f32 %v2682
    %vm2689 = vmor %vm2687, %vm2688
    %v2690 = vsel %vm2689, %v2682, %v2686
    %v2691 = vand.u32 2147483647, %v2618
    %vm2692 = vcmp.eq.f32.partialorder %v2691, 8.507059e+37
    %v2693 = vand.u32 %v2618, 2147483648
    %v2694 = vor.u32 1.1754944e-38, %v2693
    %v2695 = vsel %vm2692, %v2694, %v2690
    %v2696 = vmul.f32 %v2554, %v2695
    %v2697 = vrcp.pop %v2630
    %v2698 = vmul.f32 %v2630, %v2697
    %v2699 = vsub.f32 1.0, %v2698
    %v2700 = vmul.f32 %v2697, %v2699
    %v2701 = vadd.f32 %v2697, %v2700
    %vm2702 = vweird.f32 %v2630
    %vm2703 = vweird.f32 %v2697
    %vm2704 = vmor %vm2702, %vm2703
    %v2705 = vsel %vm2704, %v2697, %v2701
    %v2706 = vand.u32 2147483647, %v2630
    %vm2707 = vcmp.eq.f32.partialorder %v2706, 8.507059e+37
    %v2708 = vand.u32 %v2630, 2147483648
    %v2709 = vor.u32 1.1754944e-38, %v2708
    %v2710 = vsel %vm2707, %v2709, %v2705
    %v2711 = vmul.f32 %v2555, %v2710
    %v2712 = vrcp.pop %v2642
    %v2713 = vmul.f32 %v2642, %v2712
    %v2714 = vsub.f32 1.0, %v2713
    %v2715 = vmul.f32 %v2712, %v2714
    %v2716 = vadd.f32 %v2712, %v2715
    %vm2717 = vweird.f32 %v2642
    %vm2718 = vweird.f32 %v2712
    %vm2719 = vmor %vm2717, %vm2718
    %v2720 = vsel %vm2719, %v2712, %v2716
    %v2721 = vand.u32 2147483647, %v2642
    %vm2722 = vcmp.eq.f32.partialorder %v2721, 8.507059e+37
    %v2723 = vand.u32 %v2642, 2147483648
    %v2724 = vor.u32 1.1754944e-38, %v2723
    %v2725 = vsel %vm2722, %v2724, %v2720
    %v2726 = vmul.f32 %v2556, %v2725
    %v2727 = vrcp.pop %v2654
    %v2728 = vmul.f32 %v2654, %v2727
    %v2729 = vsub.f32 1.0, %v2728
    %v2730 = vmul.f32 %v2727, %v2729
    %v2731 = vadd.f32 %v2727, %v2730
    %vm2732 = vweird.f32 %v2654
    %vm2733 = vweird.f32 %v2727
    %vm2734 = vmor %vm2732, %vm2733
    %v2735 = vsel %vm2734, %v2727, %v2731
    %v2736 = vand.u32 2147483647, %v2654
    %vm2737 = vcmp.eq.f32.partialorder %v2736, 8.507059e+37
    %v2738 = vand.u32 %v2654, 2147483648
    %v2739 = vor.u32 1.1754944e-38, %v2738
    %v2740 = vsel %vm2737, %v2739, %v2735
    %v2741 = vmul.f32 %v2557, %v2740
    %v2742 = vrcp.pop %v2666
    %v2743 = vmul.f32 %v2666, %v2742
    %v2744 = vsub.f32 1.0, %v2743
    %v2745 = vmul.f32 %v2742, %v2744
    %v2746 = vadd.f32 %v2742, %v2745
    %vm2747 = vweird.f32 %v2666
    %vm2748 = vweird.f32 %v2742
    %vm2749 = vmor %vm2747, %vm2748
    %v2750 = vsel %vm2749, %v2742, %v2746
    %v2751 = vand.u32 2147483647, %v2666
    %vm2752 = vcmp.eq.f32.partialorder %v2751, 8.507059e+37
    %v2753 = vand.u32 %v2666, 2147483648
    %v2754 = vor.u32 1.1754944e-38, %v2753
    %v2755 = vsel %vm2752, %v2754, %v2750
    %v2756 = vmul.f32 %v2558, %v2755
    %v2758 = vperm.slane %v2526, 0
    %v2760 = vmul.f32 %v2681, %v2758
    %v2761 = vmul.f32 %v2696, %v2758
    %v2762 = vmul.f32 %v2711, %v2758
    %v2763 = vmul.f32 %v2726, %v2758
    %v2764 = vmul.f32 %v2741, %v2758
    %v2765 = vmul.f32 %v2756, %v2758
    %v2767 = vperm.slane %v2528, 0
    %v2769 = vadd.f32 %v2760, %v2767
    %v2770 = vadd.f32 %v2761, %v2767
    %v2771 = vadd.f32 %v2762, %v2767
    %v2772 = vadd.f32 %v2763, %v2767
    %v2773 = vadd.f32 %v2764, %v2767
    %v2774 = vadd.f32 %v2765, %v2767
    %s2775 = scalar_lea.vmem %s9, 32
    %v2776 = vld [vmem:[%s2775] sm:$0xff]
    %v2777 = vld [vmem:[%s2775 + $0x8] sm:$0xff]
    %v2778 = vld [vmem:[%s2775 + $0x10] sm:$0xff]
    %v2779 = vld [vmem:[%s2775 + $0x18] sm:$0xff]
    %s2780 = scalar_lea.vmem %s10, 1
    %v2781 = vld [vmem:[%s2780] sm:$0x1]
    %v2783 = vperm.slane %v2781, 0
    %v2786 = vsel %vm131, %v2769, 0
    %v2789 = vsel %vm131, %v2770, 0
    %v2792 = vsel %vm131, %v2771, 0
    %v2795 = vsel %vm131, %v2772, 0
    %v2798 = vsel %vm131, %v2773, 0
    %v2801 = vsel %vm131, %v2774, 0
    %2803 = vmatpush.msra.mxu0 0.0
    %2804 = vmatpush.msra.mxu0 0.0
    %2805 = vmatpush.msra.mxu0 0.0
    %2806 = vmatpush.msra.mxu0 0.0
    %2807 = vmatpush.msra.mxu0 0.0
    %2808 = vmatpush.msra.mxu0 0.0
    %2809 = vmatpush.msra.mxu0 0.0
    %2810 = vmatpush.msra.mxu0 0.0
    %2811 = vmatpush.msra.mxu0 0.0
    %2812 = vmatpush.msra.mxu0 0.0
    %2813 = vmatpush.msra.mxu0 0.0
    %2814 = vmatpush.msra.mxu0 0.0
    %2815 = vmatpush.msra.mxu0 %v2779
    %2816 = vmatpush.msra.mxu0 %v2778
    %2817 = vmatpush.msra.mxu0 %v2777
    %2818 = vmatpush.msra.mxu0 %v2776
    %2819 = vmatmul.f32.gmra.mxu0 %v2786
    %v2820 = vpop.f32.mrf.mxu0
    %v2821 = vadd.f32 %v2783, %v2820
    %2822 = vmatmul.f32.gmra.mxu0 %v2789
    %v2823 = vpop.f32.mrf.mxu0
    %v2824 = vadd.f32 %v2783, %v2823
    %2825 = vmatmul.f32.gmra.mxu0 %v2792
    %v2826 = vpop.f32.mrf.mxu0
    %v2827 = vadd.f32 %v2783, %v2826
    %2828 = vmatmul.f32.gmra.mxu0 %v2795
    %v2829 = vpop.f32.mrf.mxu0
    %v2830 = vadd.f32 %v2783, %v2829
    %2831 = vmatmul.f32.gmra.mxu0 %v2798
    %v2832 = vpop.f32.mrf.mxu0
    %v2833 = vadd.f32 %v2783, %v2832
    %2834 = vmatmul.f32.gmra.mxu0 %v2801
    %v2835 = vpop.f32.mrf.mxu0
    %v2836 = vadd.f32 %v2783, %v2835
    %2837 = vdwg.mxu0
    %v2838 = vmul.f32 %v2821, 0.5
    %v2839 = vmul.f32 %v2824, 0.5
    %v2840 = vmul.f32 %v2827, 0.5
    %v2841 = vmul.f32 %v2830, 0.5
    %v2842 = vmul.f32 %v2833, 0.5
    %v2843 = vmul.f32 %v2836, 0.5
    %v2844 = vmul.f32 %v2821, 0.70710677
    %v2845 = vmul.f32 %v2824, 0.70710677
    %v2846 = vmul.f32 %v2827, 0.70710677
    %v2847 = vmul.f32 %v2830, 0.70710677
    %v2848 = vmul.f32 %v2833, 0.70710677
    %v2849 = vmul.f32 %v2836, 0.70710677
    %v2850 = vmul.f32 %v2844, %v2844
    %v2851 = vmin.f32 16.0, %v2850
    %v2852 = vmul.f32 %v2851, 2.1237322e-06
    %v2853 = vadd.f32 %v2852, 0.00028619796
    %v2854 = vmul.f32 %v2851, %v2853
    %v2855 = vadd.f32 %v2854, 0.0036580483
    %v2856 = vmul.f32 %v2851, %v2855
    %v2857 = vadd.f32 %v2856, 0.05243302
    %v2858 = vmul.f32 %v2851, %v2857
    %v2859 = vadd.f32 %v2858, 0.18741608
    %v2860 = vmul.f32 %v2851, %v2859
    %v2861 = vadd.f32 %v2860, 1.1283791
    %v2862 = vmul.f32 %v2844, %v2861
    %v2863 = vmul.f32 %v2851, 3.8918573e-05
    %v2864 = vadd.f32 %v2863, 0.001143296
    %v2865 = vmul.f32 %v2851, %v2864
    %v2866 = vadd.f32 %v2865, 0.014752088
    %v2867 = vmul.f32 %v2851, %v2866
    %v2868 = vadd.f32 %v2867, 0.112945676
    %v2869 = vmul.f32 %v2851, %v2868
    %v2870 = vadd.f32 %v2869, 0.4994258
    %v2871 = vmul.f32 %v2851, %v2870
    %v2872 = vadd.f32 %v2871, 1.0
    %v2873 = vrcp.pop %v2872
    %v2874 = vmul.f32 %v2872, %v2873
    %v2875 = vsub.f32 1.0, %v2874
    %v2876 = vmul.f32 %v2873, %v2875
    %v2877 = vadd.f32 %v2873, %v2876
    %vm2878 = vweird.f32 %v2872
    %vm2879 = vweird.f32 %v2873
    %vm2880 = vmor %vm2878, %vm2879
    %v2881 = vsel %vm2880, %v2873, %v2877
    %v2882 = vand.u32 2147483647, %v2872
    %vm2883 = vcmp.eq.f32.partialorder %v2882, 8.507059e+37
    %v2884 = vand.u32 %v2872, 2147483648
    %v2885 = vor.u32 1.1754944e-38, %v2884
    %v2886 = vsel %vm2883, %v2885, %v2881
    %v2887 = vmul.f32 %v2862, %v2886
    %v2888 = vmin.f32 %v2887, 1.0
    %v2889 = vmax.f32 %v2888, -1.0
    %v2890 = vmul.f32 %v2845, %v2845
    %v2891 = vmin.f32 16.0, %v2890
    %v2892 = vmul.f32 %v2891, 2.1237322e-06
    %v2893 = vadd.f32 %v2892, 0.00028619796
    %v2894 = vmul.f32 %v2891, %v2893
    %v2895 = vadd.f32 %v2894, 0.0036580483
    %v2896 = vmul.f32 %v2891, %v2895
    %v2897 = vadd.f32 %v2896, 0.05243302
    %v2898 = vmul.f32 %v2891, %v2897
    %v2899 = vadd.f32 %v2898, 0.18741608
    %v2900 = vmul.f32 %v2891, %v2899
    %v2901 = vadd.f32 %v2900, 1.1283791
    %v2902 = vmul.f32 %v2845, %v2901
    %v2903 = vmul.f32 %v2891, 3.8918573e-05
    %v2904 = vadd.f32 %v2903, 0.001143296
    %v2905 = vmul.f32 %v2891, %v2904
    %v2906 = vadd.f32 %v2905, 0.014752088
    %v2907 = vmul.f32 %v2891, %v2906
    %v2908 = vadd.f32 %v2907, 0.112945676
    %v2909 = vmul.f32 %v2891, %v2908
    %v2910 = vadd.f32 %v2909, 0.4994258
    %v2911 = vmul.f32 %v2891, %v2910
    %v2912 = vadd.f32 %v2911, 1.0
    %v2913 = vrcp.pop %v2912
    %v2914 = vmul.f32 %v2912, %v2913
    %v2915 = vsub.f32 1.0, %v2914
    %v2916 = vmul.f32 %v2913, %v2915
    %v2917 = vadd.f32 %v2913, %v2916
    %vm2918 = vweird.f32 %v2912
    %vm2919 = vweird.f32 %v2913
    %vm2920 = vmor %vm2918, %vm2919
    %v2921 = vsel %vm2920, %v2913, %v2917
    %v2922 = vand.u32 2147483647, %v2912
    %vm2923 = vcmp.eq.f32.partialorder %v2922, 8.507059e+37
    %v2924 = vand.u32 %v2912, 2147483648
    %v2925 = vor.u32 1.1754944e-38, %v2924
    %v2926 = vsel %vm2923, %v2925, %v2921
    %v2927 = vmul.f32 %v2902, %v2926
    %v2928 = vmin.f32 %v2927, 1.0
    %v2929 = vmax.f32 %v2928, -1.0
    %v2930 = vmul.f32 %v2846, %v2846
    %v2931 = vmin.f32 16.0, %v2930
    %v2932 = vmul.f32 %v2931, 2.1237322e-06
    %v2933 = vadd.f32 %v2932, 0.00028619796
    %v2934 = vmul.f32 %v2931, %v2933
    %v2935 = vadd.f32 %v2934, 0.0036580483
    %v2936 = vmul.f32 %v2931, %v2935
    %v2937 = vadd.f32 %v2936, 0.05243302
    %v2938 = vmul.f32 %v2931, %v2937
    %v2939 = vadd.f32 %v2938, 0.18741608
    %v2940 = vmul.f32 %v2931, %v2939
    %v2941 = vadd.f32 %v2940, 1.1283791
    %v2942 = vmul.f32 %v2846, %v2941
    %v2943 = vmul.f32 %v2931, 3.8918573e-05
    %v2944 = vadd.f32 %v2943, 0.001143296
    %v2945 = vmul.f32 %v2931, %v2944
    %v2946 = vadd.f32 %v2945, 0.014752088
    %v2947 = vmul.f32 %v2931, %v2946
    %v2948 = vadd.f32 %v2947, 0.112945676
    %v2949 = vmul.f32 %v2931, %v2948
    %v2950 = vadd.f32 %v2949, 0.4994258
    %v2951 = vmul.f32 %v2931, %v2950
    %v2952 = vadd.f32 %v2951, 1.0
    %v2953 = vrcp.pop %v2952
    %v2954 = vmul.f32 %v2952, %v2953
    %v2955 = vsub.f32 1.0, %v2954
    %v2956 = vmul.f32 %v2953, %v2955
    %v2957 = vadd.f32 %v2953, %v2956
    %vm2958 = vweird.f32 %v2952
    %vm2959 = vweird.f32 %v2953
    %vm2960 = vmor %vm2958, %vm2959
    %v2961 = vsel %vm2960, %v2953, %v2957
    %v2962 = vand.u32 2147483647, %v2952
    %vm2963 = vcmp.eq.f32.partialorder %v2962, 8.507059e+37
    %v2964 = vand.u32 %v2952, 2147483648
    %v2965 = vor.u32 1.1754944e-38, %v2964
    %v2966 = vsel %vm2963, %v2965, %v2961
    %v2967 = vmul.f32 %v2942, %v2966
    %v2968 = vmin.f32 %v2967, 1.0
    %v2969 = vmax.f32 %v2968, -1.0
    %v2970 = vmul.f32 %v2847, %v2847
    %v2971 = vmin.f32 16.0, %v2970
    %v2972 = vmul.f32 %v2971, 2.1237322e-06
    %v2973 = vadd.f32 %v2972, 0.00028619796
    %v2974 = vmul.f32 %v2971, %v2973
    %v2975 = vadd.f32 %v2974, 0.0036580483
    %v2976 = vmul.f32 %v2971, %v2975
    %v2977 = vadd.f32 %v2976, 0.05243302
    %v2978 = vmul.f32 %v2971, %v2977
    %v2979 = vadd.f32 %v2978, 0.18741608
    %v2980 = vmul.f32 %v2971, %v2979
    %v2981 = vadd.f32 %v2980, 1.1283791
    %v2982 = vmul.f32 %v2847, %v2981
    %v2983 = vmul.f32 %v2971, 3.8918573e-05
    %v2984 = vadd.f32 %v2983, 0.001143296
    %v2985 = vmul.f32 %v2971, %v2984
    %v2986 = vadd.f32 %v2985, 0.014752088
    %v2987 = vmul.f32 %v2971, %v2986
    %v2988 = vadd.f32 %v2987, 0.112945676
    %v2989 = vmul.f32 %v2971, %v2988
    %v2990 = vadd.f32 %v2989, 0.4994258
    %v2991 = vmul.f32 %v2971, %v2990
    %v2992 = vadd.f32 %v2991, 1.0
    %v2993 = vrcp.pop %v2992
    %v2994 = vmul.f32 %v2992, %v2993
    %v2995 = vsub.f32 1.0, %v2994
    %v2996 = vmul.f32 %v2993, %v2995
    %v2997 = vadd.f32 %v2993, %v2996
    %vm2998 = vweird.f32 %v2992
    %vm2999 = vweird.f32 %v2993
    %vm3000 = vmor %vm2998, %vm2999
    %v3001 = vsel %vm3000, %v2993, %v2997
    %v3002 = vand.u32 2147483647, %v2992
    %vm3003 = vcmp.eq.f32.partialorder %v3002, 8.507059e+37
    %v3004 = vand.u32 %v2992, 2147483648
    %v3005 = vor.u32 1.1754944e-38, %v3004
    %v3006 = vsel %vm3003, %v3005, %v3001
    %v3007 = vmul.f32 %v2982, %v3006
    %v3008 = vmin.f32 %v3007, 1.0
    %v3009 = vmax.f32 %v3008, -1.0
    %v3010 = vmul.f32 %v2848, %v2848
    %v3011 = vmin.f32 16.0, %v3010
    %v3012 = vmul.f32 %v3011, 2.1237322e-06
    %v3013 = vadd.f32 %v3012, 0.00028619796
    %v3014 = vmul.f32 %v3011, %v3013
    %v3015 = vadd.f32 %v3014, 0.0036580483
    %v3016 = vmul.f32 %v3011, %v3015
    %v3017 = vadd.f32 %v3016, 0.05243302
    %v3018 = vmul.f32 %v3011, %v3017
    %v3019 = vadd.f32 %v3018, 0.18741608
    %v3020 = vmul.f32 %v3011, %v3019
    %v3021 = vadd.f32 %v3020, 1.1283791
    %v3022 = vmul.f32 %v2848, %v3021
    %v3023 = vmul.f32 %v3011, 3.8918573e-05
    %v3024 = vadd.f32 %v3023, 0.001143296
    %v3025 = vmul.f32 %v3011, %v3024
    %v3026 = vadd.f32 %v3025, 0.014752088
    %v3027 = vmul.f32 %v3011, %v3026
    %v3028 = vadd.f32 %v3027, 0.112945676
    %v3029 = vmul.f32 %v3011, %v3028
    %v3030 = vadd.f32 %v3029, 0.4994258
    %v3031 = vmul.f32 %v3011, %v3030
    %v3032 = vadd.f32 %v3031, 1.0
    %v3033 = vrcp.pop %v3032
    %v3034 = vmul.f32 %v3032, %v3033
    %v3035 = vsub.f32 1.0, %v3034
    %v3036 = vmul.f32 %v3033, %v3035
    %v3037 = vadd.f32 %v3033, %v3036
    %vm3038 = vweird.f32 %v3032
    %vm3039 = vweird.f32 %v3033
    %vm3040 = vmor %vm3038, %vm3039
    %v3041 = vsel %vm3040, %v3033, %v3037
    %v3042 = vand.u32 2147483647, %v3032
    %vm3043 = vcmp.eq.f32.partialorder %v3042, 8.507059e+37
    %v3044 = vand.u32 %v3032, 2147483648
    %v3045 = vor.u32 1.1754944e-38, %v3044
    %v3046 = vsel %vm3043, %v3045, %v3041
    %v3047 = vmul.f32 %v3022, %v3046
    %v3048 = vmin.f32 %v3047, 1.0
    %v3049 = vmax.f32 %v3048, -1.0
    %v3050 = vmul.f32 %v2849, %v2849
    %v3051 = vmin.f32 16.0, %v3050
    %v3052 = vmul.f32 %v3051, 2.1237322e-06
    %v3053 = vadd.f32 %v3052, 0.00028619796
    %v3054 = vmul.f32 %v3051, %v3053
    %v3055 = vadd.f32 %v3054, 0.0036580483
    %v3056 = vmul.f32 %v3051, %v3055
    %v3057 = vadd.f32 %v3056, 0.05243302
    %v3058 = vmul.f32 %v3051, %v3057
    %v3059 = vadd.f32 %v3058, 0.18741608
    %v3060 = vmul.f32 %v3051, %v3059
    %v3061 = vadd.f32 %v3060, 1.1283791
    %v3062 = vmul.f32 %v2849, %v3061
    %v3063 = vmul.f32 %v3051, 3.8918573e-05
    %v3064 = vadd.f32 %v3063, 0.001143296
    %v3065 = vmul.f32 %v3051, %v3064
    %v3066 = vadd.f32 %v3065, 0.014752088
    %v3067 = vmul.f32 %v3051, %v3066
    %v3068 = vadd.f32 %v3067, 0.112945676
    %v3069 = vmul.f32 %v3051, %v3068
    %v3070 = vadd.f32 %v3069, 0.4994258
    %v3071 = vmul.f32 %v3051, %v3070
    %v3072 = vadd.f32 %v3071, 1.0
    %v3073 = vrcp.pop %v3072
    %v3074 = vmul.f32 %v3072, %v3073
    %v3075 = vsub.f32 1.0, %v3074
    %v3076 = vmul.f32 %v3073, %v3075
    %v3077 = vadd.f32 %v3073, %v3076
    %vm3078 = vweird.f32 %v3072
    %vm3079 = vweird.f32 %v3073
    %vm3080 = vmor %vm3078, %vm3079
    %v3081 = vsel %vm3080, %v3073, %v3077
    %v3082 = vand.u32 2147483647, %v3072
    %vm3083 = vcmp.eq.f32.partialorder %v3082, 8.507059e+37
    %v3084 = vand.u32 %v3072, 2147483648
    %v3085 = vor.u32 1.1754944e-38, %v3084
    %v3086 = vsel %vm3083, %v3085, %v3081
    %v3087 = vmul.f32 %v3062, %v3086
    %v3088 = vmin.f32 %v3087, 1.0
    %v3089 = vmax.f32 %v3088, -1.0
    %v3090 = vadd.f32 %v2889, 1.0
    %v3091 = vadd.f32 %v2929, 1.0
    %v3092 = vadd.f32 %v2969, 1.0
    %v3093 = vadd.f32 %v3009, 1.0
    %v3094 = vadd.f32 %v3049, 1.0
    %v3095 = vadd.f32 %v3089, 1.0
    %v3096 = vmul.f32 %v2838, %v3090
    %v3097 = vmul.f32 %v2839, %v3091
    %v3098 = vmul.f32 %v2840, %v3092
    %v3099 = vmul.f32 %v2841, %v3093
    %v3100 = vmul.f32 %v2842, %v3094
    %v3101 = vmul.f32 %v2843, %v3095
    %s3102 = scalar_lea.vmem %s11, 128
    %v3103 = vld [vmem:[%s3102] sm:$0xff]
    %v3104 = vld [vmem:[%s3102 + $0x8] sm:$0xff]
    %v3105 = vld [vmem:[%s3102 + $0x10] sm:$0xff]
    %v3106 = vld [vmem:[%s3102 + $0x18] sm:$0xff]
    %v3107 = vld [vmem:[%s3102 + $0x20] sm:$0xff]
    %v3108 = vld [vmem:[%s3102 + $0x28] sm:$0xff]
    %v3109 = vld [vmem:[%s3102 + $0x30] sm:$0xff]
    %v3110 = vld [vmem:[%s3102 + $0x38] sm:$0xff]
    %v3111 = vld [vmem:[%s3102 + $0x40] sm:$0xff]
    %v3112 = vld [vmem:[%s3102 + $0x48] sm:$0xff]
    %v3113 = vld [vmem:[%s3102 + $0x50] sm:$0xff]
    %v3114 = vld [vmem:[%s3102 + $0x58] sm:$0xff]
    %v3115 = vld [vmem:[%s3102 + $0x60] sm:$0xff]
    %v3116 = vld [vmem:[%s3102 + $0x68] sm:$0xff]
    %v3117 = vld [vmem:[%s3102 + $0x70] sm:$0xff]
    %v3118 = vld [vmem:[%s3102 + $0x78] sm:$0xff]
    %3119 = vmatpush.msra.mxu0 %v3118
    %3120 = vmatpush.msra.mxu0 %v3117
    %3121 = vmatpush.msra.mxu0 %v3116
    %3122 = vmatpush.msra.mxu0 %v3115
    %3123 = vmatpush.msra.mxu0 %v3114
    %3124 = vmatpush.msra.mxu0 %v3113
    %3125 = vmatpush.msra.mxu0 %v3112
    %3126 = vmatpush.msra.mxu0 %v3111
    %3127 = vmatpush.msra.mxu0 %v3110
    %3128 = vmatpush.msra.mxu0 %v3109
    %3129 = vmatpush.msra.mxu0 %v3108
    %3130 = vmatpush.msra.mxu0 %v3107
    %3131 = vmatpush.msra.mxu0 %v3106
    %3132 = vmatpush.msra.mxu0 %v3105
    %3133 = vmatpush.msra.mxu0 %v3104
    %3134 = vmatpush.msra.mxu0 %v3103
    %3135 = vmatmul.f32.gmra.mxu0 %v3096
    %v3136 = vpop.f32.mrf.mxu0
    %v3137 = vadd.f32 0.0, %v3136
    %3138 = vmatmul.f32.gmra.mxu0 %v3097
    %v3139 = vpop.f32.mrf.mxu0
    %3140 = vmatmul.f32.gmra.mxu0 %v3098
    %v3141 = vpop.f32.mrf.mxu0
    %3142 = vmatmul.f32.gmra.mxu0 %v3099
    %v3143 = vpop.f32.mrf.mxu0
    %v3144 = vadd.f32 0.0, %v3143
    %3145 = vmatmul.f32.gmra.mxu0 %v3100
    %v3146 = vpop.f32.mrf.mxu0
    %3147 = vmatmul.f32.gmra.mxu0 %v3101
    %v3148 = vpop.f32.mrf.mxu0
    %3149 = vdwg.mxu0
    %v3150 = vadd.f32 %v2519, %v3137
    %v3151 = vadd.f32 %v2522, %v3144
    %s3152 = scalar_lea.vmem %s12, 1
    %v3153 = vld [vmem:[%s3152] sm:$0x1]
    %v3155 = vperm.slane %v3153, 0
    %v3157 = vadd.f32 %v3150, %v3155
    %v3158 = vadd.f32 %v3151, %v3155
    %v3159 = vld [vmem:[%s13] sm:$0xff]
    %v3160 = vld [vmem:[%s13 + $0x8] sm:$0xff]
    %v3161 = vld [vmem:[%s13 + $0x10] sm:$0xff]
    %v3162 = vld [vmem:[%s13 + $0x18] sm:$0xff]
    %v3163 = vld [vmem:[%s14] sm:$0x1]
    %v3165 = vperm.slane %v3163, 0
    %v3169 = vrot.slane %v3158, 7
    %vm3170 = vcmask 1041409
    %v3171 = vsel %vm3170, %v3169, %v3157
    %v3172 = vsel %vm131, %v3171, 0
    %3174 = vmatpush.msra.mxu0 0.0
    %3175 = vmatpush.msra.mxu0 0.0
    %3176 = vmatpush.msra.mxu0 0.0
    %3177 = vmatpush.msra.mxu0 0.0
    %3178 = vmatpush.msra.mxu0 0.0
    %3179 = vmatpush.msra.mxu0 0.0
    %3180 = vmatpush.msra.mxu0 0.0
    %3181 = vmatpush.msra.mxu0 0.0
    %3182 = vmatpush.msra.mxu0 0.0
    %3183 = vmatpush.msra.mxu0 0.0
    %3184 = vmatpush.msra.mxu0 0.0
    %3185 = vmatpush.msra.mxu0 0.0
    %3186 = vmatpush.msra.mxu0 %v3162
    %3187 = vmatpush.msra.mxu0 %v3161
    %3188 = vmatpush.msra.mxu0 %v3160
    %3189 = vmatpush.msra.mxu0 %v3159
    %3190 = vmatmul.f32.gmra.mxu0 %v3172
    %v3191 = vpop.f32.mrf.mxu0
    %v3192 = vadd.f32 %v3165, %v3191
    %3193 = vdwg.mxu0
    %vm3194 = vcmask 1041408
    %v3195 = vsel %vm3194, %v3192, -inf
    %3196 = vmax.xlane.f32.xlu0 %v3195
    %v3197 = vpop.xlane.xlu0 %3196
    %v3198 = vsub.f32 %v3192, %v3197
    %v3199 = vmul.f32 %v3198, 1.442695
    %v3200 = vpow.pop %v3199
    %v3201 = vsel %vm3194, %v3200, 0.0
    %3202 = vadd.xlane.f32.xlu0 %v3201
    %v3203 = vpop.xlane.xlu0 %3202
    %v3204 = vrcp.pop %v3203
    %v3205 = vmul.f32 %v3203, %v3204
    %v3206 = vsub.f32 1.0, %v3205
    %v3207 = vmul.f32 %v3204, %v3206
    %v3208 = vadd.f32 %v3204, %v3207
    %vm3209 = vweird.f32 %v3203
    %vm3210 = vweird.f32 %v3204
    %vm3211 = vmor %vm3209, %vm3210
    %v3212 = vsel %vm3211, %v3204, %v3208
    %v3213 = vand.u32 2147483647, %v3203
    %vm3214 = vcmp.eq.f32.partialorder %v3213, 8.507059e+37
    %v3215 = vand.u32 %v3203, 2147483648
    %v3216 = vor.u32 1.1754944e-38, %v3215
    %v3217 = vsel %vm3214, %v3216, %v3212
    %v3218 = vmul.f32 %v3200, %v3217
    %3219 = vst [vmem:[#allocation2] sm:$0x3] %v3218
    // Predicated region
    $region62: #{forward.1} parent=1 // pred_check
      _
    $region63: #{forward.1} parent=1 // pred_check_branch
      %3221 = sbr.rel (0) target = $region65
    $region64: #{forward.1} parent=1 // pred_region
      %3223 = vsyncadd [#allocation3], 0
      %s3225 = sshll.u32 [#allocation2], 4
      %s3226 = int_to_ptr.vmem [resolvable:$true] %s3225
      %s3227 = sshll.u32 %s15, 4
      %s3228 = int_to_ptr.hbm [resolvable:$true] %s3227
      %3230 = dma.vmem_to_hbm [thread:$0]  %s3226, 32, %s3228, [#allocation3]
    $region65: #{forward.1} parent=1 // pred_fallthru
      _
    // Predicated region
    $region66: #{forward.1} parent=1 // pred_check
      _
    $region67: #{forward.1} parent=1 // pred_check_branch
      %3232 = sbr.rel (0) target = $region69
    $region68: #{forward.1} parent=1 // pred_region
      %3234 = dma.done [#allocation3], 32
    $region69: #{forward.1} parent=1 // pred_fallthru
      _
    %3235 = vsyncpa [#allocation3], 1

</llo_original>
